<compile_context>
chip_gen: v6e
topology: v6e:2x2x1
jax: 0.10.0
libtpu: 0.0.40
codegen_flags: <defaults>
</compile_context>

<pallas_src>
import jax
import jax.numpy as jnp
from jax.experimental import pallas as pl
from jax.experimental.pallas import tpu as pltpu


def _gauss_cmm(ar, ai, br, bi, mm):
    """Complex matmul with 3 real matmuls (Gauss form).

    (ar + i*ai) @ (br + i*bi) -> (real, imag)
    """
    t1 = mm(ar, br)
    t2 = mm(ai, bi)
    t3 = mm(ar + ai, br + bi)
    return t1 - t2, t3 - t1 - t2


def param_block_kernel(acat_ref, h_ref, v_ref, xy_ref, z_ref, out_ref):
    # acat_ref : (2, B_blk, Nt, 2*Nt)  -- [A^H | A]  real/imag
    # h_ref    : (2, B_blk, Nt, Nt)
    # v_ref    : (2, B_blk, Nt, d)
    # xy_ref   : (2, 2*Nt, Nt)         -- [X; Y]     real/imag (shared params)
    # z_ref    : (2, Nt, Nt)
    # out_ref  : (2, B_blk, Nt, d)
    _, B_blk, Nt, K2 = acat_ref.shape

    mm2d = lambda a, b: jnp.dot(a, b, preferred_element_type=jnp.float32)
    mmb = lambda a, b: jnp.einsum("bik,bkj->bij", a, b,
                                  preferred_element_type=jnp.float32)

    # term = A^H @ X + A @ Y (+ Z), flattened across the batch block so the
    # MXU sees M = B_blk*Nt rows and K = 2*Nt depth in a single complex matmul.
    acr = acat_ref[0].reshape(B_blk * Nt, K2)
    aci = acat_ref[1].reshape(B_blk * Nt, K2)
    tr, ti = _gauss_cmm(acr, aci, xy_ref[0], xy_ref[1], mm2d)
    tr = tr.reshape(B_blk, Nt, Nt) + z_ref[0]
    ti = ti.reshape(B_blk, Nt, Nt) + z_ref[1]

    # HV = H @ V  (batched), then out = term @ HV (batched).
    hvr, hvi = _gauss_cmm(h_ref[0], h_ref[1], v_ref[0], v_ref[1], mmb)
    outr, outi = _gauss_cmm(tr, ti, hvr, hvi, mmb)

    out_ref[0] = outr
    out_ref[1] = outi


def param_block_forward(A, H, V, X, Y, Z, *, block_b=8):
    """A: (B, Nt, Nt); H: (B, Nr, Nt) with Nr == Nt; V: (B, Nt, d);
    X/Y/Z: (Nt, Nt). All complex64. Returns (B, Nt, d) complex64."""
    B, Nt, _ = A.shape
    Nr = H.shape[-2]
    d = V.shape[-1]
    assert Nr == Nt, "term @ (H @ V) requires Nr == Nt"
    assert H.shape[-1] == Nt and V.shape[-2] == Nt

    # Pre-stack [A^H | A] along K in the wrapper (cheap XLA layout work) so the
    # kernel needs no transposes and the X/Y contraction fuses to one matmul.
    Ah = jnp.conj(jnp.swapaxes(A, -2, -1))
    Acat = jnp.concatenate([Ah, A], axis=-1)               # (B, Nt, 2*Nt)
    XYcat = jnp.concatenate([X, Y], axis=0)                # (2*Nt, Nt)

    def ri(c):  # one f32 operand per complex tensor: (2, ...) = [real, imag]
        return jnp.stack([jnp.real(c), jnp.imag(c)], axis=0).astype(jnp.float32)

    Acat_ri, H_ri, V_ri = ri(Acat), ri(H), ri(V)
    XY_ri, Z_ri = ri(XYcat), ri(Z)

    # Batch blocking: B_blk batch elements per grid step (pad B if needed).
    B_blk = max(1, min(block_b, B))
    n_blocks = -(-B // B_blk)
    B_pad = n_blocks * B_blk
    if B_pad != B:
        pad = ((0, 0), (0, B_pad - B), (0, 0), (0, 0))
        Acat_ri = jnp.pad(Acat_ri, pad)
        H_ri = jnp.pad(H_ri, pad)
        V_ri = jnp.pad(V_ri, pad)

    def batched(last):
        return pl.BlockSpec((2, B_blk, Nt, last), lambda g: (0, g, 0, 0))

    def shared(rows):
        return pl.BlockSpec((2, rows, Nt), lambda g: (0, 0, 0))

    out = pl.pallas_call(
        param_block_kernel,
        out_shape=jax.ShapeDtypeStruct((2, B_pad, Nt, d), jnp.float32),
        grid_spec=pltpu.PrefetchScalarGridSpec(
            num_scalar_prefetch=0,
            grid=(n_blocks,),
            in_specs=[batched(2 * Nt),   # [A^H | A] real/imag
                      batched(Nt),       # H
                      batched(d),        # V
                      shared(2 * Nt),    # [X; Y] params (resident, no re-DMA)
                      shared(Nt)],       # Z
            out_specs=batched(d),
        ),
        compiler_params=pltpu.CompilerParams(
            dimension_semantics=("parallel",)),
    )(Acat_ri, H_ri, V_ri, XY_ri, Z_ri)

    return (out[0, :B] + 1j * out[1, :B]).astype(jnp.complex64)


def _reference(A, H, V, X, Y, Z):
    def herm(a):
        return jnp.swapaxes(a, -2, -1).conj()
    term = herm(A) @ X + A @ Y + Z
    return term @ (H @ V)


if __name__ == "__main__":
    B, Nt, d = 16, 16, 8   # batch, antennas (Nr == Nt), streams

    key = jax.random.PRNGKey(0)
    ks = jax.random.split(key, 12)

    def crandn(kr, ki, shape, scale=1.0):
        return (scale * jax.random.normal(kr, shape)
                + 1j * scale * jax.random.normal(ki, shape)).astype(jnp.complex64)

    # Deterministic parameters (matches 0.1 * randn(Nt, Nt, dtype=cfloat))
    X = crandn(ks[0], ks[1], (Nt, Nt), 0.1)
    Y = crandn(ks[2], ks[3], (Nt, Nt), 0.1)
    Z = crandn(ks[4], ks[5], (Nt, Nt), 0.1)

    # Inputs
    A = crandn(ks[6], ks[7], (B, Nt, Nt))
    H = crandn(ks[8], ks[9], (B, Nt, Nt))
    V = crandn(ks[10], ks[11], (B, Nt, d))

    out = param_block_forward(A, H, V, X, Y, Z)
    out = jax.block_until_ready(out)

    ref = _reference(A, H, V, X, Y, Z)
    assert out.shape == (B, Nt, d)
    assert jnp.allclose(out, ref, atol=1e-3, rtol=1e-3), "mismatch vs reference"

    print("KERNEL_OK")
</pallas_src>

<mosaic_0001>
module attributes {stable_mosaic.version = 11 : i64} {
  func.func @param_block_kernel(%arg0: i32, %arg1: memref<2x8x16x32xf32, #tpu.memory_space<vmem>>, %arg2: memref<2x8x16x16xf32, #tpu.memory_space<vmem>>, %arg3: memref<2x8x16x8xf32, #tpu.memory_space<vmem>>, %arg4: memref<2x32x16xf32, #tpu.memory_space<vmem>>, %arg5: memref<2x16x16xf32, #tpu.memory_space<vmem>>, %arg6: memref<2x8x16x8xf32, #tpu.memory_space<vmem>>) attributes {dimension_semantics = [#tpu.dimension_semantics<parallel>], iteration_bounds = array<i64: 2>, scalar_prefetch = 0 : i64, scratch_operands = 0 : i64, tpu.core_type = #tpu.core_type<tc>, window_params = [{transform_indices = @transform_0, window_bounds = array<i64: 2, 8, 16, 32>}, {transform_indices = @transform_1, window_bounds = array<i64: 2, 8, 16, 16>}, {transform_indices = @transform_2, window_bounds = array<i64: 2, 8, 16, 8>}, {pipeline_mode = #tpu.pipeline_mode<synchronous>, transform_indices = @transform_3, window_bounds = array<i64: 2, 32, 16>}, {pipeline_mode = #tpu.pipeline_mode<synchronous>, transform_indices = @transform_4, window_bounds = array<i64: 2, 16, 16>}, {transform_indices = @transform_5, window_bounds = array<i64: 2, 8, 16, 8>}]} {
    %c0 = arith.constant 0 : index
    %c0_0 = arith.constant 0 : index
    %c0_1 = arith.constant 0 : index
    %c0_2 = arith.constant 0 : index
    %0 = vector.load %arg1[%c0, %c0_0, %c0_1, %c0_2] : memref<2x8x16x32xf32, #tpu.memory_space<vmem>>, vector<1x8x16x32xf32>
    %1 = vector.shape_cast %0 : vector<1x8x16x32xf32> to vector<8x16x32xf32>
    %2 = vector.shape_cast %1 : vector<8x16x32xf32> to vector<128x32xf32>
    %c1 = arith.constant 1 : index
    %c0_3 = arith.constant 0 : index
    %c0_4 = arith.constant 0 : index
    %c0_5 = arith.constant 0 : index
    %3 = vector.load %arg1[%c1, %c0_3, %c0_4, %c0_5] : memref<2x8x16x32xf32, #tpu.memory_space<vmem>>, vector<1x8x16x32xf32>
    %4 = vector.shape_cast %3 : vector<1x8x16x32xf32> to vector<8x16x32xf32>
    %5 = vector.shape_cast %4 : vector<8x16x32xf32> to vector<128x32xf32>
    %c0_6 = arith.constant 0 : index
    %c0_7 = arith.constant 0 : index
    %c0_8 = arith.constant 0 : index
    %6 = vector.load %arg4[%c0_6, %c0_7, %c0_8] : memref<2x32x16xf32, #tpu.memory_space<vmem>>, vector<1x32x16xf32>
    %7 = vector.shape_cast %6 : vector<1x32x16xf32> to vector<32x16xf32>
    %c1_9 = arith.constant 1 : index
    %c0_10 = arith.constant 0 : index
    %c0_11 = arith.constant 0 : index
    %8 = vector.load %arg4[%c1_9, %c0_10, %c0_11] : memref<2x32x16xf32, #tpu.memory_space<vmem>>, vector<1x32x16xf32>
    %9 = vector.shape_cast %8 : vector<1x32x16xf32> to vector<32x16xf32>
    %cst = arith.constant dense<0.000000e+00> : vector<128x16xf32>
    %10 = tpu.matmul %2, %7, %cst {dimension_numbers = #tpu.dot_dimension_numbers<[1], [0], [0], [1], [0, 0, 1, 1], [], []>} : vector<128x32xf32>, vector<32x16xf32>, vector<128x16xf32> -> vector<128x16xf32>
    %cst_12 = arith.constant dense<0.000000e+00> : vector<128x16xf32>
    %11 = tpu.matmul %5, %9, %cst_12 {dimension_numbers = #tpu.dot_dimension_numbers<[1], [0], [0], [1], [0, 0, 1, 1], [], []>} : vector<128x32xf32>, vector<32x16xf32>, vector<128x16xf32> -> vector<128x16xf32>
    %12 = arith.addf %2, %5 : vector<128x32xf32>
    %13 = arith.addf %7, %9 : vector<32x16xf32>
    %cst_13 = arith.constant dense<0.000000e+00> : vector<128x16xf32>
    %14 = tpu.matmul %12, %13, %cst_13 {dimension_numbers = #tpu.dot_dimension_numbers<[1], [0], [0], [1], [0, 0, 1, 1], [], []>} : vector<128x32xf32>, vector<32x16xf32>, vector<128x16xf32> -> vector<128x16xf32>
    %15 = arith.subf %10, %11 : vector<128x16xf32>
    %16 = arith.subf %14, %10 : vector<128x16xf32>
    %17 = arith.subf %16, %11 : vector<128x16xf32>
    %18 = vector.shape_cast %15 : vector<128x16xf32> to vector<8x16x16xf32>
    %c0_14 = arith.constant 0 : index
    %c0_15 = arith.constant 0 : index
    %c0_16 = arith.constant 0 : index
    %19 = vector.load %arg5[%c0_14, %c0_15, %c0_16] : memref<2x16x16xf32, #tpu.memory_space<vmem>>, vector<1x16x16xf32>
    %20 = vector.shape_cast %19 : vector<1x16x16xf32> to vector<16x16xf32>
    %21 = vector.shape_cast %20 : vector<16x16xf32> to vector<1x16x16xf32>
    %22 = vector.broadcast %21 : vector<1x16x16xf32> to vector<8x16x16xf32>
    %23 = arith.addf %18, %22 : vector<8x16x16xf32>
    %24 = vector.shape_cast %17 : vector<128x16xf32> to vector<8x16x16xf32>
    %c1_17 = arith.constant 1 : index
    %c0_18 = arith.constant 0 : index
    %c0_19 = arith.constant 0 : index
    %25 = vector.load %arg5[%c1_17, %c0_18, %c0_19] : memref<2x16x16xf32, #tpu.memory_space<vmem>>, vector<1x16x16xf32>
    %26 = vector.shape_cast %25 : vector<1x16x16xf32> to vector<16x16xf32>
    %27 = vector.shape_cast %26 : vector<16x16xf32> to vector<1x16x16xf32>
    %28 = vector.broadcast %27 : vector<1x16x16xf32> to vector<8x16x16xf32>
    %29 = arith.addf %24, %28 : vector<8x16x16xf32>
    %c0_20 = arith.constant 0 : index
    %c0_21 = arith.constant 0 : index
    %c0_22 = arith.constant 0 : index
    %c0_23 = arith.constant 0 : index
    %30 = vector.load %arg2[%c0_20, %c0_21, %c0_22, %c0_23] : memref<2x8x16x16xf32, #tpu.memory_space<vmem>>, vector<1x8x16x16xf32>
    %31 = vector.shape_cast %30 : vector<1x8x16x16xf32> to vector<8x16x16xf32>
    %c1_24 = arith.constant 1 : index
    %c0_25 = arith.constant 0 : index
    %c0_26 = arith.constant 0 : index
    %c0_27 = arith.constant 0 : index
    %32 = vector.load %arg2[%c1_24, %c0_25, %c0_26, %c0_27] : memref<2x8x16x16xf32, #tpu.memory_space<vmem>>, vector<1x8x16x16xf32>
    %33 = vector.shape_cast %32 : vector<1x8x16x16xf32> to vector<8x16x16xf32>
    %c0_28 = arith.constant 0 : index
    %c0_29 = arith.constant 0 : index
    %c0_30 = arith.constant 0 : index
    %c0_31 = arith.constant 0 : index
    %34 = vector.load %arg3[%c0_28, %c0_29, %c0_30, %c0_31] : memref<2x8x16x8xf32, #tpu.memory_space<vmem>>, vector<1x8x16x8xf32>
    %35 = vector.shape_cast %34 : vector<1x8x16x8xf32> to vector<8x16x8xf32>
    %c1_32 = arith.constant 1 : index
    %c0_33 = arith.constant 0 : index
    %c0_34 = arith.constant 0 : index
    %c0_35 = arith.constant 0 : index
    %36 = vector.load %arg3[%c1_32, %c0_33, %c0_34, %c0_35] : memref<2x8x16x8xf32, #tpu.memory_space<vmem>>, vector<1x8x16x8xf32>
    %37 = vector.shape_cast %36 : vector<1x8x16x8xf32> to vector<8x16x8xf32>
    "tpu.trace_start"() <{level = 10 : i32, message = "bik,bkj->bij"}> : () -> ()
    %cst_36 = arith.constant dense<0.000000e+00> : vector<8x16x8xf32>
    %38 = tpu.matmul %31, %35, %cst_36 {dimension_numbers = #tpu.dot_dimension_numbers<[2], [1], [1], [2], [0, 0, 0, 1, 1, 2], [0], [0]>} : vector<8x16x16xf32>, vector<8x16x8xf32>, vector<8x16x8xf32> -> vector<8x16x8xf32>
    %cst_37 = arith.constant dense<0.000000e+00> : vector<8x16x8xf32>
    %39 = tpu.matmul %33, %37, %cst_37 {dimension_numbers = #tpu.dot_dimension_numbers<[2], [1], [1], [2], [0, 0, 0, 1, 1, 2], [0], [0]>} : vector<8x16x16xf32>, vector<8x16x8xf32>, vector<8x16x8xf32> -> vector<8x16x8xf32>
    "tpu.trace_stop"() : () -> ()
    %40 = arith.addf %31, %33 : vector<8x16x16xf32>
    %41 = arith.addf %35, %37 : vector<8x16x8xf32>
    "tpu.trace_start"() <{level = 10 : i32, message = "bik,bkj->bij"}> : () -> ()
    %cst_38 = arith.constant dense<0.000000e+00> : vector<8x16x8xf32>
    %42 = tpu.matmul %40, %41, %cst_38 {dimension_numbers = #tpu.dot_dimension_numbers<[2], [1], [1], [2], [0, 0, 0, 1, 1, 2], [0], [0]>} : vector<8x16x16xf32>, vector<8x16x8xf32>, vector<8x16x8xf32> -> vector<8x16x8xf32>
    "tpu.trace_stop"() : () -> ()
    %43 = arith.subf %38, %39 : vector<8x16x8xf32>
    %44 = arith.subf %42, %38 : vector<8x16x8xf32>
    %45 = arith.subf %44, %39 : vector<8x16x8xf32>
    "tpu.trace_start"() <{level = 10 : i32, message = "bik,bkj->bij"}> : () -> ()
    %cst_39 = arith.constant dense<0.000000e+00> : vector<8x16x8xf32>
    %46 = tpu.matmul %23, %43, %cst_39 {dimension_numbers = #tpu.dot_dimension_numbers<[2], [1], [1], [2], [0, 0, 0, 1, 1, 2], [0], [0]>} : vector<8x16x16xf32>, vector<8x16x8xf32>, vector<8x16x8xf32> -> vector<8x16x8xf32>
    %cst_40 = arith.constant dense<0.000000e+00> : vector<8x16x8xf32>
    %47 = tpu.matmul %29, %45, %cst_40 {dimension_numbers = #tpu.dot_dimension_numbers<[2], [1], [1], [2], [0, 0, 0, 1, 1, 2], [0], [0]>} : vector<8x16x16xf32>, vector<8x16x8xf32>, vector<8x16x8xf32> -> vector<8x16x8xf32>
    "tpu.trace_stop"() : () -> ()
    %48 = arith.addf %23, %29 : vector<8x16x16xf32>
    %49 = arith.addf %43, %45 : vector<8x16x8xf32>
    "tpu.trace_start"() <{level = 10 : i32, message = "bik,bkj->bij"}> : () -> ()
    %cst_41 = arith.constant dense<0.000000e+00> : vector<8x16x8xf32>
    %50 = tpu.matmul %48, %49, %cst_41 {dimension_numbers = #tpu.dot_dimension_numbers<[2], [1], [1], [2], [0, 0, 0, 1, 1, 2], [0], [0]>} : vector<8x16x16xf32>, vector<8x16x8xf32>, vector<8x16x8xf32> -> vector<8x16x8xf32>
    "tpu.trace_stop"() : () -> ()
    %51 = arith.subf %46, %47 : vector<8x16x8xf32>
    %52 = arith.subf %50, %46 : vector<8x16x8xf32>
    %53 = arith.subf %52, %47 : vector<8x16x8xf32>
    %c0_42 = arith.constant 0 : index
    %c0_43 = arith.constant 0 : index
    %c0_44 = arith.constant 0 : index
    %c0_45 = arith.constant 0 : index
    %54 = vector.load %arg6[%c0_42, %c0_43, %c0_44, %c0_45] : memref<2x8x16x8xf32, #tpu.memory_space<vmem>>, vector<1x8x16x8xf32>
    %55 = vector.shape_cast %54 : vector<1x8x16x8xf32> to vector<8x16x8xf32>
    %56 = vector.shape_cast %51 : vector<8x16x8xf32> to vector<1x8x16x8xf32>
    tpu.vector_store %arg6[%c0_42, %c0_43, %c0_44, %c0_45], %56 {strides = array<i32>} : memref<2x8x16x8xf32, #tpu.memory_space<vmem>>, vector<1x8x16x8xf32>,
    %c1_46 = arith.constant 1 : index
    %c0_47 = arith.constant 0 : index
    %c0_48 = arith.constant 0 : index
    %c0_49 = arith.constant 0 : index
    %57 = vector.load %arg6[%c1_46, %c0_47, %c0_48, %c0_49] : memref<2x8x16x8xf32, #tpu.memory_space<vmem>>, vector<1x8x16x8xf32>
    %58 = vector.shape_cast %57 : vector<1x8x16x8xf32> to vector<8x16x8xf32>
    %59 = vector.shape_cast %53 : vector<8x16x8xf32> to vector<1x8x16x8xf32>
    tpu.vector_store %arg6[%c1_46, %c0_47, %c0_48, %c0_49], %59 {strides = array<i32>} : memref<2x8x16x8xf32, #tpu.memory_space<vmem>>, vector<1x8x16x8xf32>,
    return
  }
  func.func @transform_0(%arg0: i32) -> (i32, i32, i32, i32) {
    %c0_i32 = arith.constant 0 : i32
    %c0_i32_0 = arith.constant 0 : i32
    %c0_i32_1 = arith.constant 0 : i32
    %c0_i32_2 = arith.constant 0 : i32
    return %c0_i32, %arg0, %c0_i32_0, %c0_i32_1 : i32, i32, i32, i32
  }
  func.func @transform_1(%arg0: i32) -> (i32, i32, i32, i32) {
    %c0_i32 = arith.constant 0 : i32
    %c0_i32_0 = arith.constant 0 : i32
    %c0_i32_1 = arith.constant 0 : i32
    %c0_i32_2 = arith.constant 0 : i32
    return %c0_i32, %arg0, %c0_i32_0, %c0_i32_1 : i32, i32, i32, i32
  }
  func.func @transform_2(%arg0: i32) -> (i32, i32, i32, i32) {
    %c0_i32 = arith.constant 0 : i32
    %c0_i32_0 = arith.constant 0 : i32
    %c0_i32_1 = arith.constant 0 : i32
    %c0_i32_2 = arith.constant 0 : i32
    return %c0_i32, %arg0, %c0_i32_0, %c0_i32_1 : i32, i32, i32, i32
  }
  func.func @transform_3(%arg0: i32) -> (i32, i32, i32) {
    %c0_i32 = arith.constant 0 : i32
    %c0_i32_0 = arith.constant 0 : i32
    %c0_i32_1 = arith.constant 0 : i32
    %c0_i32_2 = arith.constant 0 : i32
    return %c0_i32, %c0_i32_0, %c0_i32_1 : i32, i32, i32
  }
  func.func @transform_4(%arg0: i32) -> (i32, i32, i32) {
    %c0_i32 = arith.constant 0 : i32
    %c0_i32_0 = arith.constant 0 : i32
    %c0_i32_1 = arith.constant 0 : i32
    %c0_i32_2 = arith.constant 0 : i32
    return %c0_i32, %c0_i32_0, %c0_i32_1 : i32, i32, i32
  }
  func.func @transform_5(%arg0: i32) -> (i32, i32, i32, i32) {
    %c0_i32 = arith.constant 0 : i32
    %c0_i32_0 = arith.constant 0 : i32
    %c0_i32_1 = arith.constant 0 : i32
    %c0_i32_2 = arith.constant 0 : i32
    return %c0_i32, %arg0, %c0_i32_0, %c0_i32_1 : i32, i32, i32, i32
  }
}

</mosaic_0001>

<llo_original>
// kernel: tpu_custom_call.1
$region0: #{tpu_custom_call.1}
  #allocation0 [shape = 'u32[]', space=smem, size = 0x4, offset = 0x4, fixed_abs, tag = 'smem constant byte address 0x4 - core index']
  #allocation1 [shape = 'u32[144,128]{1,0:T(1,128)}', space=vmem, size = 0x12000, scoped, tag = 'internal scratch']
  #allocation7 [shape = 's32[]', space=sflag, size = 0x4, offset = 0, fixed_abs, tag = 'sflag constant byte address 0x0 - dummy sync flag']
  %s0 = inlined_call_operand.vmem [shape: f32[2,16,16,32], index: 0, kind: input, shape index: {}]
  %s1 = inlined_call_operand.hbm [shape: f32[2,16,16,16], index: 1, kind: input, shape index: {}]
  %s2 = inlined_call_operand.vmem [shape: f32[2,16,16,8], index: 2, kind: input, shape index: {}]
  %s3 = inlined_call_operand.vmem [shape: f32[2,32,16], index: 3, kind: input, shape index: {}]
  %s4 = inlined_call_operand.vmem [shape: f32[2,16,16], index: 4, kind: input, shape index: {}]
  %s5 = inlined_call_operand.vmem [shape: f32[2,16,16,8], index: 5, kind: output, shape index: {}]
  %s6 = sld [smem:[#allocation0]]
  $region167: #{tpu_custom_call.1} parent=0
    _
  %s8 = ssub.s32 1, %s6
  %s9 = scalar_select 0, %s8, %s6
  $region1: #{tpu_custom_call.1} parent=0
    #allocation2 [shape = 'u8[262144]{0}', space=vmem, size = 0x40000, scoped, tag = 'input window, operand 0']
    #allocation3 [shape = 'u8[262144]{0}', space=vmem, size = 0x40000, scoped, tag = 'input window, operand 1']
    #allocation4 [shape = 's32[2]{0}', space=sflag, size = 0x8, scoped, tag = 'scoped memory for tpu_custom_call.1']
    #allocation5 [shape = 'u8[262144]{0}', space=vmem, size = 0x40000, scoped, tag = 'input window, operand 2']
    #allocation6 [shape = 'u8[262144]{0}', space=vmem, size = 0x40000, scoped, tag = 'output window, operand 0']
    %10 = vsyncpa [#allocation4], 0
    %s11 = scalar_lea.sflag [#allocation4], 1
    %12 = vsyncpa %s11, 0
    loop: start=0, step=1, limit=4
    $region2: #{tpu_custom_call.1} parent=1 // loop_pre_header
      _
    $region3: #{tpu_custom_call.1} parent=1 // loop_header
      %s14 = sphi 0, %s18
      %p15 = scmp.ge.s32.totalorder %s14, 4
      %s24 = sphi 0, %s26
      %s27 = sphi 0, %s24
      %s28 = sphi 0, %s27
      %s44 = sphi 0, %s28
      %s50 = sphi 0, %s52
      %s53 = sphi 0, %s50
      %s54 = sphi 0, %s53
      %s70 = sphi 0, %s54
      %s76 = sphi 0, %s78
      %s79 = sphi 0, %s76
      %s80 = sphi 0, %s79
      %s96 = sphi 0, %s80
      %s100 = sphi 0, %s100
      %s102 = sphi 0, %s100
      %s103 = sphi 0, %s102
      %s117 = sphi 0, %s103
      %s121 = sphi 0, %s121
      %s123 = sphi 0, %s121
      %s124 = sphi 0, %s123
      %s138 = sphi 0, %s124
      %s144 = sphi 0, %s146
      %s147 = sphi 0, %s144
      %s148 = sphi 0, %s147
      %s164 = sphi 0, %s148
    $region4: #{tpu_custom_call.1} parent=1 // loop_header_branch
      %17 = sbr.rel (%p15) target = $region8
    $region5: #{tpu_custom_call.1} parent=1 // loop_body
      %s19 = ssub.s32 %s14, 1
      %s20 = ssub.s32 %s14, 2
      %s21 = sadd.s32 %s14, 1
      %s22 = ssub.s32 %s14, %s21
      %p23 = scmp.eq.s32.totalorder %s22, 0
      %s25 = sadd.s32 %s24, 1
      %s26 = scalar_select %p23, %s24, %s25
      %p29 = pneg %p23
      %p30 = scmp.eq.s32.totalorder %s14, 1
      %p31 = por %p29, %p30
      %p32 = scmp.ne.s32.totalorder %s24, %s27
      %p33 = scmp.eq.s32.totalorder %s14, 0
      %p34 = por %p32, %p33
      %p35 = scmp.ne.s32.totalorder %s24, %s27
      %p36 = scmp.eq.s32.totalorder %s19, 1
      %p37 = por %p35, %p36
      %p38 = scmp.ne.s32.totalorder %s27, %s28
      %p39 = scmp.eq.s32.totalorder %s19, 0
      %p40 = por %p38, %p39
      %p41 = scmp.ne.s32.totalorder %s27, %s28
      %p42 = scmp.eq.s32.totalorder %s20, 1
      %p43 = por %p41, %p42
      %p45 = scmp.ne.s32.totalorder %s28, %s44
      %p46 = scmp.eq.s32.totalorder %s20, 0
      %p47 = por %p45, %p46
      %s48 = ssub.s32 %s14, %s21
      %p49 = scmp.eq.s32.totalorder %s48, 0
      %s51 = sadd.s32 %s50, 1
      %s52 = scalar_select %p49, %s50, %s51
      %p55 = pneg %p49
      %p56 = scmp.eq.s32.totalorder %s14, 1
      %p57 = por %p55, %p56
      %p58 = scmp.ne.s32.totalorder %s50, %s53
      %p59 = scmp.eq.s32.totalorder %s14, 0
      %p60 = por %p58, %p59
      %p61 = scmp.ne.s32.totalorder %s50, %s53
      %p62 = scmp.eq.s32.totalorder %s19, 1
      %p63 = por %p61, %p62
      %p64 = scmp.ne.s32.totalorder %s53, %s54
      %p65 = scmp.eq.s32.totalorder %s19, 0
      %p66 = por %p64, %p65
      %p67 = scmp.ne.s32.totalorder %s53, %s54
      %p68 = scmp.eq.s32.totalorder %s20, 1
      %p69 = por %p67, %p68
      %p71 = scmp.ne.s32.totalorder %s54, %s70
      %p72 = scmp.eq.s32.totalorder %s20, 0
      %p73 = por %p71, %p72
      %s74 = ssub.s32 %s14, %s21
      %p75 = scmp.eq.s32.totalorder %s74, 0
      %s77 = sadd.s32 %s76, 1
      %s78 = scalar_select %p75, %s76, %s77
      %p81 = pneg %p75
      %p82 = scmp.eq.s32.totalorder %s14, 1
      %p83 = por %p81, %p82
      %p84 = scmp.ne.s32.totalorder %s76, %s79
      %p85 = scmp.eq.s32.totalorder %s14, 0
      %p86 = por %p84, %p85
      %p87 = scmp.ne.s32.totalorder %s76, %s79
      %p88 = scmp.eq.s32.totalorder %s19, 1
      %p89 = por %p87, %p88
      %p90 = scmp.ne.s32.totalorder %s79, %s80
      %p91 = scmp.eq.s32.totalorder %s19, 0
      %p92 = por %p90, %p91
      %p93 = scmp.ne.s32.totalorder %s79, %s80
      %p94 = scmp.eq.s32.totalorder %s20, 1
      %p95 = por %p93, %p94
      %p97 = scmp.ne.s32.totalorder %s80, %s96
      %p98 = scmp.eq.s32.totalorder %s20, 0
      %p99 = por %p97, %p98
      %s101 = sadd.s32 %s100, 1
      %p104 = scmp.eq.s32.totalorder %s14, 1
      %p105 = scmp.ne.s32.totalorder %s100, %s102
      %p106 = scmp.eq.s32.totalorder %s14, 0
      %p107 = por %p105, %p106
      %p108 = scmp.ne.s32.totalorder %s100, %s102
      %p109 = scmp.eq.s32.totalorder %s19, 1
      %p110 = por %p108, %p109
      %p111 = scmp.ne.s32.totalorder %s102, %s103
      %p112 = scmp.eq.s32.totalorder %s19, 0
      %p113 = por %p111, %p112
      %p114 = scmp.ne.s32.totalorder %s102, %s103
      %p115 = scmp.eq.s32.totalorder %s20, 1
      %p116 = por %p114, %p115
      %p118 = scmp.ne.s32.totalorder %s103, %s117
      %p119 = scmp.eq.s32.totalorder %s20, 0
      %p120 = por %p118, %p119
      %s122 = sadd.s32 %s121, 1
      %p125 = scmp.eq.s32.totalorder %s14, 1
      %p126 = scmp.ne.s32.totalorder %s121, %s123
      %p127 = scmp.eq.s32.totalorder %s14, 0
      %p128 = por %p126, %p127
      %p129 = scmp.ne.s32.totalorder %s121, %s123
      %p130 = scmp.eq.s32.totalorder %s19, 1
      %p131 = por %p129, %p130
      %p132 = scmp.ne.s32.totalorder %s123, %s124
      %p133 = scmp.eq.s32.totalorder %s19, 0
      %p134 = por %p132, %p133
      %p135 = scmp.ne.s32.totalorder %s123, %s124
      %p136 = scmp.eq.s32.totalorder %s20, 1
      %p137 = por %p135, %p136
      %p139 = scmp.ne.s32.totalorder %s124, %s138
      %p140 = scmp.eq.s32.totalorder %s20, 0
      %p141 = por %p139, %p140
      %s142 = ssub.s32 %s14, %s21
      %p143 = scmp.eq.s32.totalorder %s142, 0
      %s145 = sadd.s32 %s144, 1
      %s146 = scalar_select %p143, %s144, %s145
      %p149 = pneg %p143
      %p150 = scmp.eq.s32.totalorder %s14, 1
      %p151 = por %p149, %p150
      %p152 = scmp.ne.s32.totalorder %s144, %s147
      %p153 = scmp.eq.s32.totalorder %s14, 0
      %p154 = por %p152, %p153
      %p155 = scmp.ne.s32.totalorder %s144, %s147
      %p156 = scmp.eq.s32.totalorder %s19, 1
      %p157 = por %p155, %p156
      %p158 = scmp.ne.s32.totalorder %s147, %s148
      %p159 = scmp.eq.s32.totalorder %s19, 0
      %p160 = por %p158, %p159
      %p161 = scmp.ne.s32.totalorder %s147, %s148
      %p162 = scmp.eq.s32.totalorder %s20, 1
      %p163 = por %p161, %p162
      %p165 = scmp.ne.s32.totalorder %s148, %s164
      %p166 = scmp.eq.s32.totalorder %s20, 0
      %p167 = por %p165, %p166
      %p168 = scmp.le.s32.totalorder 1, %s14
      %p169 = scmp.lt.s32.totalorder %s14, 3
      %p170 = pnand %p168, %p169
      %p171 = pneg %p170
      // Predicated region
      $region9: #{tpu_custom_call.1} parent=5 // pred_check
        _
      $region10: #{tpu_custom_call.1} parent=5 // pred_check_branch
        %173 = sbr.rel (%p170) target = $region12
      $region11: #{tpu_custom_call.1} parent=5 // pred_region
        %s174 = ssub.s32 %s14, 1
        // Predicated region
        $region13: #{tpu_custom_call.1} parent=11 // pred_check
          %p175 = pneg %p113
        $region14: #{tpu_custom_call.1} parent=11 // pred_check_branch
          %177 = sbr.rel (%p175) target = $region16
        $region15: #{tpu_custom_call.1} parent=11 // pred_region
          _
        $region16: #{tpu_custom_call.1} parent=11 // pred_fallthru
          _
        // Predicated region
        $region17: #{tpu_custom_call.1} parent=11 // pred_check
          %p178 = pneg %p134
        $region18: #{tpu_custom_call.1} parent=11 // pred_check_branch
          %180 = sbr.rel (%p178) target = $region20
        $region19: #{tpu_custom_call.1} parent=11 // pred_region
          _
        $region20: #{tpu_custom_call.1} parent=11 // pred_fallthru
          _
      $region12: #{tpu_custom_call.1} parent=5 // pred_fallthru
        _
      %p181 = scmp.lt.s32.totalorder %s14, 2
      // Predicated region
      $region21: #{tpu_custom_call.1} parent=5 // pred_check
        %p182 = pneg %p181
      $region22: #{tpu_custom_call.1} parent=5 // pred_check_branch
        %184 = sbr.rel (%p182) target = $region24
      $region23: #{tpu_custom_call.1} parent=5 // pred_region
        // Predicated region
        $region25: #{tpu_custom_call.1} parent=23 // pred_check
          %p185 = pneg %p34
        $region26: #{tpu_custom_call.1} parent=23 // pred_check_branch
          %187 = sbr.rel (%p185) target = $region28
        $region27: #{tpu_custom_call.1} parent=23 // pred_region
          %s188 = sand.u32 %s24, 1
          %s189 = sand.u32 %s24, 1
          %s190 = smul.addr %s189, 256
          %s191 = scalar_lea.vmem [#allocation2], %s190
          %s192 = smul.u32 8, %s14
          %s193 = smul.addr %s192, 2
          %s194 = smul.addr %s193, 8
          %s195 = scalar_lea.vmem %s0, %s194
          // Predicated region
          $region29: #{tpu_custom_call.1} parent=27 // pred_check
            _
          $region30: #{tpu_custom_call.1} parent=27 // pred_check_branch
            %197 = sbr.rel (0) target = $region32
          $region31: #{tpu_custom_call.1} parent=27 // pred_region
            // Predicated region
            $region33: #{tpu_custom_call.1} parent=31 // pred_check
              _
            $region34: #{tpu_custom_call.1} parent=31 // pred_check_branch
              %199 = sbr.rel (0) target = $region36
            $region35: #{tpu_custom_call.1} parent=31 // pred_region
              // Predicated region
              $region48: #{tpu_custom_call.1} parent=35 // pred_check
                _
              $region49: #{tpu_custom_call.1} parent=35 // pred_check_branch
                %277 = sbr.rel (0) target = $region51
              $region50: #{tpu_custom_call.1} parent=35 // pred_region
                loop: start=0, step=1, limit=1
                $region52: #{tpu_custom_call.1} parent=50 // loop_pre_header
                  _
                $region53: #{tpu_custom_call.1} parent=50 // loop_header
                  %s279 = sphi 0, %s283
                  %p280 = scmp.ge.s32.totalorder %s279, 1
                  %s284 = sphi %s195, %s195
                  %s285 = sphi %s191, %s191
                $region54: #{tpu_custom_call.1} parent=50 // loop_header_branch
                  %282 = sbr.rel (%p280) target = $region58
                $region55: #{tpu_custom_call.1} parent=50 // loop_body
                  %v286 = vld [vmem:[%s284] sm:$0xff]
                  %287 = vst [vmem:[%s285] sm:$0xff] %v286
                  %v288 = vld [vmem:[%s284 + $0x8] sm:$0xff]
                  %289 = vst [vmem:[%s285 + $0x8] sm:$0xff] %v288
                  %v290 = vld [vmem:[%s284 + $0x10] sm:$0xff]
                  %291 = vst [vmem:[%s285 + $0x10] sm:$0xff] %v290
                  %v292 = vld [vmem:[%s284 + $0x18] sm:$0xff]
                  %293 = vst [vmem:[%s285 + $0x18] sm:$0xff] %v292
                  %v294 = vld [vmem:[%s284 + $0x20] sm:$0xff]
                  %295 = vst [vmem:[%s285 + $0x20] sm:$0xff] %v294
                  %v296 = vld [vmem:[%s284 + $0x28] sm:$0xff]
                  %297 = vst [vmem:[%s285 + $0x28] sm:$0xff] %v296
                  %v298 = vld [vmem:[%s284 + $0x30] sm:$0xff]
                  %299 = vst [vmem:[%s285 + $0x30] sm:$0xff] %v298
                  %v300 = vld [vmem:[%s284 + $0x38] sm:$0xff]
                  %301 = vst [vmem:[%s285 + $0x38] sm:$0xff] %v300
                  %v302 = vld [vmem:[%s284 + $0x40] sm:$0xff]
                  %303 = vst [vmem:[%s285 + $0x40] sm:$0xff] %v302
                  %v304 = vld [vmem:[%s284 + $0x48] sm:$0xff]
                  %305 = vst [vmem:[%s285 + $0x48] sm:$0xff] %v304
                  %v306 = vld [vmem:[%s284 + $0x50] sm:$0xff]
                  %307 = vst [vmem:[%s285 + $0x50] sm:$0xff] %v306
                  %v308 = vld [vmem:[%s284 + $0x58] sm:$0xff]
                  %309 = vst [vmem:[%s285 + $0x58] sm:$0xff] %v308
                  %v310 = vld [vmem:[%s284 + $0x60] sm:$0xff]
                  %311 = vst [vmem:[%s285 + $0x60] sm:$0xff] %v310
                  %v312 = vld [vmem:[%s284 + $0x68] sm:$0xff]
                  %313 = vst [vmem:[%s285 + $0x68] sm:$0xff] %v312
                  %v314 = vld [vmem:[%s284 + $0x70] sm:$0xff]
                  %315 = vst [vmem:[%s285 + $0x70] sm:$0xff] %v314
                  %v316 = vld [vmem:[%s284 + $0x78] sm:$0xff]
                  %317 = vst [vmem:[%s285 + $0x78] sm:$0xff] %v316
                  %v318 = vld [vmem:[%s284 + $0x100] sm:$0xff]
                  %319 = vst [vmem:[%s285 + $0x80] sm:$0xff] %v318
                  %v320 = vld [vmem:[%s284 + $0x108] sm:$0xff]
                  %321 = vst [vmem:[%s285 + $0x88] sm:$0xff] %v320
                  %v322 = vld [vmem:[%s284 + $0x110] sm:$0xff]
                  %323 = vst [vmem:[%s285 + $0x90] sm:$0xff] %v322
                  %v324 = vld [vmem:[%s284 + $0x118] sm:$0xff]
                  %325 = vst [vmem:[%s285 + $0x98] sm:$0xff] %v324
                  %v326 = vld [vmem:[%s284 + $0x120] sm:$0xff]
                  %327 = vst [vmem:[%s285 + $0xa0] sm:$0xff] %v326
                  %v328 = vld [vmem:[%s284 + $0x128] sm:$0xff]
                  %329 = vst [vmem:[%s285 + $0xa8] sm:$0xff] %v328
                  %v330 = vld [vmem:[%s284 + $0x130] sm:$0xff]
                  %331 = vst [vmem:[%s285 + $0xb0] sm:$0xff] %v330
                  %v332 = vld [vmem:[%s284 + $0x138] sm:$0xff]
                  %333 = vst [vmem:[%s285 + $0xb8] sm:$0xff] %v332
                  %v334 = vld [vmem:[%s284 + $0x140] sm:$0xff]
                  %335 = vst [vmem:[%s285 + $0xc0] sm:$0xff] %v334
                  %v336 = vld [vmem:[%s284 + $0x148] sm:$0xff]
                  %337 = vst [vmem:[%s285 + $0xc8] sm:$0xff] %v336
                  %v338 = vld [vmem:[%s284 + $0x150] sm:$0xff]
                  %339 = vst [vmem:[%s285 + $0xd0] sm:$0xff] %v338
                  %v340 = vld [vmem:[%s284 + $0x158] sm:$0xff]
                  %341 = vst [vmem:[%s285 + $0xd8] sm:$0xff] %v340
                  %v342 = vld [vmem:[%s284 + $0x160] sm:$0xff]
                  %343 = vst [vmem:[%s285 + $0xe0] sm:$0xff] %v342
                  %v344 = vld [vmem:[%s284 + $0x168] sm:$0xff]
                  %345 = vst [vmem:[%s285 + $0xe8] sm:$0xff] %v344
                  %v346 = vld [vmem:[%s284 + $0x170] sm:$0xff]
                  %347 = vst [vmem:[%s285 + $0xf0] sm:$0xff] %v346
                  %v348 = vld [vmem:[%s284 + $0x178] sm:$0xff]
                  %349 = vst [vmem:[%s285 + $0xf8] sm:$0xff] %v348
                $region56: #{tpu_custom_call.1} parent=50 // loop_footer
                  %s283 = sadd.s32 1, %s279
                $region57: #{tpu_custom_call.1} parent=50 // loop_footer_branch
                  %278 = sbr.rel target = $region53
                $region58: #{tpu_custom_call.1} parent=50 // loop_exit
                  _
              $region51: #{tpu_custom_call.1} parent=35 // pred_fallthru
                _
              // Predicated region
              $region59: #{tpu_custom_call.1} parent=35 // pred_check
                _
              $region60: #{tpu_custom_call.1} parent=35 // pred_check_branch
                %351 = sbr.rel target = $region62
              $region61: #{tpu_custom_call.1} parent=35 // pred_region
                _
              $region62: #{tpu_custom_call.1} parent=35 // pred_fallthru
                _
            $region36: #{tpu_custom_call.1} parent=31 // pred_fallthru
              _
            // Predicated region
            $region37: #{tpu_custom_call.1} parent=31 // pred_check
              _
            $region38: #{tpu_custom_call.1} parent=31 // pred_check_branch
              %201 = sbr.rel target = $region40
            $region39: #{tpu_custom_call.1} parent=31 // pred_region
              %s203 = ssub.s32 256, 1
              loop: start=0, step=1, limit=1
              $region41: #{tpu_custom_call.1} parent=39 // loop_pre_header
                _
              $region42: #{tpu_custom_call.1} parent=39 // loop_header
                %s205 = sphi 0, %s209
                %p206 = scmp.ge.s32.totalorder %s205, 1
                %s210 = sphi %s195, %s195
                %s211 = sphi %s191, %s191
              $region43: #{tpu_custom_call.1} parent=39 // loop_header_branch
                %208 = sbr.rel (%p206) target = $region47
              $region44: #{tpu_custom_call.1} parent=39 // loop_body
                %v212 = vld [vmem:[%s210] sm:%s203]
                %213 = vst [vmem:[%s211] sm:%s203] %v212
                %v214 = vld [vmem:[%s210 + $0x8] sm:%s203]
                %215 = vst [vmem:[%s211 + $0x8] sm:%s203] %v214
                %v216 = vld [vmem:[%s210 + $0x10] sm:%s203]
                %217 = vst [vmem:[%s211 + $0x10] sm:%s203] %v216
                %v218 = vld [vmem:[%s210 + $0x18] sm:%s203]
                %219 = vst [vmem:[%s211 + $0x18] sm:%s203] %v218
                %v220 = vld [vmem:[%s210 + $0x20] sm:%s203]
                %221 = vst [vmem:[%s211 + $0x20] sm:%s203] %v220
                %v222 = vld [vmem:[%s210 + $0x28] sm:%s203]
                %223 = vst [vmem:[%s211 + $0x28] sm:%s203] %v222
                %v224 = vld [vmem:[%s210 + $0x30] sm:%s203]
                %225 = vst [vmem:[%s211 + $0x30] sm:%s203] %v224
                %v226 = vld [vmem:[%s210 + $0x38] sm:%s203]
                %227 = vst [vmem:[%s211 + $0x38] sm:%s203] %v226
                %v228 = vld [vmem:[%s210 + $0x40] sm:%s203]
                %229 = vst [vmem:[%s211 + $0x40] sm:%s203] %v228
                %v230 = vld [vmem:[%s210 + $0x48] sm:%s203]
                %231 = vst [vmem:[%s211 + $0x48] sm:%s203] %v230
                %v232 = vld [vmem:[%s210 + $0x50] sm:%s203]
                %233 = vst [vmem:[%s211 + $0x50] sm:%s203] %v232
                %v234 = vld [vmem:[%s210 + $0x58] sm:%s203]
                %235 = vst [vmem:[%s211 + $0x58] sm:%s203] %v234
                %v236 = vld [vmem:[%s210 + $0x60] sm:%s203]
                %237 = vst [vmem:[%s211 + $0x60] sm:%s203] %v236
                %v238 = vld [vmem:[%s210 + $0x68] sm:%s203]
                %239 = vst [vmem:[%s211 + $0x68] sm:%s203] %v238
                %v240 = vld [vmem:[%s210 + $0x70] sm:%s203]
                %241 = vst [vmem:[%s211 + $0x70] sm:%s203] %v240
                %v242 = vld [vmem:[%s210 + $0x78] sm:%s203]
                %243 = vst [vmem:[%s211 + $0x78] sm:%s203] %v242
                %v244 = vld [vmem:[%s210 + $0x100] sm:%s203]
                %245 = vst [vmem:[%s211 + $0x80] sm:%s203] %v244
                %v246 = vld [vmem:[%s210 + $0x108] sm:%s203]
                %247 = vst [vmem:[%s211 + $0x88] sm:%s203] %v246
                %v248 = vld [vmem:[%s210 + $0x110] sm:%s203]
                %249 = vst [vmem:[%s211 + $0x90] sm:%s203] %v248
                %v250 = vld [vmem:[%s210 + $0x118] sm:%s203]
                %251 = vst [vmem:[%s211 + $0x98] sm:%s203] %v250
                %v252 = vld [vmem:[%s210 + $0x120] sm:%s203]
                %253 = vst [vmem:[%s211 + $0xa0] sm:%s203] %v252
                %v254 = vld [vmem:[%s210 + $0x128] sm:%s203]
                %255 = vst [vmem:[%s211 + $0xa8] sm:%s203] %v254
                %v256 = vld [vmem:[%s210 + $0x130] sm:%s203]
                %257 = vst [vmem:[%s211 + $0xb0] sm:%s203] %v256
                %v258 = vld [vmem:[%s210 + $0x138] sm:%s203]
                %259 = vst [vmem:[%s211 + $0xb8] sm:%s203] %v258
                %v260 = vld [vmem:[%s210 + $0x140] sm:%s203]
                %261 = vst [vmem:[%s211 + $0xc0] sm:%s203] %v260
                %v262 = vld [vmem:[%s210 + $0x148] sm:%s203]
                %263 = vst [vmem:[%s211 + $0xc8] sm:%s203] %v262
                %v264 = vld [vmem:[%s210 + $0x150] sm:%s203]
                %265 = vst [vmem:[%s211 + $0xd0] sm:%s203] %v264
                %v266 = vld [vmem:[%s210 + $0x158] sm:%s203]
                %267 = vst [vmem:[%s211 + $0xd8] sm:%s203] %v266
                %v268 = vld [vmem:[%s210 + $0x160] sm:%s203]
                %269 = vst [vmem:[%s211 + $0xe0] sm:%s203] %v268
                %v270 = vld [vmem:[%s210 + $0x168] sm:%s203]
                %271 = vst [vmem:[%s211 + $0xe8] sm:%s203] %v270
                %v272 = vld [vmem:[%s210 + $0x170] sm:%s203]
                %273 = vst [vmem:[%s211 + $0xf0] sm:%s203] %v272
                %v274 = vld [vmem:[%s210 + $0x178] sm:%s203]
                %275 = vst [vmem:[%s211 + $0xf8] sm:%s203] %v274
              $region45: #{tpu_custom_call.1} parent=39 // loop_footer
                %s209 = sadd.s32 1, %s205
              $region46: #{tpu_custom_call.1} parent=39 // loop_footer_branch
                %204 = sbr.rel target = $region42
              $region47: #{tpu_custom_call.1} parent=39 // loop_exit
                _
            $region40: #{tpu_custom_call.1} parent=31 // pred_fallthru
              _
          $region32: #{tpu_custom_call.1} parent=27 // pred_fallthru
            _
          %352 = vnop
        $region28: #{tpu_custom_call.1} parent=23 // pred_fallthru
          _
        // Predicated region
        $region63: #{tpu_custom_call.1} parent=23 // pred_check
          %p353 = pneg %p60
        $region64: #{tpu_custom_call.1} parent=23 // pred_check_branch
          %355 = sbr.rel (%p353) target = $region66
        $region65: #{tpu_custom_call.1} parent=23 // pred_region
          #allocation8 [shape = 'u32[6]{0}', space=smem, size = 0x18, scoped, tag = 'DMA stride descriptor']
          %s356 = sand.u32 %s50, 1
          %s357 = scalar_lea.sflag [#allocation4], %s356
          %s358 = sand.u32 %s50, 1
          %s359 = smul.addr %s358, 256
          %s360 = scalar_lea.vmem [#allocation3], %s359
          %s361 = smul.u32 8, %s14
          %s363 = ssub.s32 4096, 4096
          %364 = vsyncadd %s357, %s363
          %s365 = smul.addr %s361, 2
          %s366 = smul.addr %s365, 128
          %s367 = scalar_lea.hbm %s1, %s366
          %s369 = sshll.u32 1, 14
          %s370 = sxor.u32 4294967295, %s369
          %s372 = sld [smem:[#allocation0]]
          %s373 = sadd.s32 2, %s372
          %s375 = sshll.u32 7, 26
          %s376 = sxor.u32 4294967295, %s375
          %s377 = sand.u32 0, %s376
          %s378 = sshll.u32 %s373, 26
          %s379 = sor.u32 %s377, %s378
          %s380 = sshll.u32 %s360, 4
          %s381 = int_to_ptr.vmem [resolvable:$true] %s380
          %387 = sst [smem:[#allocation8]] 4096
          %s388 = scalar_lea.smem [#allocation8], 1
          %389 = sst [smem:[%s388]] 2048
          %s390 = scalar_lea.smem [#allocation8], 2
          %391 = sst [smem:[%s390]] 16
          %s392 = scalar_lea.smem [#allocation8], 3
          %393 = sst [smem:[%s392]] 128
          %s394 = scalar_lea.smem [#allocation8], 4
          %395 = sst [smem:[%s394]] 128
          %s396 = scalar_lea.smem [#allocation8], 5
          %397 = sst [smem:[%s396]] 8
          %399 = dma.general %s367, 4096, %s381, %s357, 131072, [#allocation8], %s379, 0
        $region66: #{tpu_custom_call.1} parent=23 // pred_fallthru
          _
        // Predicated region
        $region67: #{tpu_custom_call.1} parent=23 // pred_check
          %p400 = pneg %p86
        $region68: #{tpu_custom_call.1} parent=23 // pred_check_branch
          %402 = sbr.rel (%p400) target = $region70
        $region69: #{tpu_custom_call.1} parent=23 // pred_region
          %s403 = sand.u32 %s76, 1
          %s404 = sand.u32 %s76, 1
          %s405 = smul.addr %s404, 256
          %s406 = scalar_lea.vmem [#allocation5], %s405
          %s407 = smul.u32 8, %s14
          %s408 = smul.addr %s407, 2
          %s409 = smul.addr %s408, 8
          %s410 = scalar_lea.vmem %s2, %s409
          // Predicated region
          $region71: #{tpu_custom_call.1} parent=69 // pred_check
            _
          $region72: #{tpu_custom_call.1} parent=69 // pred_check_branch
            %412 = sbr.rel (0) target = $region74
          $region73: #{tpu_custom_call.1} parent=69 // pred_region
            // Predicated region
            $region75: #{tpu_custom_call.1} parent=73 // pred_check
              _
            $region76: #{tpu_custom_call.1} parent=73 // pred_check_branch
              %414 = sbr.rel (0) target = $region78
            $region77: #{tpu_custom_call.1} parent=73 // pred_region
              // Predicated region
              $region90: #{tpu_custom_call.1} parent=77 // pred_check
                _
              $region91: #{tpu_custom_call.1} parent=77 // pred_check_branch
                %492 = sbr.rel (0) target = $region93
              $region92: #{tpu_custom_call.1} parent=77 // pred_region
                loop: start=0, step=1, limit=1
                $region94: #{tpu_custom_call.1} parent=92 // loop_pre_header
                  _
                $region95: #{tpu_custom_call.1} parent=92 // loop_header
                  %s494 = sphi 0, %s498
                  %p495 = scmp.ge.s32.totalorder %s494, 1
                  %s499 = sphi %s410, %s410
                  %s500 = sphi %s406, %s406
                $region96: #{tpu_custom_call.1} parent=92 // loop_header_branch
                  %497 = sbr.rel (%p495) target = $region100
                $region97: #{tpu_custom_call.1} parent=92 // loop_body
                  %v501 = vld [vmem:[%s499] sm:$0xff]
                  %502 = vst [vmem:[%s500] sm:$0xff] %v501
                  %v503 = vld [vmem:[%s499 + $0x8] sm:$0xff]
                  %504 = vst [vmem:[%s500 + $0x8] sm:$0xff] %v503
                  %v505 = vld [vmem:[%s499 + $0x10] sm:$0xff]
                  %506 = vst [vmem:[%s500 + $0x10] sm:$0xff] %v505
                  %v507 = vld [vmem:[%s499 + $0x18] sm:$0xff]
                  %508 = vst [vmem:[%s500 + $0x18] sm:$0xff] %v507
                  %v509 = vld [vmem:[%s499 + $0x20] sm:$0xff]
                  %510 = vst [vmem:[%s500 + $0x20] sm:$0xff] %v509
                  %v511 = vld [vmem:[%s499 + $0x28] sm:$0xff]
                  %512 = vst [vmem:[%s500 + $0x28] sm:$0xff] %v511
                  %v513 = vld [vmem:[%s499 + $0x30] sm:$0xff]
                  %514 = vst [vmem:[%s500 + $0x30] sm:$0xff] %v513
                  %v515 = vld [vmem:[%s499 + $0x38] sm:$0xff]
                  %516 = vst [vmem:[%s500 + $0x38] sm:$0xff] %v515
                  %v517 = vld [vmem:[%s499 + $0x40] sm:$0xff]
                  %518 = vst [vmem:[%s500 + $0x40] sm:$0xff] %v517
                  %v519 = vld [vmem:[%s499 + $0x48] sm:$0xff]
                  %520 = vst [vmem:[%s500 + $0x48] sm:$0xff] %v519
                  %v521 = vld [vmem:[%s499 + $0x50] sm:$0xff]
                  %522 = vst [vmem:[%s500 + $0x50] sm:$0xff] %v521
                  %v523 = vld [vmem:[%s499 + $0x58] sm:$0xff]
                  %524 = vst [vmem:[%s500 + $0x58] sm:$0xff] %v523
                  %v525 = vld [vmem:[%s499 + $0x60] sm:$0xff]
                  %526 = vst [vmem:[%s500 + $0x60] sm:$0xff] %v525
                  %v527 = vld [vmem:[%s499 + $0x68] sm:$0xff]
                  %528 = vst [vmem:[%s500 + $0x68] sm:$0xff] %v527
                  %v529 = vld [vmem:[%s499 + $0x70] sm:$0xff]
                  %530 = vst [vmem:[%s500 + $0x70] sm:$0xff] %v529
                  %v531 = vld [vmem:[%s499 + $0x78] sm:$0xff]
                  %532 = vst [vmem:[%s500 + $0x78] sm:$0xff] %v531
                  %v533 = vld [vmem:[%s499 + $0x100] sm:$0xff]
                  %534 = vst [vmem:[%s500 + $0x80] sm:$0xff] %v533
                  %v535 = vld [vmem:[%s499 + $0x108] sm:$0xff]
                  %536 = vst [vmem:[%s500 + $0x88] sm:$0xff] %v535
                  %v537 = vld [vmem:[%s499 + $0x110] sm:$0xff]
                  %538 = vst [vmem:[%s500 + $0x90] sm:$0xff] %v537
                  %v539 = vld [vmem:[%s499 + $0x118] sm:$0xff]
                  %540 = vst [vmem:[%s500 + $0x98] sm:$0xff] %v539
                  %v541 = vld [vmem:[%s499 + $0x120] sm:$0xff]
                  %542 = vst [vmem:[%s500 + $0xa0] sm:$0xff] %v541
                  %v543 = vld [vmem:[%s499 + $0x128] sm:$0xff]
                  %544 = vst [vmem:[%s500 + $0xa8] sm:$0xff] %v543
                  %v545 = vld [vmem:[%s499 + $0x130] sm:$0xff]
                  %546 = vst [vmem:[%s500 + $0xb0] sm:$0xff] %v545
                  %v547 = vld [vmem:[%s499 + $0x138] sm:$0xff]
                  %548 = vst [vmem:[%s500 + $0xb8] sm:$0xff] %v547
                  %v549 = vld [vmem:[%s499 + $0x140] sm:$0xff]
                  %550 = vst [vmem:[%s500 + $0xc0] sm:$0xff] %v549
                  %v551 = vld [vmem:[%s499 + $0x148] sm:$0xff]
                  %552 = vst [vmem:[%s500 + $0xc8] sm:$0xff] %v551
                  %v553 = vld [vmem:[%s499 + $0x150] sm:$0xff]
                  %554 = vst [vmem:[%s500 + $0xd0] sm:$0xff] %v553
                  %v555 = vld [vmem:[%s499 + $0x158] sm:$0xff]
                  %556 = vst [vmem:[%s500 + $0xd8] sm:$0xff] %v555
                  %v557 = vld [vmem:[%s499 + $0x160] sm:$0xff]
                  %558 = vst [vmem:[%s500 + $0xe0] sm:$0xff] %v557
                  %v559 = vld [vmem:[%s499 + $0x168] sm:$0xff]
                  %560 = vst [vmem:[%s500 + $0xe8] sm:$0xff] %v559
                  %v561 = vld [vmem:[%s499 + $0x170] sm:$0xff]
                  %562 = vst [vmem:[%s500 + $0xf0] sm:$0xff] %v561
                  %v563 = vld [vmem:[%s499 + $0x178] sm:$0xff]
                  %564 = vst [vmem:[%s500 + $0xf8] sm:$0xff] %v563
                $region98: #{tpu_custom_call.1} parent=92 // loop_footer
                  %s498 = sadd.s32 1, %s494
                $region99: #{tpu_custom_call.1} parent=92 // loop_footer_branch
                  %493 = sbr.rel target = $region95
                $region100: #{tpu_custom_call.1} parent=92 // loop_exit
                  _
              $region93: #{tpu_custom_call.1} parent=77 // pred_fallthru
                _
              // Predicated region
              $region101: #{tpu_custom_call.1} parent=77 // pred_check
                _
              $region102: #{tpu_custom_call.1} parent=77 // pred_check_branch
                %566 = sbr.rel target = $region104
              $region103: #{tpu_custom_call.1} parent=77 // pred_region
                _
              $region104: #{tpu_custom_call.1} parent=77 // pred_fallthru
                _
            $region78: #{tpu_custom_call.1} parent=73 // pred_fallthru
              _
            // Predicated region
            $region79: #{tpu_custom_call.1} parent=73 // pred_check
              _
            $region80: #{tpu_custom_call.1} parent=73 // pred_check_branch
              %416 = sbr.rel target = $region82
            $region81: #{tpu_custom_call.1} parent=73 // pred_region
              %s418 = ssub.s32 256, 1
              loop: start=0, step=1, limit=1
              $region83: #{tpu_custom_call.1} parent=81 // loop_pre_header
                _
              $region84: #{tpu_custom_call.1} parent=81 // loop_header
                %s420 = sphi 0, %s424
                %p421 = scmp.ge.s32.totalorder %s420, 1
                %s425 = sphi %s410, %s410
                %s426 = sphi %s406, %s406
              $region85: #{tpu_custom_call.1} parent=81 // loop_header_branch
                %423 = sbr.rel (%p421) target = $region89
              $region86: #{tpu_custom_call.1} parent=81 // loop_body
                %v427 = vld [vmem:[%s425] sm:%s418]
                %428 = vst [vmem:[%s426] sm:%s418] %v427
                %v429 = vld [vmem:[%s425 + $0x8] sm:%s418]
                %430 = vst [vmem:[%s426 + $0x8] sm:%s418] %v429
                %v431 = vld [vmem:[%s425 + $0x10] sm:%s418]
                %432 = vst [vmem:[%s426 + $0x10] sm:%s418] %v431
                %v433 = vld [vmem:[%s425 + $0x18] sm:%s418]
                %434 = vst [vmem:[%s426 + $0x18] sm:%s418] %v433
                %v435 = vld [vmem:[%s425 + $0x20] sm:%s418]
                %436 = vst [vmem:[%s426 + $0x20] sm:%s418] %v435
                %v437 = vld [vmem:[%s425 + $0x28] sm:%s418]
                %438 = vst [vmem:[%s426 + $0x28] sm:%s418] %v437
                %v439 = vld [vmem:[%s425 + $0x30] sm:%s418]
                %440 = vst [vmem:[%s426 + $0x30] sm:%s418] %v439
                %v441 = vld [vmem:[%s425 + $0x38] sm:%s418]
                %442 = vst [vmem:[%s426 + $0x38] sm:%s418] %v441
                %v443 = vld [vmem:[%s425 + $0x40] sm:%s418]
                %444 = vst [vmem:[%s426 + $0x40] sm:%s418] %v443
                %v445 = vld [vmem:[%s425 + $0x48] sm:%s418]
                %446 = vst [vmem:[%s426 + $0x48] sm:%s418] %v445
                %v447 = vld [vmem:[%s425 + $0x50] sm:%s418]
                %448 = vst [vmem:[%s426 + $0x50] sm:%s418] %v447
                %v449 = vld [vmem:[%s425 + $0x58] sm:%s418]
                %450 = vst [vmem:[%s426 + $0x58] sm:%s418] %v449
                %v451 = vld [vmem:[%s425 + $0x60] sm:%s418]
                %452 = vst [vmem:[%s426 + $0x60] sm:%s418] %v451
                %v453 = vld [vmem:[%s425 + $0x68] sm:%s418]
                %454 = vst [vmem:[%s426 + $0x68] sm:%s418] %v453
                %v455 = vld [vmem:[%s425 + $0x70] sm:%s418]
                %456 = vst [vmem:[%s426 + $0x70] sm:%s418] %v455
                %v457 = vld [vmem:[%s425 + $0x78] sm:%s418]
                %458 = vst [vmem:[%s426 + $0x78] sm:%s418] %v457
                %v459 = vld [vmem:[%s425 + $0x100] sm:%s418]
                %460 = vst [vmem:[%s426 + $0x80] sm:%s418] %v459
                %v461 = vld [vmem:[%s425 + $0x108] sm:%s418]
                %462 = vst [vmem:[%s426 + $0x88] sm:%s418] %v461
                %v463 = vld [vmem:[%s425 + $0x110] sm:%s418]
                %464 = vst [vmem:[%s426 + $0x90] sm:%s418] %v463
                %v465 = vld [vmem:[%s425 + $0x118] sm:%s418]
                %466 = vst [vmem:[%s426 + $0x98] sm:%s418] %v465
                %v467 = vld [vmem:[%s425 + $0x120] sm:%s418]
                %468 = vst [vmem:[%s426 + $0xa0] sm:%s418] %v467
                %v469 = vld [vmem:[%s425 + $0x128] sm:%s418]
                %470 = vst [vmem:[%s426 + $0xa8] sm:%s418] %v469
                %v471 = vld [vmem:[%s425 + $0x130] sm:%s418]
                %472 = vst [vmem:[%s426 + $0xb0] sm:%s418] %v471
                %v473 = vld [vmem:[%s425 + $0x138] sm:%s418]
                %474 = vst [vmem:[%s426 + $0xb8] sm:%s418] %v473
                %v475 = vld [vmem:[%s425 + $0x140] sm:%s418]
                %476 = vst [vmem:[%s426 + $0xc0] sm:%s418] %v475
                %v477 = vld [vmem:[%s425 + $0x148] sm:%s418]
                %478 = vst [vmem:[%s426 + $0xc8] sm:%s418] %v477
                %v479 = vld [vmem:[%s425 + $0x150] sm:%s418]
                %480 = vst [vmem:[%s426 + $0xd0] sm:%s418] %v479
                %v481 = vld [vmem:[%s425 + $0x158] sm:%s418]
                %482 = vst [vmem:[%s426 + $0xd8] sm:%s418] %v481
                %v483 = vld [vmem:[%s425 + $0x160] sm:%s418]
                %484 = vst [vmem:[%s426 + $0xe0] sm:%s418] %v483
                %v485 = vld [vmem:[%s425 + $0x168] sm:%s418]
                %486 = vst [vmem:[%s426 + $0xe8] sm:%s418] %v485
                %v487 = vld [vmem:[%s425 + $0x170] sm:%s418]
                %488 = vst [vmem:[%s426 + $0xf0] sm:%s418] %v487
                %v489 = vld [vmem:[%s425 + $0x178] sm:%s418]
                %490 = vst [vmem:[%s426 + $0xf8] sm:%s418] %v489
              $region87: #{tpu_custom_call.1} parent=81 // loop_footer
                %s424 = sadd.s32 1, %s420
              $region88: #{tpu_custom_call.1} parent=81 // loop_footer_branch
                %419 = sbr.rel target = $region84
              $region89: #{tpu_custom_call.1} parent=81 // loop_exit
                _
            $region82: #{tpu_custom_call.1} parent=73 // pred_fallthru
              _
          $region74: #{tpu_custom_call.1} parent=69 // pred_fallthru
            _
          %567 = vnop
        $region70: #{tpu_custom_call.1} parent=23 // pred_fallthru
          _
      $region24: #{tpu_custom_call.1} parent=5 // pred_fallthru
        _
      %p568 = scmp.le.s32.totalorder 1, %s14
      %p569 = scmp.lt.s32.totalorder %s14, 3
      %p570 = pnand %p568, %p569
      %p571 = pneg %p570
      // Predicated region
      $region105: #{tpu_custom_call.1} parent=5 // pred_check
        _
      $region106: #{tpu_custom_call.1} parent=5 // pred_check_branch
        %573 = sbr.rel (%p570) target = $region108
      $region107: #{tpu_custom_call.1} parent=5 // pred_region
        %s574 = ssub.s32 %s14, 1
        %s575 = sand.u32 %s27, 1
        %s576 = sand.u32 %s27, 1
        %s577 = smul.addr %s576, 256
        %s578 = scalar_lea.vmem [#allocation2], %s577
        // Predicated region
        $region109: #{tpu_custom_call.1} parent=107 // pred_check
          %p579 = pneg %p40
        $region110: #{tpu_custom_call.1} parent=107 // pred_check_branch
          %581 = sbr.rel (%p579) target = $region112
        $region111: #{tpu_custom_call.1} parent=107 // pred_region
          _
        $region112: #{tpu_custom_call.1} parent=107 // pred_fallthru
          _
        %s582 = sand.u32 %s53, 1
        %s583 = scalar_lea.sflag [#allocation4], %s582
        %s584 = sand.u32 %s53, 1
        %s585 = smul.addr %s584, 256
        %s586 = scalar_lea.vmem [#allocation3], %s585
        // Predicated region
        $region113: #{tpu_custom_call.1} parent=107 // pred_check
          %p587 = pneg %p66
        $region114: #{tpu_custom_call.1} parent=107 // pred_check_branch
          %589 = sbr.rel (%p587) target = $region116
        $region115: #{tpu_custom_call.1} parent=107 // pred_region
          %590 = dma.done %s583, 4096
        $region116: #{tpu_custom_call.1} parent=107 // pred_fallthru
          _
        %s591 = sand.u32 %s79, 1
        %s592 = sand.u32 %s79, 1
        %s593 = smul.addr %s592, 256
        %s594 = scalar_lea.vmem [#allocation5], %s593
        // Predicated region
        $region117: #{tpu_custom_call.1} parent=107 // pred_check
          %p595 = pneg %p92
        $region118: #{tpu_custom_call.1} parent=107 // pred_check_branch
          %597 = sbr.rel (%p595) target = $region120
        $region119: #{tpu_custom_call.1} parent=107 // pred_region
          _
        $region120: #{tpu_custom_call.1} parent=107 // pred_fallthru
          _
        %s598 = sand.u32 %s27, 1
        %s599 = sand.u32 %s27, 1
        %s600 = smul.addr %s599, 256
        %s601 = scalar_lea.vmem [#allocation2], %s600
        %p602 = pneg %p40
        %p603 = pneg %p37
        %s604 = sand.u32 %s53, 1
        %s605 = scalar_lea.sflag [#allocation4], %s604
        %s606 = sand.u32 %s53, 1
        %s607 = smul.addr %s606, 256
        %s608 = scalar_lea.vmem [#allocation3], %s607
        %p609 = pneg %p66
        %p610 = pneg %p63
        %s611 = sand.u32 %s79, 1
        %s612 = sand.u32 %s79, 1
        %s613 = smul.addr %s612, 256
        %s614 = scalar_lea.vmem [#allocation5], %s613
        %p615 = pneg %p92
        %p616 = pneg %p89
        %p617 = pneg %p113
        %p618 = pneg %p110
        %p619 = pneg %p134
        %p620 = pneg %p131
        %p621 = pneg %p160
        %p622 = pneg %p157
        %s623 = sand.u32 %s147, 1
        %s624 = sand.u32 %s147, 1
        %s625 = smul.addr %s624, 256
        %s626 = scalar_lea.vmem [#allocation6], %s625
        %s627 = smul.u32 8, %s19
        %s628 = smul.u32 8, %s19
        %s629 = smul.u32 8, %s19
        %s630 = smul.u32 8, %s19
        %v631 = vld [vmem:[%s578] sm:$0xff]
        %v632 = vld [vmem:[%s578 + $0x8] sm:$0xff]
        %v633 = vld [vmem:[%s578 + $0x10] sm:$0xff]
        %v634 = vld [vmem:[%s578 + $0x18] sm:$0xff]
        %v635 = vld [vmem:[%s578 + $0x20] sm:$0xff]
        %v636 = vld [vmem:[%s578 + $0x28] sm:$0xff]
        %v637 = vld [vmem:[%s578 + $0x30] sm:$0xff]
        %v638 = vld [vmem:[%s578 + $0x38] sm:$0xff]
        %v639 = vld [vmem:[%s578 + $0x40] sm:$0xff]
        %v640 = vld [vmem:[%s578 + $0x48] sm:$0xff]
        %v641 = vld [vmem:[%s578 + $0x50] sm:$0xff]
        %v642 = vld [vmem:[%s578 + $0x58] sm:$0xff]
        %v643 = vld [vmem:[%s578 + $0x60] sm:$0xff]
        %v644 = vld [vmem:[%s578 + $0x68] sm:$0xff]
        %v645 = vld [vmem:[%s578 + $0x70] sm:$0xff]
        %v646 = vld [vmem:[%s578 + $0x78] sm:$0xff]
        %s647 = scalar_lea.vmem %s578, 128 [#allocation2]
        %v648 = vld [vmem:[%s647] sm:$0xff]
        %v649 = vld [vmem:[%s647 + $0x8] sm:$0xff]
        %v650 = vld [vmem:[%s647 + $0x10] sm:$0xff]
        %v651 = vld [vmem:[%s647 + $0x18] sm:$0xff]
        %v652 = vld [vmem:[%s647 + $0x20] sm:$0xff]
        %v653 = vld [vmem:[%s647 + $0x28] sm:$0xff]
        %v654 = vld [vmem:[%s647 + $0x30] sm:$0xff]
        %v655 = vld [vmem:[%s647 + $0x38] sm:$0xff]
        %v656 = vld [vmem:[%s647 + $0x40] sm:$0xff]
        %v657 = vld [vmem:[%s647 + $0x48] sm:$0xff]
        %v658 = vld [vmem:[%s647 + $0x50] sm:$0xff]
        %v659 = vld [vmem:[%s647 + $0x58] sm:$0xff]
        %v660 = vld [vmem:[%s647 + $0x60] sm:$0xff]
        %v661 = vld [vmem:[%s647 + $0x68] sm:$0xff]
        %v662 = vld [vmem:[%s647 + $0x70] sm:$0xff]
        %v663 = vld [vmem:[%s647 + $0x78] sm:$0xff]
        %v664 = vld [vmem:[%s3] sm:$0xff]
        %v665 = vld [vmem:[%s3 + $0x8] sm:$0xff]
        %v666 = vld [vmem:[%s3 + $0x10] sm:$0xff]
        %v667 = vld [vmem:[%s3 + $0x18] sm:$0xff]
        %s668 = scalar_lea.vmem %s3, 32
        %v669 = vld [vmem:[%s668] sm:$0xff]
        %v670 = vld [vmem:[%s668 + $0x8] sm:$0xff]
        %v671 = vld [vmem:[%s668 + $0x10] sm:$0xff]
        %v672 = vld [vmem:[%s668 + $0x18] sm:$0xff]
        %vm673 = vcmask 261120
        %v675 = vsel %vm673, %v631, 0
        %v678 = vsel %vm673, %v632, 0
        %v681 = vsel %vm673, %v633, 0
        %v684 = vsel %vm673, %v634, 0
        %v687 = vsel %vm673, %v635, 0
        %v690 = vsel %vm673, %v636, 0
        %v693 = vsel %vm673, %v637, 0
        %v696 = vsel %vm673, %v638, 0
        %v699 = vsel %vm673, %v639, 0
        %v702 = vsel %vm673, %v640, 0
        %v705 = vsel %vm673, %v641, 0
        %v708 = vsel %vm673, %v642, 0
        %v711 = vsel %vm673, %v643, 0
        %v714 = vsel %vm673, %v644, 0
        %v717 = vsel %vm673, %v645, 0
        %v720 = vsel %vm673, %v646, 0
        %722 = vmatprep.subr.mxu0 0.0
        %723 = vmatpush1.msra.mxu0 0.0
        %724 = vmatprep.subr.mxu0 0.0
        %725 = vmatpush1.msra.mxu0 0.0
        %726 = vmatprep.subr.mxu0 0.0
        %727 = vmatpush1.msra.mxu0 0.0
        %728 = vmatprep.subr.mxu0 0.0
        %729 = vmatpush1.msra.mxu0 0.0
        %730 = vmatprep.subr.mxu0 0.0
        %731 = vmatpush1.msra.mxu0 0.0
        %732 = vmatprep.subr.mxu0 0.0
        %733 = vmatpush1.msra.mxu0 0.0
        %734 = vmatprep.subr.mxu0 0.0
        %735 = vmatpush1.msra.mxu0 0.0
        %736 = vmatprep.subr.mxu0 0.0
        %737 = vmatpush1.msra.mxu0 0.0
        %738 = vmatprep.subr.mxu0 0.0
        %739 = vmatpush1.msra.mxu0 0.0
        %740 = vmatprep.subr.mxu0 0.0
        %741 = vmatpush1.msra.mxu0 0.0
        %742 = vmatprep.subr.mxu0 0.0
        %743 = vmatpush1.msra.mxu0 0.0
        %744 = vmatprep.subr.mxu0 0.0
        %745 = vmatpush1.msra.mxu0 0.0
        %746 = vmatprep.subr.mxu0 0.0
        %747 = vmatpush1.msra.mxu0 %v667
        %748 = vmatprep.subr.mxu0 0.0
        %749 = vmatpush1.msra.mxu0 %v666
        %750 = vmatprep.subr.mxu0 0.0
        %751 = vmatpush1.msra.mxu0 %v665
        %752 = vmatprep.subr.mxu0 0.0
        %753 = vmatpush1.msra.mxu0 %v664
        %754 = vmatprep.subr.mxu0 0.0
        %755 = vmatpush2.msra.mxu0 0.0
        %756 = vmatprep.subr.mxu0 0.0
        %757 = vmatpush2.msra.mxu0 0.0
        %758 = vmatprep.subr.mxu0 0.0
        %759 = vmatpush2.msra.mxu0 0.0
        %760 = vmatprep.subr.mxu0 0.0
        %761 = vmatpush2.msra.mxu0 0.0
        %762 = vmatprep.subr.mxu0 0.0
        %763 = vmatpush2.msra.mxu0 0.0
        %764 = vmatprep.subr.mxu0 0.0
        %765 = vmatpush2.msra.mxu0 0.0
        %766 = vmatprep.subr.mxu0 0.0
        %767 = vmatpush2.msra.mxu0 0.0
        %768 = vmatprep.subr.mxu0 0.0
        %769 = vmatpush2.msra.mxu0 0.0
        %770 = vmatprep.subr.mxu0 0.0
        %771 = vmatpush2.msra.mxu0 0.0
        %772 = vmatprep.subr.mxu0 0.0
        %773 = vmatpush2.msra.mxu0 0.0
        %774 = vmatprep.subr.mxu0 0.0
        %775 = vmatpush2.msra.mxu0 0.0
        %776 = vmatprep.subr.mxu0 0.0
        %777 = vmatpush2.msra.mxu0 0.0
        %778 = vmatprep.subr.mxu0 0.0
        %779 = vmatpush2.msra.mxu0 0.0
        %780 = vmatprep.subr.mxu0 0.0
        %781 = vmatpush2.msra.mxu0 0.0
        %782 = vmatprep.subr.mxu0 0.0
        %783 = vmatpush2.msra.mxu0 0.0
        %784 = vmatprep.subr.mxu0 0.0
        %785 = vmatpush2.msra.mxu0 0.0
        %786 = vmatprep.mubr.f32.mxu0 0.0
        %787 = vmatmul.mubr.f32.gmra.mxu0 %v675
        %v788 = vpop.f32.mrf.mxu0
        %v789 = vadd.f32 0.0, %v788
        %v790 = vpop.f32.mrf.mxu0
        %791 = vmatprep.mubr.f32.mxu0 0.0
        %792 = vmatmul.mubr.f32.gmra.mxu0 %v678
        %v793 = vpop.f32.mrf.mxu0
        %v794 = vadd.f32 0.0, %v793
        %v795 = vpop.f32.mrf.mxu0
        %796 = vmatprep.mubr.f32.mxu0 0.0
        %797 = vmatmul.mubr.f32.gmra.mxu0 %v681
        %v798 = vpop.f32.mrf.mxu0
        %v799 = vadd.f32 0.0, %v798
        %v800 = vpop.f32.mrf.mxu0
        %801 = vmatprep.mubr.f32.mxu0 0.0
        %802 = vmatmul.mubr.f32.gmra.mxu0 %v684
        %v803 = vpop.f32.mrf.mxu0
        %v804 = vadd.f32 0.0, %v803
        %v805 = vpop.f32.mrf.mxu0
        %806 = vmatprep.mubr.f32.mxu0 0.0
        %807 = vmatmul.mubr.f32.gmra.mxu0 %v687
        %v808 = vpop.f32.mrf.mxu0
        %v809 = vadd.f32 0.0, %v808
        %v810 = vpop.f32.mrf.mxu0
        %811 = vmatprep.mubr.f32.mxu0 0.0
        %812 = vmatmul.mubr.f32.gmra.mxu0 %v690
        %v813 = vpop.f32.mrf.mxu0
        %v814 = vadd.f32 0.0, %v813
        %v815 = vpop.f32.mrf.mxu0
        %816 = vmatprep.mubr.f32.mxu0 0.0
        %817 = vmatmul.mubr.f32.gmra.mxu0 %v693
        %v818 = vpop.f32.mrf.mxu0
        %v819 = vadd.f32 0.0, %v818
        %v820 = vpop.f32.mrf.mxu0
        %821 = vmatprep.mubr.f32.mxu0 0.0
        %822 = vmatmul.mubr.f32.gmra.mxu0 %v696
        %v823 = vpop.f32.mrf.mxu0
        %v824 = vadd.f32 0.0, %v823
        %v825 = vpop.f32.mrf.mxu0
        %826 = vmatprep.mubr.f32.mxu0 0.0
        %827 = vmatmul.mubr.f32.gmra.mxu0 %v699
        %v828 = vpop.f32.mrf.mxu0
        %v829 = vadd.f32 0.0, %v828
        %v830 = vpop.f32.mrf.mxu0
        %831 = vmatprep.mubr.f32.mxu0 0.0
        %832 = vmatmul.mubr.f32.gmra.mxu0 %v702
        %v833 = vpop.f32.mrf.mxu0
        %v834 = vadd.f32 0.0, %v833
        %v835 = vpop.f32.mrf.mxu0
        %836 = vmatprep.mubr.f32.mxu0 0.0
        %837 = vmatmul.mubr.f32.gmra.mxu0 %v705
        %v838 = vpop.f32.mrf.mxu0
        %v839 = vadd.f32 0.0, %v838
        %v840 = vpop.f32.mrf.mxu0
        %841 = vmatprep.mubr.f32.mxu0 0.0
        %842 = vmatmul.mubr.f32.gmra.mxu0 %v708
        %v843 = vpop.f32.mrf.mxu0
        %v844 = vadd.f32 0.0, %v843
        %v845 = vpop.f32.mrf.mxu0
        %846 = vmatprep.mubr.f32.mxu0 0.0
        %847 = vmatmul.mubr.f32.gmra.mxu0 %v711
        %v848 = vpop.f32.mrf.mxu0
        %v849 = vadd.f32 0.0, %v848
        %v850 = vpop.f32.mrf.mxu0
        %851 = vmatprep.mubr.f32.mxu0 0.0
        %852 = vmatmul.mubr.f32.gmra.mxu0 %v714
        %v853 = vpop.f32.mrf.mxu0
        %v854 = vadd.f32 0.0, %v853
        %v855 = vpop.f32.mrf.mxu0
        %856 = vmatprep.mubr.f32.mxu0 0.0
        %857 = vmatmul.mubr.f32.gmra.mxu0 %v717
        %v858 = vpop.f32.mrf.mxu0
        %v859 = vadd.f32 0.0, %v858
        %v860 = vpop.f32.mrf.mxu0
        %861 = vmatprep.mubr.f32.mxu0 0.0
        %862 = vmatmul.mubr.f32.gmra.mxu0 %v720
        %v863 = vpop.f32.mrf.mxu0
        %v864 = vadd.f32 0.0, %v863
        %v865 = vpop.f32.mrf.mxu0
        %866 = vdwg.mxu0
        %v868 = vsel %vm673, %v648, 0
        %v871 = vsel %vm673, %v649, 0
        %v874 = vsel %vm673, %v650, 0
        %v877 = vsel %vm673, %v651, 0
        %v880 = vsel %vm673, %v652, 0
        %v883 = vsel %vm673, %v653, 0
        %v886 = vsel %vm673, %v654, 0
        %v889 = vsel %vm673, %v655, 0
        %v892 = vsel %vm673, %v656, 0
        %v895 = vsel %vm673, %v657, 0
        %v898 = vsel %vm673, %v658, 0
        %v901 = vsel %vm673, %v659, 0
        %v904 = vsel %vm673, %v660, 0
        %v907 = vsel %vm673, %v661, 0
        %v910 = vsel %vm673, %v662, 0
        %v913 = vsel %vm673, %v663, 0
        %915 = vmatprep.subr.mxu0 0.0
        %916 = vmatpush1.msra.mxu0 0.0
        %917 = vmatprep.subr.mxu0 0.0
        %918 = vmatpush1.msra.mxu0 0.0
        %919 = vmatprep.subr.mxu0 0.0
        %920 = vmatpush1.msra.mxu0 0.0
        %921 = vmatprep.subr.mxu0 0.0
        %922 = vmatpush1.msra.mxu0 0.0
        %923 = vmatprep.subr.mxu0 0.0
        %924 = vmatpush1.msra.mxu0 0.0
        %925 = vmatprep.subr.mxu0 0.0
        %926 = vmatpush1.msra.mxu0 0.0
        %927 = vmatprep.subr.mxu0 0.0
        %928 = vmatpush1.msra.mxu0 0.0
        %929 = vmatprep.subr.mxu0 0.0
        %930 = vmatpush1.msra.mxu0 0.0
        %931 = vmatprep.subr.mxu0 0.0
        %932 = vmatpush1.msra.mxu0 0.0
        %933 = vmatprep.subr.mxu0 0.0
        %934 = vmatpush1.msra.mxu0 0.0
        %935 = vmatprep.subr.mxu0 0.0
        %936 = vmatpush1.msra.mxu0 0.0
        %937 = vmatprep.subr.mxu0 0.0
        %938 = vmatpush1.msra.mxu0 0.0
        %939 = vmatprep.subr.mxu0 0.0
        %940 = vmatpush1.msra.mxu0 %v672
        %941 = vmatprep.subr.mxu0 0.0
        %942 = vmatpush1.msra.mxu0 %v671
        %943 = vmatprep.subr.mxu0 0.0
        %944 = vmatpush1.msra.mxu0 %v670
        %945 = vmatprep.subr.mxu0 0.0
        %946 = vmatpush1.msra.mxu0 %v669
        %947 = vmatprep.subr.mxu0 0.0
        %948 = vmatpush2.msra.mxu0 0.0
        %949 = vmatprep.subr.mxu0 0.0
        %950 = vmatpush2.msra.mxu0 0.0
        %951 = vmatprep.subr.mxu0 0.0
        %952 = vmatpush2.msra.mxu0 0.0
        %953 = vmatprep.subr.mxu0 0.0
        %954 = vmatpush2.msra.mxu0 0.0
        %955 = vmatprep.subr.mxu0 0.0
        %956 = vmatpush2.msra.mxu0 0.0
        %957 = vmatprep.subr.mxu0 0.0
        %958 = vmatpush2.msra.mxu0 0.0
        %959 = vmatprep.subr.mxu0 0.0
        %960 = vmatpush2.msra.mxu0 0.0
        %961 = vmatprep.subr.mxu0 0.0
        %962 = vmatpush2.msra.mxu0 0.0
        %963 = vmatprep.subr.mxu0 0.0
        %964 = vmatpush2.msra.mxu0 0.0
        %965 = vmatprep.subr.mxu0 0.0
        %966 = vmatpush2.msra.mxu0 0.0
        %967 = vmatprep.subr.mxu0 0.0
        %968 = vmatpush2.msra.mxu0 0.0
        %969 = vmatprep.subr.mxu0 0.0
        %970 = vmatpush2.msra.mxu0 0.0
        %971 = vmatprep.subr.mxu0 0.0
        %972 = vmatpush2.msra.mxu0 0.0
        %973 = vmatprep.subr.mxu0 0.0
        %974 = vmatpush2.msra.mxu0 0.0
        %975 = vmatprep.subr.mxu0 0.0
        %976 = vmatpush2.msra.mxu0 0.0
        %977 = vmatprep.subr.mxu0 0.0
        %978 = vmatpush2.msra.mxu0 0.0
        %979 = vmatprep.mubr.f32.mxu0 0.0
        %980 = vmatmul.mubr.f32.gmra.mxu0 %v868
        %v981 = vpop.f32.mrf.mxu0
        %v982 = vadd.f32 0.0, %v981
        %v983 = vpop.f32.mrf.mxu0
        %984 = vmatprep.mubr.f32.mxu0 0.0
        %985 = vmatmul.mubr.f32.gmra.mxu0 %v871
        %v986 = vpop.f32.mrf.mxu0
        %v987 = vadd.f32 0.0, %v986
        %v988 = vpop.f32.mrf.mxu0
        %989 = vmatprep.mubr.f32.mxu0 0.0
        %990 = vmatmul.mubr.f32.gmra.mxu0 %v874
        %v991 = vpop.f32.mrf.mxu0
        %v992 = vadd.f32 0.0, %v991
        %v993 = vpop.f32.mrf.mxu0
        %994 = vmatprep.mubr.f32.mxu0 0.0
        %995 = vmatmul.mubr.f32.gmra.mxu0 %v877
        %v996 = vpop.f32.mrf.mxu0
        %v997 = vadd.f32 0.0, %v996
        %v998 = vpop.f32.mrf.mxu0
        %999 = vmatprep.mubr.f32.mxu0 0.0
        %1000 = vmatmul.mubr.f32.gmra.mxu0 %v880
        %v1001 = vpop.f32.mrf.mxu0
        %v1002 = vadd.f32 0.0, %v1001
        %v1003 = vpop.f32.mrf.mxu0
        %1004 = vmatprep.mubr.f32.mxu0 0.0
        %1005 = vmatmul.mubr.f32.gmra.mxu0 %v883
        %v1006 = vpop.f32.mrf.mxu0
        %v1007 = vadd.f32 0.0, %v1006
        %v1008 = vpop.f32.mrf.mxu0
        %1009 = vmatprep.mubr.f32.mxu0 0.0
        %1010 = vmatmul.mubr.f32.gmra.mxu0 %v886
        %v1011 = vpop.f32.mrf.mxu0
        %v1012 = vadd.f32 0.0, %v1011
        %v1013 = vpop.f32.mrf.mxu0
        %1014 = vmatprep.mubr.f32.mxu0 0.0
        %1015 = vmatmul.mubr.f32.gmra.mxu0 %v889
        %v1016 = vpop.f32.mrf.mxu0
        %v1017 = vadd.f32 0.0, %v1016
        %v1018 = vpop.f32.mrf.mxu0
        %1019 = vmatprep.mubr.f32.mxu0 0.0
        %1020 = vmatmul.mubr.f32.gmra.mxu0 %v892
        %v1021 = vpop.f32.mrf.mxu0
        %v1022 = vadd.f32 0.0, %v1021
        %v1023 = vpop.f32.mrf.mxu0
        %1024 = vmatprep.mubr.f32.mxu0 0.0
        %1025 = vmatmul.mubr.f32.gmra.mxu0 %v895
        %v1026 = vpop.f32.mrf.mxu0
        %v1027 = vadd.f32 0.0, %v1026
        %v1028 = vpop.f32.mrf.mxu0
        %1029 = vmatprep.mubr.f32.mxu0 0.0
        %1030 = vmatmul.mubr.f32.gmra.mxu0 %v898
        %v1031 = vpop.f32.mrf.mxu0
        %v1032 = vadd.f32 0.0, %v1031
        %v1033 = vpop.f32.mrf.mxu0
        %1034 = vmatprep.mubr.f32.mxu0 0.0
        %1035 = vmatmul.mubr.f32.gmra.mxu0 %v901
        %v1036 = vpop.f32.mrf.mxu0
        %v1037 = vadd.f32 0.0, %v1036
        %v1038 = vpop.f32.mrf.mxu0
        %1039 = vmatprep.mubr.f32.mxu0 0.0
        %1040 = vmatmul.mubr.f32.gmra.mxu0 %v904
        %v1041 = vpop.f32.mrf.mxu0
        %v1042 = vadd.f32 0.0, %v1041
        %v1043 = vpop.f32.mrf.mxu0
        %1044 = vmatprep.mubr.f32.mxu0 0.0
        %1045 = vmatmul.mubr.f32.gmra.mxu0 %v907
        %v1046 = vpop.f32.mrf.mxu0
        %v1047 = vadd.f32 0.0, %v1046
        %v1048 = vpop.f32.mrf.mxu0
        %1049 = vmatprep.mubr.f32.mxu0 0.0
        %1050 = vmatmul.mubr.f32.gmra.mxu0 %v910
        %v1051 = vpop.f32.mrf.mxu0
        %v1052 = vadd.f32 0.0, %v1051
        %v1053 = vpop.f32.mrf.mxu0
        %1054 = vmatprep.mubr.f32.mxu0 0.0
        %1055 = vmatmul.mubr.f32.gmra.mxu0 %v913
        %v1056 = vpop.f32.mrf.mxu0
        %v1057 = vadd.f32 0.0, %v1056
        %v1058 = vpop.f32.mrf.mxu0
        %1059 = vdwg.mxu0
        %v1060 = vadd.f32 %v631, %v648
        %v1061 = vadd.f32 %v632, %v649
        %v1062 = vadd.f32 %v633, %v650
        %v1063 = vadd.f32 %v634, %v651
        %v1064 = vadd.f32 %v635, %v652
        %v1065 = vadd.f32 %v636, %v653
        %v1066 = vadd.f32 %v637, %v654
        %v1067 = vadd.f32 %v638, %v655
        %v1068 = vadd.f32 %v639, %v656
        %v1069 = vadd.f32 %v640, %v657
        %v1070 = vadd.f32 %v641, %v658
        %v1071 = vadd.f32 %v642, %v659
        %v1072 = vadd.f32 %v643, %v660
        %v1073 = vadd.f32 %v644, %v661
        %v1074 = vadd.f32 %v645, %v662
        %v1075 = vadd.f32 %v646, %v663
        %v1076 = vadd.f32 %v664, %v669
        %v1077 = vadd.f32 %v665, %v670
        %v1078 = vadd.f32 %v666, %v671
        %v1079 = vadd.f32 %v667, %v672
        %v1081 = vsel %vm673, %v1060, 0
        %v1084 = vsel %vm673, %v1061, 0
        %v1087 = vsel %vm673, %v1062, 0
        %v1090 = vsel %vm673, %v1063, 0
        %v1093 = vsel %vm673, %v1064, 0
        %v1096 = vsel %vm673, %v1065, 0
        %v1099 = vsel %vm673, %v1066, 0
        %v1102 = vsel %vm673, %v1067, 0
        %v1105 = vsel %vm673, %v1068, 0
        %v1108 = vsel %vm673, %v1069, 0
        %v1111 = vsel %vm673, %v1070, 0
        %v1114 = vsel %vm673, %v1071, 0
        %v1117 = vsel %vm673, %v1072, 0
        %v1120 = vsel %vm673, %v1073, 0
        %v1123 = vsel %vm673, %v1074, 0
        %v1126 = vsel %vm673, %v1075, 0
        %1128 = vmatprep.subr.mxu0 0.0
        %1129 = vmatpush1.msra.mxu0 0.0
        %1130 = vmatprep.subr.mxu0 0.0
        %1131 = vmatpush1.msra.mxu0 0.0
        %1132 = vmatprep.subr.mxu0 0.0
        %1133 = vmatpush1.msra.mxu0 0.0
        %1134 = vmatprep.subr.mxu0 0.0
        %1135 = vmatpush1.msra.mxu0 0.0
        %1136 = vmatprep.subr.mxu0 0.0
        %1137 = vmatpush1.msra.mxu0 0.0
        %1138 = vmatprep.subr.mxu0 0.0
        %1139 = vmatpush1.msra.mxu0 0.0
        %1140 = vmatprep.subr.mxu0 0.0
        %1141 = vmatpush1.msra.mxu0 0.0
        %1142 = vmatprep.subr.mxu0 0.0
        %1143 = vmatpush1.msra.mxu0 0.0
        %1144 = vmatprep.subr.mxu0 0.0
        %1145 = vmatpush1.msra.mxu0 0.0
        %1146 = vmatprep.subr.mxu0 0.0
        %1147 = vmatpush1.msra.mxu0 0.0
        %1148 = vmatprep.subr.mxu0 0.0
        %1149 = vmatpush1.msra.mxu0 0.0
        %1150 = vmatprep.subr.mxu0 0.0
        %1151 = vmatpush1.msra.mxu0 0.0
        %1152 = vmatprep.subr.mxu0 0.0
        %1153 = vmatpush1.msra.mxu0 %v1079
        %1154 = vmatprep.subr.mxu0 0.0
        %1155 = vmatpush1.msra.mxu0 %v1078
        %1156 = vmatprep.subr.mxu0 0.0
        %1157 = vmatpush1.msra.mxu0 %v1077
        %1158 = vmatprep.subr.mxu0 0.0
        %1159 = vmatpush1.msra.mxu0 %v1076
        %1160 = vmatprep.subr.mxu0 0.0
        %1161 = vmatpush2.msra.mxu0 0.0
        %1162 = vmatprep.subr.mxu0 0.0
        %1163 = vmatpush2.msra.mxu0 0.0
        %1164 = vmatprep.subr.mxu0 0.0
        %1165 = vmatpush2.msra.mxu0 0.0
        %1166 = vmatprep.subr.mxu0 0.0
        %1167 = vmatpush2.msra.mxu0 0.0
        %1168 = vmatprep.subr.mxu0 0.0
        %1169 = vmatpush2.msra.mxu0 0.0
        %1170 = vmatprep.subr.mxu0 0.0
        %1171 = vmatpush2.msra.mxu0 0.0
        %1172 = vmatprep.subr.mxu0 0.0
        %1173 = vmatpush2.msra.mxu0 0.0
        %1174 = vmatprep.subr.mxu0 0.0
        %1175 = vmatpush2.msra.mxu0 0.0
        %1176 = vmatprep.subr.mxu0 0.0
        %1177 = vmatpush2.msra.mxu0 0.0
        %1178 = vmatprep.subr.mxu0 0.0
        %1179 = vmatpush2.msra.mxu0 0.0
        %1180 = vmatprep.subr.mxu0 0.0
        %1181 = vmatpush2.msra.mxu0 0.0
        %1182 = vmatprep.subr.mxu0 0.0
        %1183 = vmatpush2.msra.mxu0 0.0
        %1184 = vmatprep.subr.mxu0 0.0
        %1185 = vmatpush2.msra.mxu0 0.0
        %1186 = vmatprep.subr.mxu0 0.0
        %1187 = vmatpush2.msra.mxu0 0.0
        %1188 = vmatprep.subr.mxu0 0.0
        %1189 = vmatpush2.msra.mxu0 0.0
        %1190 = vmatprep.subr.mxu0 0.0
        %1191 = vmatpush2.msra.mxu0 0.0
        %1192 = vmatprep.mubr.f32.mxu0 0.0
        %1193 = vmatmul.mubr.f32.gmra.mxu0 %v1081
        %v1194 = vpop.f32.mrf.mxu0
        %v1195 = vadd.f32 0.0, %v1194
        %v1196 = vpop.f32.mrf.mxu0
        %1197 = vmatprep.mubr.f32.mxu0 0.0
        %1198 = vmatmul.mubr.f32.gmra.mxu0 %v1084
        %v1199 = vpop.f32.mrf.mxu0
        %v1200 = vadd.f32 0.0, %v1199
        %v1201 = vpop.f32.mrf.mxu0
        %1202 = vmatprep.mubr.f32.mxu0 0.0
        %1203 = vmatmul.mubr.f32.gmra.mxu0 %v1087
        %v1204 = vpop.f32.mrf.mxu0
        %v1205 = vadd.f32 0.0, %v1204
        %v1206 = vpop.f32.mrf.mxu0
        %1207 = vmatprep.mubr.f32.mxu0 0.0
        %1208 = vmatmul.mubr.f32.gmra.mxu0 %v1090
        %v1209 = vpop.f32.mrf.mxu0
        %v1210 = vadd.f32 0.0, %v1209
        %v1211 = vpop.f32.mrf.mxu0
        %1212 = vmatprep.mubr.f32.mxu0 0.0
        %1213 = vmatmul.mubr.f32.gmra.mxu0 %v1093
        %v1214 = vpop.f32.mrf.mxu0
        %v1215 = vadd.f32 0.0, %v1214
        %v1216 = vpop.f32.mrf.mxu0
        %1217 = vmatprep.mubr.f32.mxu0 0.0
        %1218 = vmatmul.mubr.f32.gmra.mxu0 %v1096
        %v1219 = vpop.f32.mrf.mxu0
        %v1220 = vadd.f32 0.0, %v1219
        %v1221 = vpop.f32.mrf.mxu0
        %1222 = vmatprep.mubr.f32.mxu0 0.0
        %1223 = vmatmul.mubr.f32.gmra.mxu0 %v1099
        %v1224 = vpop.f32.mrf.mxu0
        %v1225 = vadd.f32 0.0, %v1224
        %v1226 = vpop.f32.mrf.mxu0
        %1227 = vmatprep.mubr.f32.mxu0 0.0
        %1228 = vmatmul.mubr.f32.gmra.mxu0 %v1102
        %v1229 = vpop.f32.mrf.mxu0
        %v1230 = vadd.f32 0.0, %v1229
        %v1231 = vpop.f32.mrf.mxu0
        %1232 = vmatprep.mubr.f32.mxu0 0.0
        %1233 = vmatmul.mubr.f32.gmra.mxu0 %v1105
        %v1234 = vpop.f32.mrf.mxu0
        %v1235 = vadd.f32 0.0, %v1234
        %v1236 = vpop.f32.mrf.mxu0
        %1237 = vmatprep.mubr.f32.mxu0 0.0
        %1238 = vmatmul.mubr.f32.gmra.mxu0 %v1108
        %v1239 = vpop.f32.mrf.mxu0
        %v1240 = vadd.f32 0.0, %v1239
        %v1241 = vpop.f32.mrf.mxu0
        %1242 = vmatprep.mubr.f32.mxu0 0.0
        %1243 = vmatmul.mubr.f32.gmra.mxu0 %v1111
        %v1244 = vpop.f32.mrf.mxu0
        %v1245 = vadd.f32 0.0, %v1244
        %v1246 = vpop.f32.mrf.mxu0
        %1247 = vmatprep.mubr.f32.mxu0 0.0
        %1248 = vmatmul.mubr.f32.gmra.mxu0 %v1114
        %v1249 = vpop.f32.mrf.mxu0
        %v1250 = vadd.f32 0.0, %v1249
        %v1251 = vpop.f32.mrf.mxu0
        %1252 = vmatprep.mubr.f32.mxu0 0.0
        %1253 = vmatmul.mubr.f32.gmra.mxu0 %v1117
        %v1254 = vpop.f32.mrf.mxu0
        %v1255 = vadd.f32 0.0, %v1254
        %v1256 = vpop.f32.mrf.mxu0
        %1257 = vmatprep.mubr.f32.mxu0 0.0
        %1258 = vmatmul.mubr.f32.gmra.mxu0 %v1120
        %v1259 = vpop.f32.mrf.mxu0
        %v1260 = vadd.f32 0.0, %v1259
        %v1261 = vpop.f32.mrf.mxu0
        %1262 = vmatprep.mubr.f32.mxu0 0.0
        %1263 = vmatmul.mubr.f32.gmra.mxu0 %v1123
        %v1264 = vpop.f32.mrf.mxu0
        %v1265 = vadd.f32 0.0, %v1264
        %v1266 = vpop.f32.mrf.mxu0
        %1267 = vmatprep.mubr.f32.mxu0 0.0
        %1268 = vmatmul.mubr.f32.gmra.mxu0 %v1126
        %v1269 = vpop.f32.mrf.mxu0
        %v1270 = vadd.f32 0.0, %v1269
        %v1271 = vpop.f32.mrf.mxu0
        %1272 = vdwg.mxu0
        %v1273 = vsub.f32 %v789, %v982
        %v1274 = vsub.f32 %v794, %v987
        %v1275 = vsub.f32 %v799, %v992
        %v1276 = vsub.f32 %v804, %v997
        %v1277 = vsub.f32 %v809, %v1002
        %v1278 = vsub.f32 %v814, %v1007
        %v1279 = vsub.f32 %v819, %v1012
        %v1280 = vsub.f32 %v824, %v1017
        %v1281 = vsub.f32 %v829, %v1022
        %v1282 = vsub.f32 %v834, %v1027
        %v1283 = vsub.f32 %v839, %v1032
        %v1284 = vsub.f32 %v844, %v1037
        %v1285 = vsub.f32 %v849, %v1042
        %v1286 = vsub.f32 %v854, %v1047
        %v1287 = vsub.f32 %v859, %v1052
        %v1288 = vsub.f32 %v864, %v1057
        %v1289 = vsub.f32 %v1195, %v789
        %v1290 = vsub.f32 %v1200, %v794
        %v1291 = vsub.f32 %v1205, %v799
        %v1292 = vsub.f32 %v1210, %v804
        %v1293 = vsub.f32 %v1215, %v809
        %v1294 = vsub.f32 %v1220, %v814
        %v1295 = vsub.f32 %v1225, %v819
        %v1296 = vsub.f32 %v1230, %v824
        %v1297 = vsub.f32 %v1235, %v829
        %v1298 = vsub.f32 %v1240, %v834
        %v1299 = vsub.f32 %v1245, %v839
        %v1300 = vsub.f32 %v1250, %v844
        %v1301 = vsub.f32 %v1255, %v849
        %v1302 = vsub.f32 %v1260, %v854
        %v1303 = vsub.f32 %v1265, %v859
        %v1304 = vsub.f32 %v1270, %v864
        %v1305 = vsub.f32 %v1289, %v982
        %v1306 = vsub.f32 %v1290, %v987
        %v1307 = vsub.f32 %v1291, %v992
        %v1308 = vsub.f32 %v1292, %v997
        %v1309 = vsub.f32 %v1293, %v1002
        %v1310 = vsub.f32 %v1294, %v1007
        %v1311 = vsub.f32 %v1295, %v1012
        %v1312 = vsub.f32 %v1296, %v1017
        %v1313 = vsub.f32 %v1297, %v1022
        %v1314 = vsub.f32 %v1298, %v1027
        %v1315 = vsub.f32 %v1299, %v1032
        %v1316 = vsub.f32 %v1300, %v1037
        %v1317 = vsub.f32 %v1301, %v1042
        %v1318 = vsub.f32 %v1302, %v1047
        %v1319 = vsub.f32 %v1303, %v1052
        %v1320 = vsub.f32 %v1304, %v1057
        %v1321 = vld [vmem:[%s4] sm:$0xff]
        %v1322 = vld [vmem:[%s4 + $0x8] sm:$0xff]
        %v1323 = vadd.f32 %v1273, %v1321
        %v1324 = vadd.f32 %v1274, %v1322
        %v1325 = vadd.f32 %v1275, %v1321
        %v1326 = vadd.f32 %v1276, %v1322
        %v1327 = vadd.f32 %v1277, %v1321
        %v1328 = vadd.f32 %v1278, %v1322
        %v1329 = vadd.f32 %v1279, %v1321
        %v1330 = vadd.f32 %v1280, %v1322
        %v1331 = vadd.f32 %v1281, %v1321
        %v1332 = vadd.f32 %v1282, %v1322
        %v1333 = vadd.f32 %v1283, %v1321
        %v1334 = vadd.f32 %v1284, %v1322
        %v1335 = vadd.f32 %v1285, %v1321
        %v1336 = vadd.f32 %v1286, %v1322
        %v1337 = vadd.f32 %v1287, %v1321
        %v1338 = vadd.f32 %v1288, %v1322
        %s1339 = scalar_lea.vmem %s4, 16
        %v1340 = vld [vmem:[%s1339] sm:$0xff]
        %v1341 = vld [vmem:[%s1339 + $0x8] sm:$0xff]
        %v1342 = vadd.f32 %v1305, %v1340
        %v1343 = vadd.f32 %v1306, %v1341
        %v1344 = vadd.f32 %v1307, %v1340
        %v1345 = vadd.f32 %v1308, %v1341
        %v1346 = vadd.f32 %v1309, %v1340
        %v1347 = vadd.f32 %v1310, %v1341
        %v1348 = vadd.f32 %v1311, %v1340
        %v1349 = vadd.f32 %v1312, %v1341
        %v1350 = vadd.f32 %v1313, %v1340
        %v1351 = vadd.f32 %v1314, %v1341
        %v1352 = vadd.f32 %v1315, %v1340
        %v1353 = vadd.f32 %v1316, %v1341
        %v1354 = vadd.f32 %v1317, %v1340
        %v1355 = vadd.f32 %v1318, %v1341
        %v1356 = vadd.f32 %v1319, %v1340
        %v1357 = vadd.f32 %v1320, %v1341
        %v1358 = vld [vmem:[%s586] sm:$0xff]
        %v1359 = vld [vmem:[%s586 + $0x8] sm:$0xff]
        %v1360 = vld [vmem:[%s586 + $0x10] sm:$0xff]
        %v1361 = vld [vmem:[%s586 + $0x18] sm:$0xff]
        %v1362 = vld [vmem:[%s586 + $0x20] sm:$0xff]
        %v1363 = vld [vmem:[%s586 + $0x28] sm:$0xff]
        %v1364 = vld [vmem:[%s586 + $0x30] sm:$0xff]
        %v1365 = vld [vmem:[%s586 + $0x38] sm:$0xff]
        %v1366 = vld [vmem:[%s586 + $0x40] sm:$0xff]
        %v1367 = vld [vmem:[%s586 + $0x48] sm:$0xff]
        %v1368 = vld [vmem:[%s586 + $0x50] sm:$0xff]
        %v1369 = vld [vmem:[%s586 + $0x58] sm:$0xff]
        %v1370 = vld [vmem:[%s586 + $0x60] sm:$0xff]
        %v1371 = vld [vmem:[%s586 + $0x68] sm:$0xff]
        %v1372 = vld [vmem:[%s586 + $0x70] sm:$0xff]
        %v1373 = vld [vmem:[%s586 + $0x78] sm:$0xff]
        %s1374 = scalar_lea.vmem %s586, 128 [#allocation3]
        %v1375 = vld [vmem:[%s1374] sm:$0xff]
        %v1376 = vld [vmem:[%s1374 + $0x8] sm:$0xff]
        %v1377 = vld [vmem:[%s1374 + $0x10] sm:$0xff]
        %v1378 = vld [vmem:[%s1374 + $0x18] sm:$0xff]
        %v1379 = vld [vmem:[%s1374 + $0x20] sm:$0xff]
        %v1380 = vld [vmem:[%s1374 + $0x28] sm:$0xff]
        %v1381 = vld [vmem:[%s1374 + $0x30] sm:$0xff]
        %v1382 = vld [vmem:[%s1374 + $0x38] sm:$0xff]
        %v1383 = vld [vmem:[%s1374 + $0x40] sm:$0xff]
        %v1384 = vld [vmem:[%s1374 + $0x48] sm:$0xff]
        %v1385 = vld [vmem:[%s1374 + $0x50] sm:$0xff]
        %v1386 = vld [vmem:[%s1374 + $0x58] sm:$0xff]
        %v1387 = vld [vmem:[%s1374 + $0x60] sm:$0xff]
        %v1388 = vld [vmem:[%s1374 + $0x68] sm:$0xff]
        %v1389 = vld [vmem:[%s1374 + $0x70] sm:$0xff]
        %v1390 = vld [vmem:[%s1374 + $0x78] sm:$0xff]
        %v1391 = vld [vmem:[%s594] sm:$0xff]
        %v1392 = vld [vmem:[%s594 + $0x8] sm:$0xff]
        %v1393 = vld [vmem:[%s594 + $0x10] sm:$0xff]
        %v1394 = vld [vmem:[%s594 + $0x18] sm:$0xff]
        %v1395 = vld [vmem:[%s594 + $0x20] sm:$0xff]
        %v1396 = vld [vmem:[%s594 + $0x28] sm:$0xff]
        %v1397 = vld [vmem:[%s594 + $0x30] sm:$0xff]
        %v1398 = vld [vmem:[%s594 + $0x38] sm:$0xff]
        %v1399 = vld [vmem:[%s594 + $0x40] sm:$0xff]
        %v1400 = vld [vmem:[%s594 + $0x48] sm:$0xff]
        %v1401 = vld [vmem:[%s594 + $0x50] sm:$0xff]
        %v1402 = vld [vmem:[%s594 + $0x58] sm:$0xff]
        %v1403 = vld [vmem:[%s594 + $0x60] sm:$0xff]
        %v1404 = vld [vmem:[%s594 + $0x68] sm:$0xff]
        %v1405 = vld [vmem:[%s594 + $0x70] sm:$0xff]
        %v1406 = vld [vmem:[%s594 + $0x78] sm:$0xff]
        %s1407 = scalar_lea.vmem %s594, 128 [#allocation5]
        %v1408 = vld [vmem:[%s1407] sm:$0xff]
        %v1409 = vld [vmem:[%s1407 + $0x8] sm:$0xff]
        %v1410 = vld [vmem:[%s1407 + $0x10] sm:$0xff]
        %v1411 = vld [vmem:[%s1407 + $0x18] sm:$0xff]
        %v1412 = vld [vmem:[%s1407 + $0x20] sm:$0xff]
        %v1413 = vld [vmem:[%s1407 + $0x28] sm:$0xff]
        %v1414 = vld [vmem:[%s1407 + $0x30] sm:$0xff]
        %v1415 = vld [vmem:[%s1407 + $0x38] sm:$0xff]
        %v1416 = vld [vmem:[%s1407 + $0x40] sm:$0xff]
        %v1417 = vld [vmem:[%s1407 + $0x48] sm:$0xff]
        %v1418 = vld [vmem:[%s1407 + $0x50] sm:$0xff]
        %v1419 = vld [vmem:[%s1407 + $0x58] sm:$0xff]
        %v1420 = vld [vmem:[%s1407 + $0x60] sm:$0xff]
        %v1421 = vld [vmem:[%s1407 + $0x68] sm:$0xff]
        %v1422 = vld [vmem:[%s1407 + $0x70] sm:$0xff]
        %v1423 = vld [vmem:[%s1407 + $0x78] sm:$0xff]
        %vm1424 = vcmask 130048
        %v1426 = vsel %vm1424, %v1358, 0
        %v1429 = vsel %vm1424, %v1359, 0
        %1431 = vmatprep.subr.mxu0 0.0
        %1432 = vmatpush1.msra.mxu0 0.0
        %1433 = vmatprep.subr.mxu0 0.0
        %1434 = vmatpush1.msra.mxu0 0.0
        %1435 = vmatprep.subr.mxu0 0.0
        %1436 = vmatpush1.msra.mxu0 0.0
        %1437 = vmatprep.subr.mxu0 0.0
        %1438 = vmatpush1.msra.mxu0 0.0
        %1439 = vmatprep.subr.mxu0 0.0
        %1440 = vmatpush1.msra.mxu0 0.0
        %1441 = vmatprep.subr.mxu0 0.0
        %1442 = vmatpush1.msra.mxu0 0.0
        %1443 = vmatprep.subr.mxu0 0.0
        %1444 = vmatpush1.msra.mxu0 0.0
        %1445 = vmatprep.subr.mxu0 0.0
        %1446 = vmatpush1.msra.mxu0 0.0
        %1447 = vmatprep.subr.mxu0 0.0
        %1448 = vmatpush1.msra.mxu0 0.0
        %1449 = vmatprep.subr.mxu0 0.0
        %1450 = vmatpush1.msra.mxu0 0.0
        %1451 = vmatprep.subr.mxu0 0.0
        %1452 = vmatpush1.msra.mxu0 0.0
        %1453 = vmatprep.subr.mxu0 0.0
        %1454 = vmatpush1.msra.mxu0 0.0
        %1455 = vmatprep.subr.mxu0 0.0
        %1456 = vmatpush1.msra.mxu0 0.0
        %1457 = vmatprep.subr.mxu0 0.0
        %1458 = vmatpush1.msra.mxu0 0.0
        %1459 = vmatprep.subr.mxu0 0.0
        %1460 = vmatpush1.msra.mxu0 %v1392
        %1461 = vmatprep.subr.mxu0 0.0
        %1462 = vmatpush1.msra.mxu0 %v1391
        %1463 = vmatprep.subr.mxu0 0.0
        %1464 = vmatpush2.msra.mxu0 0.0
        %1465 = vmatprep.subr.mxu0 0.0
        %1466 = vmatpush2.msra.mxu0 0.0
        %1467 = vmatprep.subr.mxu0 0.0
        %1468 = vmatpush2.msra.mxu0 0.0
        %1469 = vmatprep.subr.mxu0 0.0
        %1470 = vmatpush2.msra.mxu0 0.0
        %1471 = vmatprep.subr.mxu0 0.0
        %1472 = vmatpush2.msra.mxu0 0.0
        %1473 = vmatprep.subr.mxu0 0.0
        %1474 = vmatpush2.msra.mxu0 0.0
        %1475 = vmatprep.subr.mxu0 0.0
        %1476 = vmatpush2.msra.mxu0 0.0
        %1477 = vmatprep.subr.mxu0 0.0
        %1478 = vmatpush2.msra.mxu0 0.0
        %1479 = vmatprep.subr.mxu0 0.0
        %1480 = vmatpush2.msra.mxu0 0.0
        %1481 = vmatprep.subr.mxu0 0.0
        %1482 = vmatpush2.msra.mxu0 0.0
        %1483 = vmatprep.subr.mxu0 0.0
        %1484 = vmatpush2.msra.mxu0 0.0
        %1485 = vmatprep.subr.mxu0 0.0
        %1486 = vmatpush2.msra.mxu0 0.0
        %1487 = vmatprep.subr.mxu0 0.0
        %1488 = vmatpush2.msra.mxu0 0.0
        %1489 = vmatprep.subr.mxu0 0.0
        %1490 = vmatpush2.msra.mxu0 0.0
        %1491 = vmatprep.subr.mxu0 0.0
        %1492 = vmatpush2.msra.mxu0 0.0
        %1493 = vmatprep.subr.mxu0 0.0
        %1494 = vmatpush2.msra.mxu0 0.0
        %1495 = vmatprep.mubr.f32.mxu0 0.0
        %1496 = vmatmul.mubr.f32.gmra.mxu0 %v1426
        %v1497 = vpop.f32.mrf.mxu0
        %v1498 = vadd.f32 0.0, %v1497
        %v1499 = vpop.f32.mrf.mxu0
        %1500 = vmatprep.mubr.f32.mxu0 0.0
        %1501 = vmatmul.mubr.f32.gmra.mxu0 %v1429
        %v1502 = vpop.f32.mrf.mxu0
        %v1503 = vadd.f32 0.0, %v1502
        %v1504 = vpop.f32.mrf.mxu0
        %1505 = vdwg.mxu0
        %v1507 = vsel %vm1424, %v1360, 0
        %v1510 = vsel %vm1424, %v1361, 0
        %1512 = vmatprep.subr.mxu0 0.0
        %1513 = vmatpush1.msra.mxu0 0.0
        %1514 = vmatprep.subr.mxu0 0.0
        %1515 = vmatpush1.msra.mxu0 0.0
        %1516 = vmatprep.subr.mxu0 0.0
        %1517 = vmatpush1.msra.mxu0 0.0
        %1518 = vmatprep.subr.mxu0 0.0
        %1519 = vmatpush1.msra.mxu0 0.0
        %1520 = vmatprep.subr.mxu0 0.0
        %1521 = vmatpush1.msra.mxu0 0.0
        %1522 = vmatprep.subr.mxu0 0.0
        %1523 = vmatpush1.msra.mxu0 0.0
        %1524 = vmatprep.subr.mxu0 0.0
        %1525 = vmatpush1.msra.mxu0 0.0
        %1526 = vmatprep.subr.mxu0 0.0
        %1527 = vmatpush1.msra.mxu0 0.0
        %1528 = vmatprep.subr.mxu0 0.0
        %1529 = vmatpush1.msra.mxu0 0.0
        %1530 = vmatprep.subr.mxu0 0.0
        %1531 = vmatpush1.msra.mxu0 0.0
        %1532 = vmatprep.subr.mxu0 0.0
        %1533 = vmatpush1.msra.mxu0 0.0
        %1534 = vmatprep.subr.mxu0 0.0
        %1535 = vmatpush1.msra.mxu0 0.0
        %1536 = vmatprep.subr.mxu0 0.0
        %1537 = vmatpush1.msra.mxu0 0.0
        %1538 = vmatprep.subr.mxu0 0.0
        %1539 = vmatpush1.msra.mxu0 0.0
        %1540 = vmatprep.subr.mxu0 0.0
        %1541 = vmatpush1.msra.mxu0 %v1394
        %1542 = vmatprep.subr.mxu0 0.0
        %1543 = vmatpush1.msra.mxu0 %v1393
        %1544 = vmatprep.subr.mxu0 0.0
        %1545 = vmatpush2.msra.mxu0 0.0
        %1546 = vmatprep.subr.mxu0 0.0
        %1547 = vmatpush2.msra.mxu0 0.0
        %1548 = vmatprep.subr.mxu0 0.0
        %1549 = vmatpush2.msra.mxu0 0.0
        %1550 = vmatprep.subr.mxu0 0.0
        %1551 = vmatpush2.msra.mxu0 0.0
        %1552 = vmatprep.subr.mxu0 0.0
        %1553 = vmatpush2.msra.mxu0 0.0
        %1554 = vmatprep.subr.mxu0 0.0
        %1555 = vmatpush2.msra.mxu0 0.0
        %1556 = vmatprep.subr.mxu0 0.0
        %1557 = vmatpush2.msra.mxu0 0.0
        %1558 = vmatprep.subr.mxu0 0.0
        %1559 = vmatpush2.msra.mxu0 0.0
        %1560 = vmatprep.subr.mxu0 0.0
        %1561 = vmatpush2.msra.mxu0 0.0
        %1562 = vmatprep.subr.mxu0 0.0
        %1563 = vmatpush2.msra.mxu0 0.0
        %1564 = vmatprep.subr.mxu0 0.0
        %1565 = vmatpush2.msra.mxu0 0.0
        %1566 = vmatprep.subr.mxu0 0.0
        %1567 = vmatpush2.msra.mxu0 0.0
        %1568 = vmatprep.subr.mxu0 0.0
        %1569 = vmatpush2.msra.mxu0 0.0
        %1570 = vmatprep.subr.mxu0 0.0
        %1571 = vmatpush2.msra.mxu0 0.0
        %1572 = vmatprep.subr.mxu0 0.0
        %1573 = vmatpush2.msra.mxu0 0.0
        %1574 = vmatprep.subr.mxu0 0.0
        %1575 = vmatpush2.msra.mxu0 0.0
        %1576 = vmatprep.mubr.f32.mxu0 0.0
        %1577 = vmatmul.mubr.f32.gmra.mxu0 %v1507
        %v1578 = vpop.f32.mrf.mxu0
        %v1579 = vadd.f32 0.0, %v1578
        %v1580 = vpop.f32.mrf.mxu0
        %1581 = vmatprep.mubr.f32.mxu0 0.0
        %1582 = vmatmul.mubr.f32.gmra.mxu0 %v1510
        %v1583 = vpop.f32.mrf.mxu0
        %v1584 = vadd.f32 0.0, %v1583
        %v1585 = vpop.f32.mrf.mxu0
        %1586 = vdwg.mxu0
        %v1588 = vsel %vm1424, %v1362, 0
        %v1591 = vsel %vm1424, %v1363, 0
        %1593 = vmatprep.subr.mxu0 0.0
        %1594 = vmatpush1.msra.mxu0 0.0
        %1595 = vmatprep.subr.mxu0 0.0
        %1596 = vmatpush1.msra.mxu0 0.0
        %1597 = vmatprep.subr.mxu0 0.0
        %1598 = vmatpush1.msra.mxu0 0.0
        %1599 = vmatprep.subr.mxu0 0.0
        %1600 = vmatpush1.msra.mxu0 0.0
        %1601 = vmatprep.subr.mxu0 0.0
        %1602 = vmatpush1.msra.mxu0 0.0
        %1603 = vmatprep.subr.mxu0 0.0
        %1604 = vmatpush1.msra.mxu0 0.0
        %1605 = vmatprep.subr.mxu0 0.0
        %1606 = vmatpush1.msra.mxu0 0.0
        %1607 = vmatprep.subr.mxu0 0.0
        %1608 = vmatpush1.msra.mxu0 0.0
        %1609 = vmatprep.subr.mxu0 0.0
        %1610 = vmatpush1.msra.mxu0 0.0
        %1611 = vmatprep.subr.mxu0 0.0
        %1612 = vmatpush1.msra.mxu0 0.0
        %1613 = vmatprep.subr.mxu0 0.0
        %1614 = vmatpush1.msra.mxu0 0.0
        %1615 = vmatprep.subr.mxu0 0.0
        %1616 = vmatpush1.msra.mxu0 0.0
        %1617 = vmatprep.subr.mxu0 0.0
        %1618 = vmatpush1.msra.mxu0 0.0
        %1619 = vmatprep.subr.mxu0 0.0
        %1620 = vmatpush1.msra.mxu0 0.0
        %1621 = vmatprep.subr.mxu0 0.0
        %1622 = vmatpush1.msra.mxu0 %v1396
        %1623 = vmatprep.subr.mxu0 0.0
        %1624 = vmatpush1.msra.mxu0 %v1395
        %1625 = vmatprep.subr.mxu0 0.0
        %1626 = vmatpush2.msra.mxu0 0.0
        %1627 = vmatprep.subr.mxu0 0.0
        %1628 = vmatpush2.msra.mxu0 0.0
        %1629 = vmatprep.subr.mxu0 0.0
        %1630 = vmatpush2.msra.mxu0 0.0
        %1631 = vmatprep.subr.mxu0 0.0
        %1632 = vmatpush2.msra.mxu0 0.0
        %1633 = vmatprep.subr.mxu0 0.0
        %1634 = vmatpush2.msra.mxu0 0.0
        %1635 = vmatprep.subr.mxu0 0.0
        %1636 = vmatpush2.msra.mxu0 0.0
        %1637 = vmatprep.subr.mxu0 0.0
        %1638 = vmatpush2.msra.mxu0 0.0
        %1639 = vmatprep.subr.mxu0 0.0
        %1640 = vmatpush2.msra.mxu0 0.0
        %1641 = vmatprep.subr.mxu0 0.0
        %1642 = vmatpush2.msra.mxu0 0.0
        %1643 = vmatprep.subr.mxu0 0.0
        %1644 = vmatpush2.msra.mxu0 0.0
        %1645 = vmatprep.subr.mxu0 0.0
        %1646 = vmatpush2.msra.mxu0 0.0
        %1647 = vmatprep.subr.mxu0 0.0
        %1648 = vmatpush2.msra.mxu0 0.0
        %1649 = vmatprep.subr.mxu0 0.0
        %1650 = vmatpush2.msra.mxu0 0.0
        %1651 = vmatprep.subr.mxu0 0.0
        %1652 = vmatpush2.msra.mxu0 0.0
        %1653 = vmatprep.subr.mxu0 0.0
        %1654 = vmatpush2.msra.mxu0 0.0
        %1655 = vmatprep.subr.mxu0 0.0
        %1656 = vmatpush2.msra.mxu0 0.0
        %1657 = vmatprep.mubr.f32.mxu0 0.0
        %1658 = vmatmul.mubr.f32.gmra.mxu0 %v1588
        %v1659 = vpop.f32.mrf.mxu0
        %v1660 = vadd.f32 0.0, %v1659
        %v1661 = vpop.f32.mrf.mxu0
        %1662 = vmatprep.mubr.f32.mxu0 0.0
        %1663 = vmatmul.mubr.f32.gmra.mxu0 %v1591
        %v1664 = vpop.f32.mrf.mxu0
        %v1665 = vadd.f32 0.0, %v1664
        %v1666 = vpop.f32.mrf.mxu0
        %1667 = vdwg.mxu0
        %v1669 = vsel %vm1424, %v1364, 0
        %v1672 = vsel %vm1424, %v1365, 0
        %1674 = vmatprep.subr.mxu0 0.0
        %1675 = vmatpush1.msra.mxu0 0.0
        %1676 = vmatprep.subr.mxu0 0.0
        %1677 = vmatpush1.msra.mxu0 0.0
        %1678 = vmatprep.subr.mxu0 0.0
        %1679 = vmatpush1.msra.mxu0 0.0
        %1680 = vmatprep.subr.mxu0 0.0
        %1681 = vmatpush1.msra.mxu0 0.0
        %1682 = vmatprep.subr.mxu0 0.0
        %1683 = vmatpush1.msra.mxu0 0.0
        %1684 = vmatprep.subr.mxu0 0.0
        %1685 = vmatpush1.msra.mxu0 0.0
        %1686 = vmatprep.subr.mxu0 0.0
        %1687 = vmatpush1.msra.mxu0 0.0
        %1688 = vmatprep.subr.mxu0 0.0
        %1689 = vmatpush1.msra.mxu0 0.0
        %1690 = vmatprep.subr.mxu0 0.0
        %1691 = vmatpush1.msra.mxu0 0.0
        %1692 = vmatprep.subr.mxu0 0.0
        %1693 = vmatpush1.msra.mxu0 0.0
        %1694 = vmatprep.subr.mxu0 0.0
        %1695 = vmatpush1.msra.mxu0 0.0
        %1696 = vmatprep.subr.mxu0 0.0
        %1697 = vmatpush1.msra.mxu0 0.0
        %1698 = vmatprep.subr.mxu0 0.0
        %1699 = vmatpush1.msra.mxu0 0.0
        %1700 = vmatprep.subr.mxu0 0.0
        %1701 = vmatpush1.msra.mxu0 0.0
        %1702 = vmatprep.subr.mxu0 0.0
        %1703 = vmatpush1.msra.mxu0 %v1398
        %1704 = vmatprep.subr.mxu0 0.0
        %1705 = vmatpush1.msra.mxu0 %v1397
        %1706 = vmatprep.subr.mxu0 0.0
        %1707 = vmatpush2.msra.mxu0 0.0
        %1708 = vmatprep.subr.mxu0 0.0
        %1709 = vmatpush2.msra.mxu0 0.0
        %1710 = vmatprep.subr.mxu0 0.0
        %1711 = vmatpush2.msra.mxu0 0.0
        %1712 = vmatprep.subr.mxu0 0.0
        %1713 = vmatpush2.msra.mxu0 0.0
        %1714 = vmatprep.subr.mxu0 0.0
        %1715 = vmatpush2.msra.mxu0 0.0
        %1716 = vmatprep.subr.mxu0 0.0
        %1717 = vmatpush2.msra.mxu0 0.0
        %1718 = vmatprep.subr.mxu0 0.0
        %1719 = vmatpush2.msra.mxu0 0.0
        %1720 = vmatprep.subr.mxu0 0.0
        %1721 = vmatpush2.msra.mxu0 0.0
        %1722 = vmatprep.subr.mxu0 0.0
        %1723 = vmatpush2.msra.mxu0 0.0
        %1724 = vmatprep.subr.mxu0 0.0
        %1725 = vmatpush2.msra.mxu0 0.0
        %1726 = vmatprep.subr.mxu0 0.0
        %1727 = vmatpush2.msra.mxu0 0.0
        %1728 = vmatprep.subr.mxu0 0.0
        %1729 = vmatpush2.msra.mxu0 0.0
        %1730 = vmatprep.subr.mxu0 0.0
        %1731 = vmatpush2.msra.mxu0 0.0
        %1732 = vmatprep.subr.mxu0 0.0
        %1733 = vmatpush2.msra.mxu0 0.0
        %1734 = vmatprep.subr.mxu0 0.0
        %1735 = vmatpush2.msra.mxu0 0.0
        %1736 = vmatprep.subr.mxu0 0.0
        %1737 = vmatpush2.msra.mxu0 0.0
        %1738 = vmatprep.mubr.f32.mxu0 0.0
        %1739 = vmatmul.mubr.f32.gmra.mxu0 %v1669
        %v1740 = vpop.f32.mrf.mxu0
        %v1741 = vadd.f32 0.0, %v1740
        %v1742 = vpop.f32.mrf.mxu0
        %1743 = vmatprep.mubr.f32.mxu0 0.0
        %1744 = vmatmul.mubr.f32.gmra.mxu0 %v1672
        %v1745 = vpop.f32.mrf.mxu0
        %v1746 = vadd.f32 0.0, %v1745
        %v1747 = vpop.f32.mrf.mxu0
        %1748 = vdwg.mxu0
        %v1750 = vsel %vm1424, %v1366, 0
        %v1753 = vsel %vm1424, %v1367, 0
        %1755 = vmatprep.subr.mxu0 0.0
        %1756 = vmatpush1.msra.mxu0 0.0
        %1757 = vmatprep.subr.mxu0 0.0
        %1758 = vmatpush1.msra.mxu0 0.0
        %1759 = vmatprep.subr.mxu0 0.0
        %1760 = vmatpush1.msra.mxu0 0.0
        %1761 = vmatprep.subr.mxu0 0.0
        %1762 = vmatpush1.msra.mxu0 0.0
        %1763 = vmatprep.subr.mxu0 0.0
        %1764 = vmatpush1.msra.mxu0 0.0
        %1765 = vmatprep.subr.mxu0 0.0
        %1766 = vmatpush1.msra.mxu0 0.0
        %1767 = vmatprep.subr.mxu0 0.0
        %1768 = vmatpush1.msra.mxu0 0.0
        %1769 = vmatprep.subr.mxu0 0.0
        %1770 = vmatpush1.msra.mxu0 0.0
        %1771 = vmatprep.subr.mxu0 0.0
        %1772 = vmatpush1.msra.mxu0 0.0
        %1773 = vmatprep.subr.mxu0 0.0
        %1774 = vmatpush1.msra.mxu0 0.0
        %1775 = vmatprep.subr.mxu0 0.0
        %1776 = vmatpush1.msra.mxu0 0.0
        %1777 = vmatprep.subr.mxu0 0.0
        %1778 = vmatpush1.msra.mxu0 0.0
        %1779 = vmatprep.subr.mxu0 0.0
        %1780 = vmatpush1.msra.mxu0 0.0
        %1781 = vmatprep.subr.mxu0 0.0
        %1782 = vmatpush1.msra.mxu0 0.0
        %1783 = vmatprep.subr.mxu0 0.0
        %1784 = vmatpush1.msra.mxu0 %v1400
        %1785 = vmatprep.subr.mxu0 0.0
        %1786 = vmatpush1.msra.mxu0 %v1399
        %1787 = vmatprep.subr.mxu0 0.0
        %1788 = vmatpush2.msra.mxu0 0.0
        %1789 = vmatprep.subr.mxu0 0.0
        %1790 = vmatpush2.msra.mxu0 0.0
        %1791 = vmatprep.subr.mxu0 0.0
        %1792 = vmatpush2.msra.mxu0 0.0
        %1793 = vmatprep.subr.mxu0 0.0
        %1794 = vmatpush2.msra.mxu0 0.0
        %1795 = vmatprep.subr.mxu0 0.0
        %1796 = vmatpush2.msra.mxu0 0.0
        %1797 = vmatprep.subr.mxu0 0.0
        %1798 = vmatpush2.msra.mxu0 0.0
        %1799 = vmatprep.subr.mxu0 0.0
        %1800 = vmatpush2.msra.mxu0 0.0
        %1801 = vmatprep.subr.mxu0 0.0
        %1802 = vmatpush2.msra.mxu0 0.0
        %1803 = vmatprep.subr.mxu0 0.0
        %1804 = vmatpush2.msra.mxu0 0.0
        %1805 = vmatprep.subr.mxu0 0.0
        %1806 = vmatpush2.msra.mxu0 0.0
        %1807 = vmatprep.subr.mxu0 0.0
        %1808 = vmatpush2.msra.mxu0 0.0
        %1809 = vmatprep.subr.mxu0 0.0
        %1810 = vmatpush2.msra.mxu0 0.0
        %1811 = vmatprep.subr.mxu0 0.0
        %1812 = vmatpush2.msra.mxu0 0.0
        %1813 = vmatprep.subr.mxu0 0.0
        %1814 = vmatpush2.msra.mxu0 0.0
        %1815 = vmatprep.subr.mxu0 0.0
        %1816 = vmatpush2.msra.mxu0 0.0
        %1817 = vmatprep.subr.mxu0 0.0
        %1818 = vmatpush2.msra.mxu0 0.0
        %1819 = vmatprep.mubr.f32.mxu0 0.0
        %1820 = vmatmul.mubr.f32.gmra.mxu0 %v1750
        %v1821 = vpop.f32.mrf.mxu0
        %v1822 = vadd.f32 0.0, %v1821
        %v1823 = vpop.f32.mrf.mxu0
        %1824 = vmatprep.mubr.f32.mxu0 0.0
        %1825 = vmatmul.mubr.f32.gmra.mxu0 %v1753
        %v1826 = vpop.f32.mrf.mxu0
        %v1827 = vadd.f32 0.0, %v1826
        %v1828 = vpop.f32.mrf.mxu0
        %1829 = vdwg.mxu0
        %v1831 = vsel %vm1424, %v1368, 0
        %v1834 = vsel %vm1424, %v1369, 0
        %1836 = vmatprep.subr.mxu0 0.0
        %1837 = vmatpush1.msra.mxu0 0.0
        %1838 = vmatprep.subr.mxu0 0.0
        %1839 = vmatpush1.msra.mxu0 0.0
        %1840 = vmatprep.subr.mxu0 0.0
        %1841 = vmatpush1.msra.mxu0 0.0
        %1842 = vmatprep.subr.mxu0 0.0
        %1843 = vmatpush1.msra.mxu0 0.0
        %1844 = vmatprep.subr.mxu0 0.0
        %1845 = vmatpush1.msra.mxu0 0.0
        %1846 = vmatprep.subr.mxu0 0.0
        %1847 = vmatpush1.msra.mxu0 0.0
        %1848 = vmatprep.subr.mxu0 0.0
        %1849 = vmatpush1.msra.mxu0 0.0
        %1850 = vmatprep.subr.mxu0 0.0
        %1851 = vmatpush1.msra.mxu0 0.0
        %1852 = vmatprep.subr.mxu0 0.0
        %1853 = vmatpush1.msra.mxu0 0.0
        %1854 = vmatprep.subr.mxu0 0.0
        %1855 = vmatpush1.msra.mxu0 0.0
        %1856 = vmatprep.subr.mxu0 0.0
        %1857 = vmatpush1.msra.mxu0 0.0
        %1858 = vmatprep.subr.mxu0 0.0
        %1859 = vmatpush1.msra.mxu0 0.0
        %1860 = vmatprep.subr.mxu0 0.0
        %1861 = vmatpush1.msra.mxu0 0.0
        %1862 = vmatprep.subr.mxu0 0.0
        %1863 = vmatpush1.msra.mxu0 0.0
        %1864 = vmatprep.subr.mxu0 0.0
        %1865 = vmatpush1.msra.mxu0 %v1402
        %1866 = vmatprep.subr.mxu0 0.0
        %1867 = vmatpush1.msra.mxu0 %v1401
        %1868 = vmatprep.subr.mxu0 0.0
        %1869 = vmatpush2.msra.mxu0 0.0
        %1870 = vmatprep.subr.mxu0 0.0
        %1871 = vmatpush2.msra.mxu0 0.0
        %1872 = vmatprep.subr.mxu0 0.0
        %1873 = vmatpush2.msra.mxu0 0.0
        %1874 = vmatprep.subr.mxu0 0.0
        %1875 = vmatpush2.msra.mxu0 0.0
        %1876 = vmatprep.subr.mxu0 0.0
        %1877 = vmatpush2.msra.mxu0 0.0
        %1878 = vmatprep.subr.mxu0 0.0
        %1879 = vmatpush2.msra.mxu0 0.0
        %1880 = vmatprep.subr.mxu0 0.0
        %1881 = vmatpush2.msra.mxu0 0.0
        %1882 = vmatprep.subr.mxu0 0.0
        %1883 = vmatpush2.msra.mxu0 0.0
        %1884 = vmatprep.subr.mxu0 0.0
        %1885 = vmatpush2.msra.mxu0 0.0
        %1886 = vmatprep.subr.mxu0 0.0
        %1887 = vmatpush2.msra.mxu0 0.0
        %1888 = vmatprep.subr.mxu0 0.0
        %1889 = vmatpush2.msra.mxu0 0.0
        %1890 = vmatprep.subr.mxu0 0.0
        %1891 = vmatpush2.msra.mxu0 0.0
        %1892 = vmatprep.subr.mxu0 0.0
        %1893 = vmatpush2.msra.mxu0 0.0
        %1894 = vmatprep.subr.mxu0 0.0
        %1895 = vmatpush2.msra.mxu0 0.0
        %1896 = vmatprep.subr.mxu0 0.0
        %1897 = vmatpush2.msra.mxu0 0.0
        %1898 = vmatprep.subr.mxu0 0.0
        %1899 = vmatpush2.msra.mxu0 0.0
        %1900 = vmatprep.mubr.f32.mxu0 0.0
        %1901 = vmatmul.mubr.f32.gmra.mxu0 %v1831
        %v1902 = vpop.f32.mrf.mxu0
        %v1903 = vadd.f32 0.0, %v1902
        %v1904 = vpop.f32.mrf.mxu0
        %1905 = vmatprep.mubr.f32.mxu0 0.0
        %1906 = vmatmul.mubr.f32.gmra.mxu0 %v1834
        %v1907 = vpop.f32.mrf.mxu0
        %v1908 = vadd.f32 0.0, %v1907
        %v1909 = vpop.f32.mrf.mxu0
        %1910 = vdwg.mxu0
        %v1912 = vsel %vm1424, %v1370, 0
        %v1915 = vsel %vm1424, %v1371, 0
        %1917 = vmatprep.subr.mxu0 0.0
        %1918 = vmatpush1.msra.mxu0 0.0
        %1919 = vmatprep.subr.mxu0 0.0
        %1920 = vmatpush1.msra.mxu0 0.0
        %1921 = vmatprep.subr.mxu0 0.0
        %1922 = vmatpush1.msra.mxu0 0.0
        %1923 = vmatprep.subr.mxu0 0.0
        %1924 = vmatpush1.msra.mxu0 0.0
        %1925 = vmatprep.subr.mxu0 0.0
        %1926 = vmatpush1.msra.mxu0 0.0
        %1927 = vmatprep.subr.mxu0 0.0
        %1928 = vmatpush1.msra.mxu0 0.0
        %1929 = vmatprep.subr.mxu0 0.0
        %1930 = vmatpush1.msra.mxu0 0.0
        %1931 = vmatprep.subr.mxu0 0.0
        %1932 = vmatpush1.msra.mxu0 0.0
        %1933 = vmatprep.subr.mxu0 0.0
        %1934 = vmatpush1.msra.mxu0 0.0
        %1935 = vmatprep.subr.mxu0 0.0
        %1936 = vmatpush1.msra.mxu0 0.0
        %1937 = vmatprep.subr.mxu0 0.0
        %1938 = vmatpush1.msra.mxu0 0.0
        %1939 = vmatprep.subr.mxu0 0.0
        %1940 = vmatpush1.msra.mxu0 0.0
        %1941 = vmatprep.subr.mxu0 0.0
        %1942 = vmatpush1.msra.mxu0 0.0
        %1943 = vmatprep.subr.mxu0 0.0
        %1944 = vmatpush1.msra.mxu0 0.0
        %1945 = vmatprep.subr.mxu0 0.0
        %1946 = vmatpush1.msra.mxu0 %v1404
        %1947 = vmatprep.subr.mxu0 0.0
        %1948 = vmatpush1.msra.mxu0 %v1403
        %1949 = vmatprep.subr.mxu0 0.0
        %1950 = vmatpush2.msra.mxu0 0.0
        %1951 = vmatprep.subr.mxu0 0.0
        %1952 = vmatpush2.msra.mxu0 0.0
        %1953 = vmatprep.subr.mxu0 0.0
        %1954 = vmatpush2.msra.mxu0 0.0
        %1955 = vmatprep.subr.mxu0 0.0
        %1956 = vmatpush2.msra.mxu0 0.0
        %1957 = vmatprep.subr.mxu0 0.0
        %1958 = vmatpush2.msra.mxu0 0.0
        %1959 = vmatprep.subr.mxu0 0.0
        %1960 = vmatpush2.msra.mxu0 0.0
        %1961 = vmatprep.subr.mxu0 0.0
        %1962 = vmatpush2.msra.mxu0 0.0
        %1963 = vmatprep.subr.mxu0 0.0
        %1964 = vmatpush2.msra.mxu0 0.0
        %1965 = vmatprep.subr.mxu0 0.0
        %1966 = vmatpush2.msra.mxu0 0.0
        %1967 = vmatprep.subr.mxu0 0.0
        %1968 = vmatpush2.msra.mxu0 0.0
        %1969 = vmatprep.subr.mxu0 0.0
        %1970 = vmatpush2.msra.mxu0 0.0
        %1971 = vmatprep.subr.mxu0 0.0
        %1972 = vmatpush2.msra.mxu0 0.0
        %1973 = vmatprep.subr.mxu0 0.0
        %1974 = vmatpush2.msra.mxu0 0.0
        %1975 = vmatprep.subr.mxu0 0.0
        %1976 = vmatpush2.msra.mxu0 0.0
        %1977 = vmatprep.subr.mxu0 0.0
        %1978 = vmatpush2.msra.mxu0 0.0
        %1979 = vmatprep.subr.mxu0 0.0
        %1980 = vmatpush2.msra.mxu0 0.0
        %1981 = vmatprep.mubr.f32.mxu0 0.0
        %1982 = vmatmul.mubr.f32.gmra.mxu0 %v1912
        %v1983 = vpop.f32.mrf.mxu0
        %v1984 = vadd.f32 0.0, %v1983
        %v1985 = vpop.f32.mrf.mxu0
        %1986 = vmatprep.mubr.f32.mxu0 0.0
        %1987 = vmatmul.mubr.f32.gmra.mxu0 %v1915
        %v1988 = vpop.f32.mrf.mxu0
        %v1989 = vadd.f32 0.0, %v1988
        %v1990 = vpop.f32.mrf.mxu0
        %1991 = vdwg.mxu0
        %v1993 = vsel %vm1424, %v1372, 0
        %v1996 = vsel %vm1424, %v1373, 0
        %1998 = vmatprep.subr.mxu0 0.0
        %1999 = vmatpush1.msra.mxu0 0.0
        %2000 = vmatprep.subr.mxu0 0.0
        %2001 = vmatpush1.msra.mxu0 0.0
        %2002 = vmatprep.subr.mxu0 0.0
        %2003 = vmatpush1.msra.mxu0 0.0
        %2004 = vmatprep.subr.mxu0 0.0
        %2005 = vmatpush1.msra.mxu0 0.0
        %2006 = vmatprep.subr.mxu0 0.0
        %2007 = vmatpush1.msra.mxu0 0.0
        %2008 = vmatprep.subr.mxu0 0.0
        %2009 = vmatpush1.msra.mxu0 0.0
        %2010 = vmatprep.subr.mxu0 0.0
        %2011 = vmatpush1.msra.mxu0 0.0
        %2012 = vmatprep.subr.mxu0 0.0
        %2013 = vmatpush1.msra.mxu0 0.0
        %2014 = vmatprep.subr.mxu0 0.0
        %2015 = vmatpush1.msra.mxu0 0.0
        %2016 = vmatprep.subr.mxu0 0.0
        %2017 = vmatpush1.msra.mxu0 0.0
        %2018 = vmatprep.subr.mxu0 0.0
        %2019 = vmatpush1.msra.mxu0 0.0
        %2020 = vmatprep.subr.mxu0 0.0
        %2021 = vmatpush1.msra.mxu0 0.0
        %2022 = vmatprep.subr.mxu0 0.0
        %2023 = vmatpush1.msra.mxu0 0.0
        %2024 = vmatprep.subr.mxu0 0.0
        %2025 = vmatpush1.msra.mxu0 0.0
        %2026 = vmatprep.subr.mxu0 0.0
        %2027 = vmatpush1.msra.mxu0 %v1406
        %2028 = vmatprep.subr.mxu0 0.0
        %2029 = vmatpush1.msra.mxu0 %v1405
        %2030 = vmatprep.subr.mxu0 0.0
        %2031 = vmatpush2.msra.mxu0 0.0
        %2032 = vmatprep.subr.mxu0 0.0
        %2033 = vmatpush2.msra.mxu0 0.0
        %2034 = vmatprep.subr.mxu0 0.0
        %2035 = vmatpush2.msra.mxu0 0.0
        %2036 = vmatprep.subr.mxu0 0.0
        %2037 = vmatpush2.msra.mxu0 0.0
        %2038 = vmatprep.subr.mxu0 0.0
        %2039 = vmatpush2.msra.mxu0 0.0
        %2040 = vmatprep.subr.mxu0 0.0
        %2041 = vmatpush2.msra.mxu0 0.0
        %2042 = vmatprep.subr.mxu0 0.0
        %2043 = vmatpush2.msra.mxu0 0.0
        %2044 = vmatprep.subr.mxu0 0.0
        %2045 = vmatpush2.msra.mxu0 0.0
        %2046 = vmatprep.subr.mxu0 0.0
        %2047 = vmatpush2.msra.mxu0 0.0
        %2048 = vmatprep.subr.mxu0 0.0
        %2049 = vmatpush2.msra.mxu0 0.0
        %2050 = vmatprep.subr.mxu0 0.0
        %2051 = vmatpush2.msra.mxu0 0.0
        %2052 = vmatprep.subr.mxu0 0.0
        %2053 = vmatpush2.msra.mxu0 0.0
        %2054 = vmatprep.subr.mxu0 0.0
        %2055 = vmatpush2.msra.mxu0 0.0
        %2056 = vmatprep.subr.mxu0 0.0
        %2057 = vmatpush2.msra.mxu0 0.0
        %2058 = vmatprep.subr.mxu0 0.0
        %2059 = vmatpush2.msra.mxu0 0.0
        %2060 = vmatprep.subr.mxu0 0.0
        %2061 = vmatpush2.msra.mxu0 0.0
        %2062 = vmatprep.mubr.f32.mxu0 0.0
        %2063 = vmatmul.mubr.f32.gmra.mxu0 %v1993
        %v2064 = vpop.f32.mrf.mxu0
        %v2065 = vadd.f32 0.0, %v2064
        %v2066 = vpop.f32.mrf.mxu0
        %2067 = vmatprep.mubr.f32.mxu0 0.0
        %2068 = vmatmul.mubr.f32.gmra.mxu0 %v1996
        %v2069 = vpop.f32.mrf.mxu0
        %v2070 = vadd.f32 0.0, %v2069
        %v2071 = vpop.f32.mrf.mxu0
        %2072 = vdwg.mxu0
        %v2074 = vsel %vm1424, %v1375, 0
        %v2077 = vsel %vm1424, %v1376, 0
        %2079 = vmatprep.subr.mxu0 0.0
        %2080 = vmatpush1.msra.mxu0 0.0
        %2081 = vmatprep.subr.mxu0 0.0
        %2082 = vmatpush1.msra.mxu0 0.0
        %2083 = vmatprep.subr.mxu0 0.0
        %2084 = vmatpush1.msra.mxu0 0.0
        %2085 = vmatprep.subr.mxu0 0.0
        %2086 = vmatpush1.msra.mxu0 0.0
        %2087 = vmatprep.subr.mxu0 0.0
        %2088 = vmatpush1.msra.mxu0 0.0
        %2089 = vmatprep.subr.mxu0 0.0
        %2090 = vmatpush1.msra.mxu0 0.0
        %2091 = vmatprep.subr.mxu0 0.0
        %2092 = vmatpush1.msra.mxu0 0.0
        %2093 = vmatprep.subr.mxu0 0.0
        %2094 = vmatpush1.msra.mxu0 0.0
        %2095 = vmatprep.subr.mxu0 0.0
        %2096 = vmatpush1.msra.mxu0 0.0
        %2097 = vmatprep.subr.mxu0 0.0
        %2098 = vmatpush1.msra.mxu0 0.0
        %2099 = vmatprep.subr.mxu0 0.0
        %2100 = vmatpush1.msra.mxu0 0.0
        %2101 = vmatprep.subr.mxu0 0.0
        %2102 = vmatpush1.msra.mxu0 0.0
        %2103 = vmatprep.subr.mxu0 0.0
        %2104 = vmatpush1.msra.mxu0 0.0
        %2105 = vmatprep.subr.mxu0 0.0
        %2106 = vmatpush1.msra.mxu0 0.0
        %2107 = vmatprep.subr.mxu0 0.0
        %2108 = vmatpush1.msra.mxu0 %v1409
        %2109 = vmatprep.subr.mxu0 0.0
        %2110 = vmatpush1.msra.mxu0 %v1408
        %2111 = vmatprep.subr.mxu0 0.0
        %2112 = vmatpush2.msra.mxu0 0.0
        %2113 = vmatprep.subr.mxu0 0.0
        %2114 = vmatpush2.msra.mxu0 0.0
        %2115 = vmatprep.subr.mxu0 0.0
        %2116 = vmatpush2.msra.mxu0 0.0
        %2117 = vmatprep.subr.mxu0 0.0
        %2118 = vmatpush2.msra.mxu0 0.0
        %2119 = vmatprep.subr.mxu0 0.0
        %2120 = vmatpush2.msra.mxu0 0.0
        %2121 = vmatprep.subr.mxu0 0.0
        %2122 = vmatpush2.msra.mxu0 0.0
        %2123 = vmatprep.subr.mxu0 0.0
        %2124 = vmatpush2.msra.mxu0 0.0
        %2125 = vmatprep.subr.mxu0 0.0
        %2126 = vmatpush2.msra.mxu0 0.0
        %2127 = vmatprep.subr.mxu0 0.0
        %2128 = vmatpush2.msra.mxu0 0.0
        %2129 = vmatprep.subr.mxu0 0.0
        %2130 = vmatpush2.msra.mxu0 0.0
        %2131 = vmatprep.subr.mxu0 0.0
        %2132 = vmatpush2.msra.mxu0 0.0
        %2133 = vmatprep.subr.mxu0 0.0
        %2134 = vmatpush2.msra.mxu0 0.0
        %2135 = vmatprep.subr.mxu0 0.0
        %2136 = vmatpush2.msra.mxu0 0.0
        %2137 = vmatprep.subr.mxu0 0.0
        %2138 = vmatpush2.msra.mxu0 0.0
        %2139 = vmatprep.subr.mxu0 0.0
        %2140 = vmatpush2.msra.mxu0 0.0
        %2141 = vmatprep.subr.mxu0 0.0
        %2142 = vmatpush2.msra.mxu0 0.0
        %2143 = vmatprep.mubr.f32.mxu0 0.0
        %2144 = vmatmul.mubr.f32.gmra.mxu0 %v2074
        %v2145 = vpop.f32.mrf.mxu0
        %v2146 = vadd.f32 0.0, %v2145
        %v2147 = vpop.f32.mrf.mxu0
        %2148 = vmatprep.mubr.f32.mxu0 0.0
        %2149 = vmatmul.mubr.f32.gmra.mxu0 %v2077
        %v2150 = vpop.f32.mrf.mxu0
        %v2151 = vadd.f32 0.0, %v2150
        %v2152 = vpop.f32.mrf.mxu0
        %2153 = vdwg.mxu0
        %v2155 = vsel %vm1424, %v1377, 0
        %v2158 = vsel %vm1424, %v1378, 0
        %2160 = vmatprep.subr.mxu0 0.0
        %2161 = vmatpush1.msra.mxu0 0.0
        %2162 = vmatprep.subr.mxu0 0.0
        %2163 = vmatpush1.msra.mxu0 0.0
        %2164 = vmatprep.subr.mxu0 0.0
        %2165 = vmatpush1.msra.mxu0 0.0
        %2166 = vmatprep.subr.mxu0 0.0
        %2167 = vmatpush1.msra.mxu0 0.0
        %2168 = vmatprep.subr.mxu0 0.0
        %2169 = vmatpush1.msra.mxu0 0.0
        %2170 = vmatprep.subr.mxu0 0.0
        %2171 = vmatpush1.msra.mxu0 0.0
        %2172 = vmatprep.subr.mxu0 0.0
        %2173 = vmatpush1.msra.mxu0 0.0
        %2174 = vmatprep.subr.mxu0 0.0
        %2175 = vmatpush1.msra.mxu0 0.0
        %2176 = vmatprep.subr.mxu0 0.0
        %2177 = vmatpush1.msra.mxu0 0.0
        %2178 = vmatprep.subr.mxu0 0.0
        %2179 = vmatpush1.msra.mxu0 0.0
        %2180 = vmatprep.subr.mxu0 0.0
        %2181 = vmatpush1.msra.mxu0 0.0
        %2182 = vmatprep.subr.mxu0 0.0
        %2183 = vmatpush1.msra.mxu0 0.0
        %2184 = vmatprep.subr.mxu0 0.0
        %2185 = vmatpush1.msra.mxu0 0.0
        %2186 = vmatprep.subr.mxu0 0.0
        %2187 = vmatpush1.msra.mxu0 0.0
        %2188 = vmatprep.subr.mxu0 0.0
        %2189 = vmatpush1.msra.mxu0 %v1411
        %2190 = vmatprep.subr.mxu0 0.0
        %2191 = vmatpush1.msra.mxu0 %v1410
        %2192 = vmatprep.subr.mxu0 0.0
        %2193 = vmatpush2.msra.mxu0 0.0
        %2194 = vmatprep.subr.mxu0 0.0
        %2195 = vmatpush2.msra.mxu0 0.0
        %2196 = vmatprep.subr.mxu0 0.0
        %2197 = vmatpush2.msra.mxu0 0.0
        %2198 = vmatprep.subr.mxu0 0.0
        %2199 = vmatpush2.msra.mxu0 0.0
        %2200 = vmatprep.subr.mxu0 0.0
        %2201 = vmatpush2.msra.mxu0 0.0
        %2202 = vmatprep.subr.mxu0 0.0
        %2203 = vmatpush2.msra.mxu0 0.0
        %2204 = vmatprep.subr.mxu0 0.0
        %2205 = vmatpush2.msra.mxu0 0.0
        %2206 = vmatprep.subr.mxu0 0.0
        %2207 = vmatpush2.msra.mxu0 0.0
        %2208 = vmatprep.subr.mxu0 0.0
        %2209 = vmatpush2.msra.mxu0 0.0
        %2210 = vmatprep.subr.mxu0 0.0
        %2211 = vmatpush2.msra.mxu0 0.0
        %2212 = vmatprep.subr.mxu0 0.0
        %2213 = vmatpush2.msra.mxu0 0.0
        %2214 = vmatprep.subr.mxu0 0.0
        %2215 = vmatpush2.msra.mxu0 0.0
        %2216 = vmatprep.subr.mxu0 0.0
        %2217 = vmatpush2.msra.mxu0 0.0
        %2218 = vmatprep.subr.mxu0 0.0
        %2219 = vmatpush2.msra.mxu0 0.0
        %2220 = vmatprep.subr.mxu0 0.0
        %2221 = vmatpush2.msra.mxu0 0.0
        %2222 = vmatprep.subr.mxu0 0.0
        %2223 = vmatpush2.msra.mxu0 0.0
        %2224 = vmatprep.mubr.f32.mxu0 0.0
        %2225 = vmatmul.mubr.f32.gmra.mxu0 %v2155
        %v2226 = vpop.f32.mrf.mxu0
        %v2227 = vadd.f32 0.0, %v2226
        %v2228 = vpop.f32.mrf.mxu0
        %2229 = vmatprep.mubr.f32.mxu0 0.0
        %2230 = vmatmul.mubr.f32.gmra.mxu0 %v2158
        %v2231 = vpop.f32.mrf.mxu0
        %v2232 = vadd.f32 0.0, %v2231
        %v2233 = vpop.f32.mrf.mxu0
        %2234 = vdwg.mxu0
        %v2236 = vsel %vm1424, %v1379, 0
        %v2239 = vsel %vm1424, %v1380, 0
        %2241 = vmatprep.subr.mxu0 0.0
        %2242 = vmatpush1.msra.mxu0 0.0
        %2243 = vmatprep.subr.mxu0 0.0
        %2244 = vmatpush1.msra.mxu0 0.0
        %2245 = vmatprep.subr.mxu0 0.0
        %2246 = vmatpush1.msra.mxu0 0.0
        %2247 = vmatprep.subr.mxu0 0.0
        %2248 = vmatpush1.msra.mxu0 0.0
        %2249 = vmatprep.subr.mxu0 0.0
        %2250 = vmatpush1.msra.mxu0 0.0
        %2251 = vmatprep.subr.mxu0 0.0
        %2252 = vmatpush1.msra.mxu0 0.0
        %2253 = vmatprep.subr.mxu0 0.0
        %2254 = vmatpush1.msra.mxu0 0.0
        %2255 = vmatprep.subr.mxu0 0.0
        %2256 = vmatpush1.msra.mxu0 0.0
        %2257 = vmatprep.subr.mxu0 0.0
        %2258 = vmatpush1.msra.mxu0 0.0
        %2259 = vmatprep.subr.mxu0 0.0
        %2260 = vmatpush1.msra.mxu0 0.0
        %2261 = vmatprep.subr.mxu0 0.0
        %2262 = vmatpush1.msra.mxu0 0.0
        %2263 = vmatprep.subr.mxu0 0.0
        %2264 = vmatpush1.msra.mxu0 0.0
        %2265 = vmatprep.subr.mxu0 0.0
        %2266 = vmatpush1.msra.mxu0 0.0
        %2267 = vmatprep.subr.mxu0 0.0
        %2268 = vmatpush1.msra.mxu0 0.0
        %2269 = vmatprep.subr.mxu0 0.0
        %2270 = vmatpush1.msra.mxu0 %v1413
        %2271 = vmatprep.subr.mxu0 0.0
        %2272 = vmatpush1.msra.mxu0 %v1412
        %2273 = vmatprep.subr.mxu0 0.0
        %2274 = vmatpush2.msra.mxu0 0.0
        %2275 = vmatprep.subr.mxu0 0.0
        %2276 = vmatpush2.msra.mxu0 0.0
        %2277 = vmatprep.subr.mxu0 0.0
        %2278 = vmatpush2.msra.mxu0 0.0
        %2279 = vmatprep.subr.mxu0 0.0
        %2280 = vmatpush2.msra.mxu0 0.0
        %2281 = vmatprep.subr.mxu0 0.0
        %2282 = vmatpush2.msra.mxu0 0.0
        %2283 = vmatprep.subr.mxu0 0.0
        %2284 = vmatpush2.msra.mxu0 0.0
        %2285 = vmatprep.subr.mxu0 0.0
        %2286 = vmatpush2.msra.mxu0 0.0
        %2287 = vmatprep.subr.mxu0 0.0
        %2288 = vmatpush2.msra.mxu0 0.0
        %2289 = vmatprep.subr.mxu0 0.0
        %2290 = vmatpush2.msra.mxu0 0.0
        %2291 = vmatprep.subr.mxu0 0.0
        %2292 = vmatpush2.msra.mxu0 0.0
        %2293 = vmatprep.subr.mxu0 0.0
        %2294 = vmatpush2.msra.mxu0 0.0
        %2295 = vmatprep.subr.mxu0 0.0
        %2296 = vmatpush2.msra.mxu0 0.0
        %2297 = vmatprep.subr.mxu0 0.0
        %2298 = vmatpush2.msra.mxu0 0.0
        %2299 = vmatprep.subr.mxu0 0.0
        %2300 = vmatpush2.msra.mxu0 0.0
        %2301 = vmatprep.subr.mxu0 0.0
        %2302 = vmatpush2.msra.mxu0 0.0
        %2303 = vmatprep.subr.mxu0 0.0
        %2304 = vmatpush2.msra.mxu0 0.0
        %2305 = vmatprep.mubr.f32.mxu0 0.0
        %2306 = vmatmul.mubr.f32.gmra.mxu0 %v2236
        %v2307 = vpop.f32.mrf.mxu0
        %v2308 = vadd.f32 0.0, %v2307
        %v2309 = vpop.f32.mrf.mxu0
        %2310 = vmatprep.mubr.f32.mxu0 0.0
        %2311 = vmatmul.mubr.f32.gmra.mxu0 %v2239
        %v2312 = vpop.f32.mrf.mxu0
        %v2313 = vadd.f32 0.0, %v2312
        %v2314 = vpop.f32.mrf.mxu0
        %2315 = vdwg.mxu0
        %v2317 = vsel %vm1424, %v1381, 0
        %v2320 = vsel %vm1424, %v1382, 0
        %2322 = vmatprep.subr.mxu0 0.0
        %2323 = vmatpush1.msra.mxu0 0.0
        %2324 = vmatprep.subr.mxu0 0.0
        %2325 = vmatpush1.msra.mxu0 0.0
        %2326 = vmatprep.subr.mxu0 0.0
        %2327 = vmatpush1.msra.mxu0 0.0
        %2328 = vmatprep.subr.mxu0 0.0
        %2329 = vmatpush1.msra.mxu0 0.0
        %2330 = vmatprep.subr.mxu0 0.0
        %2331 = vmatpush1.msra.mxu0 0.0
        %2332 = vmatprep.subr.mxu0 0.0
        %2333 = vmatpush1.msra.mxu0 0.0
        %2334 = vmatprep.subr.mxu0 0.0
        %2335 = vmatpush1.msra.mxu0 0.0
        %2336 = vmatprep.subr.mxu0 0.0
        %2337 = vmatpush1.msra.mxu0 0.0
        %2338 = vmatprep.subr.mxu0 0.0
        %2339 = vmatpush1.msra.mxu0 0.0
        %2340 = vmatprep.subr.mxu0 0.0
        %2341 = vmatpush1.msra.mxu0 0.0
        %2342 = vmatprep.subr.mxu0 0.0
        %2343 = vmatpush1.msra.mxu0 0.0
        %2344 = vmatprep.subr.mxu0 0.0
        %2345 = vmatpush1.msra.mxu0 0.0
        %2346 = vmatprep.subr.mxu0 0.0
        %2347 = vmatpush1.msra.mxu0 0.0
        %2348 = vmatprep.subr.mxu0 0.0
        %2349 = vmatpush1.msra.mxu0 0.0
        %2350 = vmatprep.subr.mxu0 0.0
        %2351 = vmatpush1.msra.mxu0 %v1415
        %2352 = vmatprep.subr.mxu0 0.0
        %2353 = vmatpush1.msra.mxu0 %v1414
        %2354 = vmatprep.subr.mxu0 0.0
        %2355 = vmatpush2.msra.mxu0 0.0
        %2356 = vmatprep.subr.mxu0 0.0
        %2357 = vmatpush2.msra.mxu0 0.0
        %2358 = vmatprep.subr.mxu0 0.0
        %2359 = vmatpush2.msra.mxu0 0.0
        %2360 = vmatprep.subr.mxu0 0.0
        %2361 = vmatpush2.msra.mxu0 0.0
        %2362 = vmatprep.subr.mxu0 0.0
        %2363 = vmatpush2.msra.mxu0 0.0
        %2364 = vmatprep.subr.mxu0 0.0
        %2365 = vmatpush2.msra.mxu0 0.0
        %2366 = vmatprep.subr.mxu0 0.0
        %2367 = vmatpush2.msra.mxu0 0.0
        %2368 = vmatprep.subr.mxu0 0.0
        %2369 = vmatpush2.msra.mxu0 0.0
        %2370 = vmatprep.subr.mxu0 0.0
        %2371 = vmatpush2.msra.mxu0 0.0
        %2372 = vmatprep.subr.mxu0 0.0
        %2373 = vmatpush2.msra.mxu0 0.0
        %2374 = vmatprep.subr.mxu0 0.0
        %2375 = vmatpush2.msra.mxu0 0.0
        %2376 = vmatprep.subr.mxu0 0.0
        %2377 = vmatpush2.msra.mxu0 0.0
        %2378 = vmatprep.subr.mxu0 0.0
        %2379 = vmatpush2.msra.mxu0 0.0
        %2380 = vmatprep.subr.mxu0 0.0
        %2381 = vmatpush2.msra.mxu0 0.0
        %2382 = vmatprep.subr.mxu0 0.0
        %2383 = vmatpush2.msra.mxu0 0.0
        %2384 = vmatprep.subr.mxu0 0.0
        %2385 = vmatpush2.msra.mxu0 0.0
        %2386 = vmatprep.mubr.f32.mxu0 0.0
        %2387 = vmatmul.mubr.f32.gmra.mxu0 %v2317
        %v2388 = vpop.f32.mrf.mxu0
        %v2389 = vadd.f32 0.0, %v2388
        %v2390 = vpop.f32.mrf.mxu0
        %2391 = vmatprep.mubr.f32.mxu0 0.0
        %2392 = vmatmul.mubr.f32.gmra.mxu0 %v2320
        %v2393 = vpop.f32.mrf.mxu0
        %v2394 = vadd.f32 0.0, %v2393
        %v2395 = vpop.f32.mrf.mxu0
        %2396 = vdwg.mxu0
        %v2398 = vsel %vm1424, %v1383, 0
        %v2401 = vsel %vm1424, %v1384, 0
        %2403 = vmatprep.subr.mxu0 0.0
        %2404 = vmatpush1.msra.mxu0 0.0
        %2405 = vmatprep.subr.mxu0 0.0
        %2406 = vmatpush1.msra.mxu0 0.0
        %2407 = vmatprep.subr.mxu0 0.0
        %2408 = vmatpush1.msra.mxu0 0.0
        %2409 = vmatprep.subr.mxu0 0.0
        %2410 = vmatpush1.msra.mxu0 0.0
        %2411 = vmatprep.subr.mxu0 0.0
        %2412 = vmatpush1.msra.mxu0 0.0
        %2413 = vmatprep.subr.mxu0 0.0
        %2414 = vmatpush1.msra.mxu0 0.0
        %2415 = vmatprep.subr.mxu0 0.0
        %2416 = vmatpush1.msra.mxu0 0.0
        %2417 = vmatprep.subr.mxu0 0.0
        %2418 = vmatpush1.msra.mxu0 0.0
        %2419 = vmatprep.subr.mxu0 0.0
        %2420 = vmatpush1.msra.mxu0 0.0
        %2421 = vmatprep.subr.mxu0 0.0
        %2422 = vmatpush1.msra.mxu0 0.0
        %2423 = vmatprep.subr.mxu0 0.0
        %2424 = vmatpush1.msra.mxu0 0.0
        %2425 = vmatprep.subr.mxu0 0.0
        %2426 = vmatpush1.msra.mxu0 0.0
        %2427 = vmatprep.subr.mxu0 0.0
        %2428 = vmatpush1.msra.mxu0 0.0
        %2429 = vmatprep.subr.mxu0 0.0
        %2430 = vmatpush1.msra.mxu0 0.0
        %2431 = vmatprep.subr.mxu0 0.0
        %2432 = vmatpush1.msra.mxu0 %v1417
        %2433 = vmatprep.subr.mxu0 0.0
        %2434 = vmatpush1.msra.mxu0 %v1416
        %2435 = vmatprep.subr.mxu0 0.0
        %2436 = vmatpush2.msra.mxu0 0.0
        %2437 = vmatprep.subr.mxu0 0.0
        %2438 = vmatpush2.msra.mxu0 0.0
        %2439 = vmatprep.subr.mxu0 0.0
        %2440 = vmatpush2.msra.mxu0 0.0
        %2441 = vmatprep.subr.mxu0 0.0
        %2442 = vmatpush2.msra.mxu0 0.0
        %2443 = vmatprep.subr.mxu0 0.0
        %2444 = vmatpush2.msra.mxu0 0.0
        %2445 = vmatprep.subr.mxu0 0.0
        %2446 = vmatpush2.msra.mxu0 0.0
        %2447 = vmatprep.subr.mxu0 0.0
        %2448 = vmatpush2.msra.mxu0 0.0
        %2449 = vmatprep.subr.mxu0 0.0
        %2450 = vmatpush2.msra.mxu0 0.0
        %2451 = vmatprep.subr.mxu0 0.0
        %2452 = vmatpush2.msra.mxu0 0.0
        %2453 = vmatprep.subr.mxu0 0.0
        %2454 = vmatpush2.msra.mxu0 0.0
        %2455 = vmatprep.subr.mxu0 0.0
        %2456 = vmatpush2.msra.mxu0 0.0
        %2457 = vmatprep.subr.mxu0 0.0
        %2458 = vmatpush2.msra.mxu0 0.0
        %2459 = vmatprep.subr.mxu0 0.0
        %2460 = vmatpush2.msra.mxu0 0.0
        %2461 = vmatprep.subr.mxu0 0.0
        %2462 = vmatpush2.msra.mxu0 0.0
        %2463 = vmatprep.subr.mxu0 0.0
        %2464 = vmatpush2.msra.mxu0 0.0
        %2465 = vmatprep.subr.mxu0 0.0
        %2466 = vmatpush2.msra.mxu0 0.0
        %2467 = vmatprep.mubr.f32.mxu0 0.0
        %2468 = vmatmul.mubr.f32.gmra.mxu0 %v2398
        %v2469 = vpop.f32.mrf.mxu0
        %v2470 = vadd.f32 0.0, %v2469
        %v2471 = vpop.f32.mrf.mxu0
        %2472 = vmatprep.mubr.f32.mxu0 0.0
        %2473 = vmatmul.mubr.f32.gmra.mxu0 %v2401
        %v2474 = vpop.f32.mrf.mxu0
        %v2475 = vadd.f32 0.0, %v2474
        %v2476 = vpop.f32.mrf.mxu0
        %2477 = vdwg.mxu0
        %v2479 = vsel %vm1424, %v1385, 0
        %v2482 = vsel %vm1424, %v1386, 0
        %2484 = vmatprep.subr.mxu0 0.0
        %2485 = vmatpush1.msra.mxu0 0.0
        %2486 = vmatprep.subr.mxu0 0.0
        %2487 = vmatpush1.msra.mxu0 0.0
        %2488 = vmatprep.subr.mxu0 0.0
        %2489 = vmatpush1.msra.mxu0 0.0
        %2490 = vmatprep.subr.mxu0 0.0
        %2491 = vmatpush1.msra.mxu0 0.0
        %2492 = vmatprep.subr.mxu0 0.0
        %2493 = vmatpush1.msra.mxu0 0.0
        %2494 = vmatprep.subr.mxu0 0.0
        %2495 = vmatpush1.msra.mxu0 0.0
        %2496 = vmatprep.subr.mxu0 0.0
        %2497 = vmatpush1.msra.mxu0 0.0
        %2498 = vmatprep.subr.mxu0 0.0
        %2499 = vmatpush1.msra.mxu0 0.0
        %2500 = vmatprep.subr.mxu0 0.0
        %2501 = vmatpush1.msra.mxu0 0.0
        %2502 = vmatprep.subr.mxu0 0.0
        %2503 = vmatpush1.msra.mxu0 0.0
        %2504 = vmatprep.subr.mxu0 0.0
        %2505 = vmatpush1.msra.mxu0 0.0
        %2506 = vmatprep.subr.mxu0 0.0
        %2507 = vmatpush1.msra.mxu0 0.0
        %2508 = vmatprep.subr.mxu0 0.0
        %2509 = vmatpush1.msra.mxu0 0.0
        %2510 = vmatprep.subr.mxu0 0.0
        %2511 = vmatpush1.msra.mxu0 0.0
        %2512 = vmatprep.subr.mxu0 0.0
        %2513 = vmatpush1.msra.mxu0 %v1419
        %2514 = vmatprep.subr.mxu0 0.0
        %2515 = vmatpush1.msra.mxu0 %v1418
        %2516 = vmatprep.subr.mxu0 0.0
        %2517 = vmatpush2.msra.mxu0 0.0
        %2518 = vmatprep.subr.mxu0 0.0
        %2519 = vmatpush2.msra.mxu0 0.0
        %2520 = vmatprep.subr.mxu0 0.0
        %2521 = vmatpush2.msra.mxu0 0.0
        %2522 = vmatprep.subr.mxu0 0.0
        %2523 = vmatpush2.msra.mxu0 0.0
        %2524 = vmatprep.subr.mxu0 0.0
        %2525 = vmatpush2.msra.mxu0 0.0
        %2526 = vmatprep.subr.mxu0 0.0
        %2527 = vmatpush2.msra.mxu0 0.0
        %2528 = vmatprep.subr.mxu0 0.0
        %2529 = vmatpush2.msra.mxu0 0.0
        %2530 = vmatprep.subr.mxu0 0.0
        %2531 = vmatpush2.msra.mxu0 0.0
        %2532 = vmatprep.subr.mxu0 0.0
        %2533 = vmatpush2.msra.mxu0 0.0
        %2534 = vmatprep.subr.mxu0 0.0
        %2535 = vmatpush2.msra.mxu0 0.0
        %2536 = vmatprep.subr.mxu0 0.0
        %2537 = vmatpush2.msra.mxu0 0.0
        %2538 = vmatprep.subr.mxu0 0.0
        %2539 = vmatpush2.msra.mxu0 0.0
        %2540 = vmatprep.subr.mxu0 0.0
        %2541 = vmatpush2.msra.mxu0 0.0
        %2542 = vmatprep.subr.mxu0 0.0
        %2543 = vmatpush2.msra.mxu0 0.0
        %2544 = vmatprep.subr.mxu0 0.0
        %2545 = vmatpush2.msra.mxu0 0.0
        %2546 = vmatprep.subr.mxu0 0.0
        %2547 = vmatpush2.msra.mxu0 0.0
        %2548 = vmatprep.mubr.f32.mxu0 0.0
        %2549 = vmatmul.mubr.f32.gmra.mxu0 %v2479
        %v2550 = vpop.f32.mrf.mxu0
        %v2551 = vadd.f32 0.0, %v2550
        %v2552 = vpop.f32.mrf.mxu0
        %2553 = vmatprep.mubr.f32.mxu0 0.0
        %2554 = vmatmul.mubr.f32.gmra.mxu0 %v2482
        %v2555 = vpop.f32.mrf.mxu0
        %v2556 = vadd.f32 0.0, %v2555
        %v2557 = vpop.f32.mrf.mxu0
        %2558 = vdwg.mxu0
        %v2560 = vsel %vm1424, %v1387, 0
        %v2563 = vsel %vm1424, %v1388, 0
        %2565 = vmatprep.subr.mxu0 0.0
        %2566 = vmatpush1.msra.mxu0 0.0
        %2567 = vmatprep.subr.mxu0 0.0
        %2568 = vmatpush1.msra.mxu0 0.0
        %2569 = vmatprep.subr.mxu0 0.0
        %2570 = vmatpush1.msra.mxu0 0.0
        %2571 = vmatprep.subr.mxu0 0.0
        %2572 = vmatpush1.msra.mxu0 0.0
        %2573 = vmatprep.subr.mxu0 0.0
        %2574 = vmatpush1.msra.mxu0 0.0
        %2575 = vmatprep.subr.mxu0 0.0
        %2576 = vmatpush1.msra.mxu0 0.0
        %2577 = vmatprep.subr.mxu0 0.0
        %2578 = vmatpush1.msra.mxu0 0.0
        %2579 = vmatprep.subr.mxu0 0.0
        %2580 = vmatpush1.msra.mxu0 0.0
        %2581 = vmatprep.subr.mxu0 0.0
        %2582 = vmatpush1.msra.mxu0 0.0
        %2583 = vmatprep.subr.mxu0 0.0
        %2584 = vmatpush1.msra.mxu0 0.0
        %2585 = vmatprep.subr.mxu0 0.0
        %2586 = vmatpush1.msra.mxu0 0.0
        %2587 = vmatprep.subr.mxu0 0.0
        %2588 = vmatpush1.msra.mxu0 0.0
        %2589 = vmatprep.subr.mxu0 0.0
        %2590 = vmatpush1.msra.mxu0 0.0
        %2591 = vmatprep.subr.mxu0 0.0
        %2592 = vmatpush1.msra.mxu0 0.0
        %2593 = vmatprep.subr.mxu0 0.0
        %2594 = vmatpush1.msra.mxu0 %v1421
        %2595 = vmatprep.subr.mxu0 0.0
        %2596 = vmatpush1.msra.mxu0 %v1420
        %2597 = vmatprep.subr.mxu0 0.0
        %2598 = vmatpush2.msra.mxu0 0.0
        %2599 = vmatprep.subr.mxu0 0.0
        %2600 = vmatpush2.msra.mxu0 0.0
        %2601 = vmatprep.subr.mxu0 0.0
        %2602 = vmatpush2.msra.mxu0 0.0
        %2603 = vmatprep.subr.mxu0 0.0
        %2604 = vmatpush2.msra.mxu0 0.0
        %2605 = vmatprep.subr.mxu0 0.0
        %2606 = vmatpush2.msra.mxu0 0.0
        %2607 = vmatprep.subr.mxu0 0.0
        %2608 = vmatpush2.msra.mxu0 0.0
        %2609 = vmatprep.subr.mxu0 0.0
        %2610 = vmatpush2.msra.mxu0 0.0
        %2611 = vmatprep.subr.mxu0 0.0
        %2612 = vmatpush2.msra.mxu0 0.0
        %2613 = vmatprep.subr.mxu0 0.0
        %2614 = vmatpush2.msra.mxu0 0.0
        %2615 = vmatprep.subr.mxu0 0.0
        %2616 = vmatpush2.msra.mxu0 0.0
        %2617 = vmatprep.subr.mxu0 0.0
        %2618 = vmatpush2.msra.mxu0 0.0
        %2619 = vmatprep.subr.mxu0 0.0
        %2620 = vmatpush2.msra.mxu0 0.0
        %2621 = vmatprep.subr.mxu0 0.0
        %2622 = vmatpush2.msra.mxu0 0.0
        %2623 = vmatprep.subr.mxu0 0.0
        %2624 = vmatpush2.msra.mxu0 0.0
        %2625 = vmatprep.subr.mxu0 0.0
        %2626 = vmatpush2.msra.mxu0 0.0
        %2627 = vmatprep.subr.mxu0 0.0
        %2628 = vmatpush2.msra.mxu0 0.0
        %2629 = vmatprep.mubr.f32.mxu0 0.0
        %2630 = vmatmul.mubr.f32.gmra.mxu0 %v2560
        %v2631 = vpop.f32.mrf.mxu0
        %v2632 = vadd.f32 0.0, %v2631
        %v2633 = vpop.f32.mrf.mxu0
        %2634 = vmatprep.mubr.f32.mxu0 0.0
        %2635 = vmatmul.mubr.f32.gmra.mxu0 %v2563
        %v2636 = vpop.f32.mrf.mxu0
        %v2637 = vadd.f32 0.0, %v2636
        %v2638 = vpop.f32.mrf.mxu0
        %2639 = vdwg.mxu0
        %v2641 = vsel %vm1424, %v1389, 0
        %v2644 = vsel %vm1424, %v1390, 0
        %2646 = vmatprep.subr.mxu0 0.0
        %2647 = vmatpush1.msra.mxu0 0.0
        %2648 = vmatprep.subr.mxu0 0.0
        %2649 = vmatpush1.msra.mxu0 0.0
        %2650 = vmatprep.subr.mxu0 0.0
        %2651 = vmatpush1.msra.mxu0 0.0
        %2652 = vmatprep.subr.mxu0 0.0
        %2653 = vmatpush1.msra.mxu0 0.0
        %2654 = vmatprep.subr.mxu0 0.0
        %2655 = vmatpush1.msra.mxu0 0.0
        %2656 = vmatprep.subr.mxu0 0.0
        %2657 = vmatpush1.msra.mxu0 0.0
        %2658 = vmatprep.subr.mxu0 0.0
        %2659 = vmatpush1.msra.mxu0 0.0
        %2660 = vmatprep.subr.mxu0 0.0
        %2661 = vmatpush1.msra.mxu0 0.0
        %2662 = vmatprep.subr.mxu0 0.0
        %2663 = vmatpush1.msra.mxu0 0.0
        %2664 = vmatprep.subr.mxu0 0.0
        %2665 = vmatpush1.msra.mxu0 0.0
        %2666 = vmatprep.subr.mxu0 0.0
        %2667 = vmatpush1.msra.mxu0 0.0
        %2668 = vmatprep.subr.mxu0 0.0
        %2669 = vmatpush1.msra.mxu0 0.0
        %2670 = vmatprep.subr.mxu0 0.0
        %2671 = vmatpush1.msra.mxu0 0.0
        %2672 = vmatprep.subr.mxu0 0.0
        %2673 = vmatpush1.msra.mxu0 0.0
        %2674 = vmatprep.subr.mxu0 0.0
        %2675 = vmatpush1.msra.mxu0 %v1423
        %2676 = vmatprep.subr.mxu0 0.0
        %2677 = vmatpush1.msra.mxu0 %v1422
        %2678 = vmatprep.subr.mxu0 0.0
        %2679 = vmatpush2.msra.mxu0 0.0
        %2680 = vmatprep.subr.mxu0 0.0
        %2681 = vmatpush2.msra.mxu0 0.0
        %2682 = vmatprep.subr.mxu0 0.0
        %2683 = vmatpush2.msra.mxu0 0.0
        %2684 = vmatprep.subr.mxu0 0.0
        %2685 = vmatpush2.msra.mxu0 0.0
        %2686 = vmatprep.subr.mxu0 0.0
        %2687 = vmatpush2.msra.mxu0 0.0
        %2688 = vmatprep.subr.mxu0 0.0
        %2689 = vmatpush2.msra.mxu0 0.0
        %2690 = vmatprep.subr.mxu0 0.0
        %2691 = vmatpush2.msra.mxu0 0.0
        %2692 = vmatprep.subr.mxu0 0.0
        %2693 = vmatpush2.msra.mxu0 0.0
        %2694 = vmatprep.subr.mxu0 0.0
        %2695 = vmatpush2.msra.mxu0 0.0
        %2696 = vmatprep.subr.mxu0 0.0
        %2697 = vmatpush2.msra.mxu0 0.0
        %2698 = vmatprep.subr.mxu0 0.0
        %2699 = vmatpush2.msra.mxu0 0.0
        %2700 = vmatprep.subr.mxu0 0.0
        %2701 = vmatpush2.msra.mxu0 0.0
        %2702 = vmatprep.subr.mxu0 0.0
        %2703 = vmatpush2.msra.mxu0 0.0
        %2704 = vmatprep.subr.mxu0 0.0
        %2705 = vmatpush2.msra.mxu0 0.0
        %2706 = vmatprep.subr.mxu0 0.0
        %2707 = vmatpush2.msra.mxu0 0.0
        %2708 = vmatprep.subr.mxu0 0.0
        %2709 = vmatpush2.msra.mxu0 0.0
        %2710 = vmatprep.mubr.f32.mxu0 0.0
        %2711 = vmatmul.mubr.f32.gmra.mxu0 %v2641
        %v2712 = vpop.f32.mrf.mxu0
        %v2713 = vadd.f32 0.0, %v2712
        %v2714 = vpop.f32.mrf.mxu0
        %2715 = vmatprep.mubr.f32.mxu0 0.0
        %2716 = vmatmul.mubr.f32.gmra.mxu0 %v2644
        %v2717 = vpop.f32.mrf.mxu0
        %v2718 = vadd.f32 0.0, %v2717
        %v2719 = vpop.f32.mrf.mxu0
        %2720 = vdwg.mxu0
        %v2721 = vadd.f32 %v1358, %v1375
        %v2722 = vadd.f32 %v1359, %v1376
        %v2723 = vadd.f32 %v1360, %v1377
        %v2724 = vadd.f32 %v1361, %v1378
        %v2725 = vadd.f32 %v1362, %v1379
        %v2726 = vadd.f32 %v1363, %v1380
        %v2727 = vadd.f32 %v1364, %v1381
        %v2728 = vadd.f32 %v1365, %v1382
        %v2729 = vadd.f32 %v1366, %v1383
        %v2730 = vadd.f32 %v1367, %v1384
        %v2731 = vadd.f32 %v1368, %v1385
        %v2732 = vadd.f32 %v1369, %v1386
        %v2733 = vadd.f32 %v1370, %v1387
        %v2734 = vadd.f32 %v1371, %v1388
        %v2735 = vadd.f32 %v1372, %v1389
        %v2736 = vadd.f32 %v1373, %v1390
        %v2737 = vadd.f32 %v1391, %v1408
        %v2738 = vadd.f32 %v1392, %v1409
        %v2739 = vadd.f32 %v1393, %v1410
        %v2740 = vadd.f32 %v1394, %v1411
        %v2741 = vadd.f32 %v1395, %v1412
        %v2742 = vadd.f32 %v1396, %v1413
        %v2743 = vadd.f32 %v1397, %v1414
        %v2744 = vadd.f32 %v1398, %v1415
        %v2745 = vadd.f32 %v1399, %v1416
        %v2746 = vadd.f32 %v1400, %v1417
        %v2747 = vadd.f32 %v1401, %v1418
        %v2748 = vadd.f32 %v1402, %v1419
        %v2749 = vadd.f32 %v1403, %v1420
        %v2750 = vadd.f32 %v1404, %v1421
        %v2751 = vadd.f32 %v1405, %v1422
        %v2752 = vadd.f32 %v1406, %v1423
        %v2754 = vsel %vm1424, %v2721, 0
        %v2757 = vsel %vm1424, %v2722, 0
        %2759 = vmatprep.subr.mxu0 0.0
        %2760 = vmatpush1.msra.mxu0 0.0
        %2761 = vmatprep.subr.mxu0 0.0
        %2762 = vmatpush1.msra.mxu0 0.0
        %2763 = vmatprep.subr.mxu0 0.0
        %2764 = vmatpush1.msra.mxu0 0.0
        %2765 = vmatprep.subr.mxu0 0.0
        %2766 = vmatpush1.msra.mxu0 0.0
        %2767 = vmatprep.subr.mxu0 0.0
        %2768 = vmatpush1.msra.mxu0 0.0
        %2769 = vmatprep.subr.mxu0 0.0
        %2770 = vmatpush1.msra.mxu0 0.0
        %2771 = vmatprep.subr.mxu0 0.0
        %2772 = vmatpush1.msra.mxu0 0.0
        %2773 = vmatprep.subr.mxu0 0.0
        %2774 = vmatpush1.msra.mxu0 0.0
        %2775 = vmatprep.subr.mxu0 0.0
        %2776 = vmatpush1.msra.mxu0 0.0
        %2777 = vmatprep.subr.mxu0 0.0
        %2778 = vmatpush1.msra.mxu0 0.0
        %2779 = vmatprep.subr.mxu0 0.0
        %2780 = vmatpush1.msra.mxu0 0.0
        %2781 = vmatprep.subr.mxu0 0.0
        %2782 = vmatpush1.msra.mxu0 0.0
        %2783 = vmatprep.subr.mxu0 0.0
        %2784 = vmatpush1.msra.mxu0 0.0
        %2785 = vmatprep.subr.mxu0 0.0
        %2786 = vmatpush1.msra.mxu0 0.0
        %2787 = vmatprep.subr.mxu0 0.0
        %2788 = vmatpush1.msra.mxu0 %v2738
        %2789 = vmatprep.subr.mxu0 0.0
        %2790 = vmatpush1.msra.mxu0 %v2737
        %2791 = vmatprep.subr.mxu0 0.0
        %2792 = vmatpush2.msra.mxu0 0.0
        %2793 = vmatprep.subr.mxu0 0.0
        %2794 = vmatpush2.msra.mxu0 0.0
        %2795 = vmatprep.subr.mxu0 0.0
        %2796 = vmatpush2.msra.mxu0 0.0
        %2797 = vmatprep.subr.mxu0 0.0
        %2798 = vmatpush2.msra.mxu0 0.0
        %2799 = vmatprep.subr.mxu0 0.0
        %2800 = vmatpush2.msra.mxu0 0.0
        %2801 = vmatprep.subr.mxu0 0.0
        %2802 = vmatpush2.msra.mxu0 0.0
        %2803 = vmatprep.subr.mxu0 0.0
        %2804 = vmatpush2.msra.mxu0 0.0
        %2805 = vmatprep.subr.mxu0 0.0
        %2806 = vmatpush2.msra.mxu0 0.0
        %2807 = vmatprep.subr.mxu0 0.0
        %2808 = vmatpush2.msra.mxu0 0.0
        %2809 = vmatprep.subr.mxu0 0.0
        %2810 = vmatpush2.msra.mxu0 0.0
        %2811 = vmatprep.subr.mxu0 0.0
        %2812 = vmatpush2.msra.mxu0 0.0
        %2813 = vmatprep.subr.mxu0 0.0
        %2814 = vmatpush2.msra.mxu0 0.0
        %2815 = vmatprep.subr.mxu0 0.0
        %2816 = vmatpush2.msra.mxu0 0.0
        %2817 = vmatprep.subr.mxu0 0.0
        %2818 = vmatpush2.msra.mxu0 0.0
        %2819 = vmatprep.subr.mxu0 0.0
        %2820 = vmatpush2.msra.mxu0 0.0
        %2821 = vmatprep.subr.mxu0 0.0
        %2822 = vmatpush2.msra.mxu0 0.0
        %2823 = vmatprep.mubr.f32.mxu0 0.0
        %2824 = vmatmul.mubr.f32.gmra.mxu0 %v2754
        %v2825 = vpop.f32.mrf.mxu0
        %v2826 = vadd.f32 0.0, %v2825
        %v2827 = vpop.f32.mrf.mxu0
        %2828 = vmatprep.mubr.f32.mxu0 0.0
        %2829 = vmatmul.mubr.f32.gmra.mxu0 %v2757
        %v2830 = vpop.f32.mrf.mxu0
        %v2831 = vadd.f32 0.0, %v2830
        %v2832 = vpop.f32.mrf.mxu0
        %2833 = vdwg.mxu0
        %v2835 = vsel %vm1424, %v2723, 0
        %v2838 = vsel %vm1424, %v2724, 0
        %2840 = vmatprep.subr.mxu0 0.0
        %2841 = vmatpush1.msra.mxu0 0.0
        %2842 = vmatprep.subr.mxu0 0.0
        %2843 = vmatpush1.msra.mxu0 0.0
        %2844 = vmatprep.subr.mxu0 0.0
        %2845 = vmatpush1.msra.mxu0 0.0
        %2846 = vmatprep.subr.mxu0 0.0
        %2847 = vmatpush1.msra.mxu0 0.0
        %2848 = vmatprep.subr.mxu0 0.0
        %2849 = vmatpush1.msra.mxu0 0.0
        %2850 = vmatprep.subr.mxu0 0.0
        %2851 = vmatpush1.msra.mxu0 0.0
        %2852 = vmatprep.subr.mxu0 0.0
        %2853 = vmatpush1.msra.mxu0 0.0
        %2854 = vmatprep.subr.mxu0 0.0
        %2855 = vmatpush1.msra.mxu0 0.0
        %2856 = vmatprep.subr.mxu0 0.0
        %2857 = vmatpush1.msra.mxu0 0.0
        %2858 = vmatprep.subr.mxu0 0.0
        %2859 = vmatpush1.msra.mxu0 0.0
        %2860 = vmatprep.subr.mxu0 0.0
        %2861 = vmatpush1.msra.mxu0 0.0
        %2862 = vmatprep.subr.mxu0 0.0
        %2863 = vmatpush1.msra.mxu0 0.0
        %2864 = vmatprep.subr.mxu0 0.0
        %2865 = vmatpush1.msra.mxu0 0.0
        %2866 = vmatprep.subr.mxu0 0.0
        %2867 = vmatpush1.msra.mxu0 0.0
        %2868 = vmatprep.subr.mxu0 0.0
        %2869 = vmatpush1.msra.mxu0 %v2740
        %2870 = vmatprep.subr.mxu0 0.0
        %2871 = vmatpush1.msra.mxu0 %v2739
        %2872 = vmatprep.subr.mxu0 0.0
        %2873 = vmatpush2.msra.mxu0 0.0
        %2874 = vmatprep.subr.mxu0 0.0
        %2875 = vmatpush2.msra.mxu0 0.0
        %2876 = vmatprep.subr.mxu0 0.0
        %2877 = vmatpush2.msra.mxu0 0.0
        %2878 = vmatprep.subr.mxu0 0.0
        %2879 = vmatpush2.msra.mxu0 0.0
        %2880 = vmatprep.subr.mxu0 0.0
        %2881 = vmatpush2.msra.mxu0 0.0
        %2882 = vmatprep.subr.mxu0 0.0
        %2883 = vmatpush2.msra.mxu0 0.0
        %2884 = vmatprep.subr.mxu0 0.0
        %2885 = vmatpush2.msra.mxu0 0.0
        %2886 = vmatprep.subr.mxu0 0.0
        %2887 = vmatpush2.msra.mxu0 0.0
        %2888 = vmatprep.subr.mxu0 0.0
        %2889 = vmatpush2.msra.mxu0 0.0
        %2890 = vmatprep.subr.mxu0 0.0
        %2891 = vmatpush2.msra.mxu0 0.0
        %2892 = vmatprep.subr.mxu0 0.0
        %2893 = vmatpush2.msra.mxu0 0.0
        %2894 = vmatprep.subr.mxu0 0.0
        %2895 = vmatpush2.msra.mxu0 0.0
        %2896 = vmatprep.subr.mxu0 0.0
        %2897 = vmatpush2.msra.mxu0 0.0
        %2898 = vmatprep.subr.mxu0 0.0
        %2899 = vmatpush2.msra.mxu0 0.0
        %2900 = vmatprep.subr.mxu0 0.0
        %2901 = vmatpush2.msra.mxu0 0.0
        %2902 = vmatprep.subr.mxu0 0.0
        %2903 = vmatpush2.msra.mxu0 0.0
        %2904 = vmatprep.mubr.f32.mxu0 0.0
        %2905 = vmatmul.mubr.f32.gmra.mxu0 %v2835
        %v2906 = vpop.f32.mrf.mxu0
        %v2907 = vadd.f32 0.0, %v2906
        %v2908 = vpop.f32.mrf.mxu0
        %2909 = vmatprep.mubr.f32.mxu0 0.0
        %2910 = vmatmul.mubr.f32.gmra.mxu0 %v2838
        %v2911 = vpop.f32.mrf.mxu0
        %v2912 = vadd.f32 0.0, %v2911
        %v2913 = vpop.f32.mrf.mxu0
        %2914 = vdwg.mxu0
        %v2916 = vsel %vm1424, %v2725, 0
        %v2919 = vsel %vm1424, %v2726, 0
        %2921 = vmatprep.subr.mxu0 0.0
        %2922 = vmatpush1.msra.mxu0 0.0
        %2923 = vmatprep.subr.mxu0 0.0
        %2924 = vmatpush1.msra.mxu0 0.0
        %2925 = vmatprep.subr.mxu0 0.0
        %2926 = vmatpush1.msra.mxu0 0.0
        %2927 = vmatprep.subr.mxu0 0.0
        %2928 = vmatpush1.msra.mxu0 0.0
        %2929 = vmatprep.subr.mxu0 0.0
        %2930 = vmatpush1.msra.mxu0 0.0
        %2931 = vmatprep.subr.mxu0 0.0
        %2932 = vmatpush1.msra.mxu0 0.0
        %2933 = vmatprep.subr.mxu0 0.0
        %2934 = vmatpush1.msra.mxu0 0.0
        %2935 = vmatprep.subr.mxu0 0.0
        %2936 = vmatpush1.msra.mxu0 0.0
        %2937 = vmatprep.subr.mxu0 0.0
        %2938 = vmatpush1.msra.mxu0 0.0
        %2939 = vmatprep.subr.mxu0 0.0
        %2940 = vmatpush1.msra.mxu0 0.0
        %2941 = vmatprep.subr.mxu0 0.0
        %2942 = vmatpush1.msra.mxu0 0.0
        %2943 = vmatprep.subr.mxu0 0.0
        %2944 = vmatpush1.msra.mxu0 0.0
        %2945 = vmatprep.subr.mxu0 0.0
        %2946 = vmatpush1.msra.mxu0 0.0
        %2947 = vmatprep.subr.mxu0 0.0
        %2948 = vmatpush1.msra.mxu0 0.0
        %2949 = vmatprep.subr.mxu0 0.0
        %2950 = vmatpush1.msra.mxu0 %v2742
        %2951 = vmatprep.subr.mxu0 0.0
        %2952 = vmatpush1.msra.mxu0 %v2741
        %2953 = vmatprep.subr.mxu0 0.0
        %2954 = vmatpush2.msra.mxu0 0.0
        %2955 = vmatprep.subr.mxu0 0.0
        %2956 = vmatpush2.msra.mxu0 0.0
        %2957 = vmatprep.subr.mxu0 0.0
        %2958 = vmatpush2.msra.mxu0 0.0
        %2959 = vmatprep.subr.mxu0 0.0
        %2960 = vmatpush2.msra.mxu0 0.0
        %2961 = vmatprep.subr.mxu0 0.0
        %2962 = vmatpush2.msra.mxu0 0.0
        %2963 = vmatprep.subr.mxu0 0.0
        %2964 = vmatpush2.msra.mxu0 0.0
        %2965 = vmatprep.subr.mxu0 0.0
        %2966 = vmatpush2.msra.mxu0 0.0
        %2967 = vmatprep.subr.mxu0 0.0
        %2968 = vmatpush2.msra.mxu0 0.0
        %2969 = vmatprep.subr.mxu0 0.0
        %2970 = vmatpush2.msra.mxu0 0.0
        %2971 = vmatprep.subr.mxu0 0.0
        %2972 = vmatpush2.msra.mxu0 0.0
        %2973 = vmatprep.subr.mxu0 0.0
        %2974 = vmatpush2.msra.mxu0 0.0
        %2975 = vmatprep.subr.mxu0 0.0
        %2976 = vmatpush2.msra.mxu0 0.0
        %2977 = vmatprep.subr.mxu0 0.0
        %2978 = vmatpush2.msra.mxu0 0.0
        %2979 = vmatprep.subr.mxu0 0.0
        %2980 = vmatpush2.msra.mxu0 0.0
        %2981 = vmatprep.subr.mxu0 0.0
        %2982 = vmatpush2.msra.mxu0 0.0
        %2983 = vmatprep.subr.mxu0 0.0
        %2984 = vmatpush2.msra.mxu0 0.0
        %2985 = vmatprep.mubr.f32.mxu0 0.0
        %2986 = vmatmul.mubr.f32.gmra.mxu0 %v2916
        %v2987 = vpop.f32.mrf.mxu0
        %v2988 = vadd.f32 0.0, %v2987
        %v2989 = vpop.f32.mrf.mxu0
        %2990 = vmatprep.mubr.f32.mxu0 0.0
        %2991 = vmatmul.mubr.f32.gmra.mxu0 %v2919
        %v2992 = vpop.f32.mrf.mxu0
        %v2993 = vadd.f32 0.0, %v2992
        %v2994 = vpop.f32.mrf.mxu0
        %2995 = vdwg.mxu0
        %v2997 = vsel %vm1424, %v2727, 0
        %v3000 = vsel %vm1424, %v2728, 0
        %3002 = vmatprep.subr.mxu0 0.0
        %3003 = vmatpush1.msra.mxu0 0.0
        %3004 = vmatprep.subr.mxu0 0.0
        %3005 = vmatpush1.msra.mxu0 0.0
        %3006 = vmatprep.subr.mxu0 0.0
        %3007 = vmatpush1.msra.mxu0 0.0
        %3008 = vmatprep.subr.mxu0 0.0
        %3009 = vmatpush1.msra.mxu0 0.0
        %3010 = vmatprep.subr.mxu0 0.0
        %3011 = vmatpush1.msra.mxu0 0.0
        %3012 = vmatprep.subr.mxu0 0.0
        %3013 = vmatpush1.msra.mxu0 0.0
        %3014 = vmatprep.subr.mxu0 0.0
        %3015 = vmatpush1.msra.mxu0 0.0
        %3016 = vmatprep.subr.mxu0 0.0
        %3017 = vmatpush1.msra.mxu0 0.0
        %3018 = vmatprep.subr.mxu0 0.0
        %3019 = vmatpush1.msra.mxu0 0.0
        %3020 = vmatprep.subr.mxu0 0.0
        %3021 = vmatpush1.msra.mxu0 0.0
        %3022 = vmatprep.subr.mxu0 0.0
        %3023 = vmatpush1.msra.mxu0 0.0
        %3024 = vmatprep.subr.mxu0 0.0
        %3025 = vmatpush1.msra.mxu0 0.0
        %3026 = vmatprep.subr.mxu0 0.0
        %3027 = vmatpush1.msra.mxu0 0.0
        %3028 = vmatprep.subr.mxu0 0.0
        %3029 = vmatpush1.msra.mxu0 0.0
        %3030 = vmatprep.subr.mxu0 0.0
        %3031 = vmatpush1.msra.mxu0 %v2744
        %3032 = vmatprep.subr.mxu0 0.0
        %3033 = vmatpush1.msra.mxu0 %v2743
        %3034 = vmatprep.subr.mxu0 0.0
        %3035 = vmatpush2.msra.mxu0 0.0
        %3036 = vmatprep.subr.mxu0 0.0
        %3037 = vmatpush2.msra.mxu0 0.0
        %3038 = vmatprep.subr.mxu0 0.0
        %3039 = vmatpush2.msra.mxu0 0.0
        %3040 = vmatprep.subr.mxu0 0.0
        %3041 = vmatpush2.msra.mxu0 0.0
        %3042 = vmatprep.subr.mxu0 0.0
        %3043 = vmatpush2.msra.mxu0 0.0
        %3044 = vmatprep.subr.mxu0 0.0
        %3045 = vmatpush2.msra.mxu0 0.0
        %3046 = vmatprep.subr.mxu0 0.0
        %3047 = vmatpush2.msra.mxu0 0.0
        %3048 = vmatprep.subr.mxu0 0.0
        %3049 = vmatpush2.msra.mxu0 0.0
        %3050 = vmatprep.subr.mxu0 0.0
        %3051 = vmatpush2.msra.mxu0 0.0
        %3052 = vmatprep.subr.mxu0 0.0
        %3053 = vmatpush2.msra.mxu0 0.0
        %3054 = vmatprep.subr.mxu0 0.0
        %3055 = vmatpush2.msra.mxu0 0.0
        %3056 = vmatprep.subr.mxu0 0.0
        %3057 = vmatpush2.msra.mxu0 0.0
        %3058 = vmatprep.subr.mxu0 0.0
        %3059 = vmatpush2.msra.mxu0 0.0
        %3060 = vmatprep.subr.mxu0 0.0
        %3061 = vmatpush2.msra.mxu0 0.0
        %3062 = vmatprep.subr.mxu0 0.0
        %3063 = vmatpush2.msra.mxu0 0.0
        %3064 = vmatprep.subr.mxu0 0.0
        %3065 = vmatpush2.msra.mxu0 0.0
        %3066 = vmatprep.mubr.f32.mxu0 0.0
        %3067 = vmatmul.mubr.f32.gmra.mxu0 %v2997
        %v3068 = vpop.f32.mrf.mxu0
        %v3069 = vadd.f32 0.0, %v3068
        %v3070 = vpop.f32.mrf.mxu0
        %3071 = vmatprep.mubr.f32.mxu0 0.0
        %3072 = vmatmul.mubr.f32.gmra.mxu0 %v3000
        %v3073 = vpop.f32.mrf.mxu0
        %v3074 = vadd.f32 0.0, %v3073
        %v3075 = vpop.f32.mrf.mxu0
        %3076 = vdwg.mxu0
        %v3078 = vsel %vm1424, %v2729, 0
        %v3081 = vsel %vm1424, %v2730, 0
        %3083 = vmatprep.subr.mxu0 0.0
        %3084 = vmatpush1.msra.mxu0 0.0
        %3085 = vmatprep.subr.mxu0 0.0
        %3086 = vmatpush1.msra.mxu0 0.0
        %3087 = vmatprep.subr.mxu0 0.0
        %3088 = vmatpush1.msra.mxu0 0.0
        %3089 = vmatprep.subr.mxu0 0.0
        %3090 = vmatpush1.msra.mxu0 0.0
        %3091 = vmatprep.subr.mxu0 0.0
        %3092 = vmatpush1.msra.mxu0 0.0
        %3093 = vmatprep.subr.mxu0 0.0
        %3094 = vmatpush1.msra.mxu0 0.0
        %3095 = vmatprep.subr.mxu0 0.0
        %3096 = vmatpush1.msra.mxu0 0.0
        %3097 = vmatprep.subr.mxu0 0.0
        %3098 = vmatpush1.msra.mxu0 0.0
        %3099 = vmatprep.subr.mxu0 0.0
        %3100 = vmatpush1.msra.mxu0 0.0
        %3101 = vmatprep.subr.mxu0 0.0
        %3102 = vmatpush1.msra.mxu0 0.0
        %3103 = vmatprep.subr.mxu0 0.0
        %3104 = vmatpush1.msra.mxu0 0.0
        %3105 = vmatprep.subr.mxu0 0.0
        %3106 = vmatpush1.msra.mxu0 0.0
        %3107 = vmatprep.subr.mxu0 0.0
        %3108 = vmatpush1.msra.mxu0 0.0
        %3109 = vmatprep.subr.mxu0 0.0
        %3110 = vmatpush1.msra.mxu0 0.0
        %3111 = vmatprep.subr.mxu0 0.0
        %3112 = vmatpush1.msra.mxu0 %v2746
        %3113 = vmatprep.subr.mxu0 0.0
        %3114 = vmatpush1.msra.mxu0 %v2745
        %3115 = vmatprep.subr.mxu0 0.0
        %3116 = vmatpush2.msra.mxu0 0.0
        %3117 = vmatprep.subr.mxu0 0.0
        %3118 = vmatpush2.msra.mxu0 0.0
        %3119 = vmatprep.subr.mxu0 0.0
        %3120 = vmatpush2.msra.mxu0 0.0
        %3121 = vmatprep.subr.mxu0 0.0
        %3122 = vmatpush2.msra.mxu0 0.0
        %3123 = vmatprep.subr.mxu0 0.0
        %3124 = vmatpush2.msra.mxu0 0.0
        %3125 = vmatprep.subr.mxu0 0.0
        %3126 = vmatpush2.msra.mxu0 0.0
        %3127 = vmatprep.subr.mxu0 0.0
        %3128 = vmatpush2.msra.mxu0 0.0
        %3129 = vmatprep.subr.mxu0 0.0
        %3130 = vmatpush2.msra.mxu0 0.0
        %3131 = vmatprep.subr.mxu0 0.0
        %3132 = vmatpush2.msra.mxu0 0.0
        %3133 = vmatprep.subr.mxu0 0.0
        %3134 = vmatpush2.msra.mxu0 0.0
        %3135 = vmatprep.subr.mxu0 0.0
        %3136 = vmatpush2.msra.mxu0 0.0
        %3137 = vmatprep.subr.mxu0 0.0
        %3138 = vmatpush2.msra.mxu0 0.0
        %3139 = vmatprep.subr.mxu0 0.0
        %3140 = vmatpush2.msra.mxu0 0.0
        %3141 = vmatprep.subr.mxu0 0.0
        %3142 = vmatpush2.msra.mxu0 0.0
        %3143 = vmatprep.subr.mxu0 0.0
        %3144 = vmatpush2.msra.mxu0 0.0
        %3145 = vmatprep.subr.mxu0 0.0
        %3146 = vmatpush2.msra.mxu0 0.0
        %3147 = vmatprep.mubr.f32.mxu0 0.0
        %3148 = vmatmul.mubr.f32.gmra.mxu0 %v3078
        %v3149 = vpop.f32.mrf.mxu0
        %v3150 = vadd.f32 0.0, %v3149
        %v3151 = vpop.f32.mrf.mxu0
        %3152 = vmatprep.mubr.f32.mxu0 0.0
        %3153 = vmatmul.mubr.f32.gmra.mxu0 %v3081
        %v3154 = vpop.f32.mrf.mxu0
        %v3155 = vadd.f32 0.0, %v3154
        %v3156 = vpop.f32.mrf.mxu0
        %3157 = vdwg.mxu0
        %v3159 = vsel %vm1424, %v2731, 0
        %v3162 = vsel %vm1424, %v2732, 0
        %3164 = vmatprep.subr.mxu0 0.0
        %3165 = vmatpush1.msra.mxu0 0.0
        %3166 = vmatprep.subr.mxu0 0.0
        %3167 = vmatpush1.msra.mxu0 0.0
        %3168 = vmatprep.subr.mxu0 0.0
        %3169 = vmatpush1.msra.mxu0 0.0
        %3170 = vmatprep.subr.mxu0 0.0
        %3171 = vmatpush1.msra.mxu0 0.0
        %3172 = vmatprep.subr.mxu0 0.0
        %3173 = vmatpush1.msra.mxu0 0.0
        %3174 = vmatprep.subr.mxu0 0.0
        %3175 = vmatpush1.msra.mxu0 0.0
        %3176 = vmatprep.subr.mxu0 0.0
        %3177 = vmatpush1.msra.mxu0 0.0
        %3178 = vmatprep.subr.mxu0 0.0
        %3179 = vmatpush1.msra.mxu0 0.0
        %3180 = vmatprep.subr.mxu0 0.0
        %3181 = vmatpush1.msra.mxu0 0.0
        %3182 = vmatprep.subr.mxu0 0.0
        %3183 = vmatpush1.msra.mxu0 0.0
        %3184 = vmatprep.subr.mxu0 0.0
        %3185 = vmatpush1.msra.mxu0 0.0
        %3186 = vmatprep.subr.mxu0 0.0
        %3187 = vmatpush1.msra.mxu0 0.0
        %3188 = vmatprep.subr.mxu0 0.0
        %3189 = vmatpush1.msra.mxu0 0.0
        %3190 = vmatprep.subr.mxu0 0.0
        %3191 = vmatpush1.msra.mxu0 0.0
        %3192 = vmatprep.subr.mxu0 0.0
        %3193 = vmatpush1.msra.mxu0 %v2748
        %3194 = vmatprep.subr.mxu0 0.0
        %3195 = vmatpush1.msra.mxu0 %v2747
        %3196 = vmatprep.subr.mxu0 0.0
        %3197 = vmatpush2.msra.mxu0 0.0
        %3198 = vmatprep.subr.mxu0 0.0
        %3199 = vmatpush2.msra.mxu0 0.0
        %3200 = vmatprep.subr.mxu0 0.0
        %3201 = vmatpush2.msra.mxu0 0.0
        %3202 = vmatprep.subr.mxu0 0.0
        %3203 = vmatpush2.msra.mxu0 0.0
        %3204 = vmatprep.subr.mxu0 0.0
        %3205 = vmatpush2.msra.mxu0 0.0
        %3206 = vmatprep.subr.mxu0 0.0
        %3207 = vmatpush2.msra.mxu0 0.0
        %3208 = vmatprep.subr.mxu0 0.0
        %3209 = vmatpush2.msra.mxu0 0.0
        %3210 = vmatprep.subr.mxu0 0.0
        %3211 = vmatpush2.msra.mxu0 0.0
        %3212 = vmatprep.subr.mxu0 0.0
        %3213 = vmatpush2.msra.mxu0 0.0
        %3214 = vmatprep.subr.mxu0 0.0
        %3215 = vmatpush2.msra.mxu0 0.0
        %3216 = vmatprep.subr.mxu0 0.0
        %3217 = vmatpush2.msra.mxu0 0.0
        %3218 = vmatprep.subr.mxu0 0.0
        %3219 = vmatpush2.msra.mxu0 0.0
        %3220 = vmatprep.subr.mxu0 0.0
        %3221 = vmatpush2.msra.mxu0 0.0
        %3222 = vmatprep.subr.mxu0 0.0
        %3223 = vmatpush2.msra.mxu0 0.0
        %3224 = vmatprep.subr.mxu0 0.0
        %3225 = vmatpush2.msra.mxu0 0.0
        %3226 = vmatprep.subr.mxu0 0.0
        %3227 = vmatpush2.msra.mxu0 0.0
        %3228 = vmatprep.mubr.f32.mxu0 0.0
        %3229 = vmatmul.mubr.f32.gmra.mxu0 %v3159
        %v3230 = vpop.f32.mrf.mxu0
        %v3231 = vadd.f32 0.0, %v3230
        %v3232 = vpop.f32.mrf.mxu0
        %3233 = vmatprep.mubr.f32.mxu0 0.0
        %3234 = vmatmul.mubr.f32.gmra.mxu0 %v3162
        %v3235 = vpop.f32.mrf.mxu0
        %v3236 = vadd.f32 0.0, %v3235
        %v3237 = vpop.f32.mrf.mxu0
        %3238 = vdwg.mxu0
        %v3240 = vsel %vm1424, %v2733, 0
        %v3243 = vsel %vm1424, %v2734, 0
        %3245 = vmatprep.subr.mxu0 0.0
        %3246 = vmatpush1.msra.mxu0 0.0
        %3247 = vmatprep.subr.mxu0 0.0
        %3248 = vmatpush1.msra.mxu0 0.0
        %3249 = vmatprep.subr.mxu0 0.0
        %3250 = vmatpush1.msra.mxu0 0.0
        %3251 = vmatprep.subr.mxu0 0.0
        %3252 = vmatpush1.msra.mxu0 0.0
        %3253 = vmatprep.subr.mxu0 0.0
        %3254 = vmatpush1.msra.mxu0 0.0
        %3255 = vmatprep.subr.mxu0 0.0
        %3256 = vmatpush1.msra.mxu0 0.0
        %3257 = vmatprep.subr.mxu0 0.0
        %3258 = vmatpush1.msra.mxu0 0.0
        %3259 = vmatprep.subr.mxu0 0.0
        %3260 = vmatpush1.msra.mxu0 0.0
        %3261 = vmatprep.subr.mxu0 0.0
        %3262 = vmatpush1.msra.mxu0 0.0
        %3263 = vmatprep.subr.mxu0 0.0
        %3264 = vmatpush1.msra.mxu0 0.0
        %3265 = vmatprep.subr.mxu0 0.0
        %3266 = vmatpush1.msra.mxu0 0.0
        %3267 = vmatprep.subr.mxu0 0.0
        %3268 = vmatpush1.msra.mxu0 0.0
        %3269 = vmatprep.subr.mxu0 0.0
        %3270 = vmatpush1.msra.mxu0 0.0
        %3271 = vmatprep.subr.mxu0 0.0
        %3272 = vmatpush1.msra.mxu0 0.0
        %3273 = vmatprep.subr.mxu0 0.0
        %3274 = vmatpush1.msra.mxu0 %v2750
        %3275 = vmatprep.subr.mxu0 0.0
        %3276 = vmatpush1.msra.mxu0 %v2749
        %3277 = vmatprep.subr.mxu0 0.0
        %3278 = vmatpush2.msra.mxu0 0.0
        %3279 = vmatprep.subr.mxu0 0.0
        %3280 = vmatpush2.msra.mxu0 0.0
        %3281 = vmatprep.subr.mxu0 0.0
        %3282 = vmatpush2.msra.mxu0 0.0
        %3283 = vmatprep.subr.mxu0 0.0
        %3284 = vmatpush2.msra.mxu0 0.0
        %3285 = vmatprep.subr.mxu0 0.0
        %3286 = vmatpush2.msra.mxu0 0.0
        %3287 = vmatprep.subr.mxu0 0.0
        %3288 = vmatpush2.msra.mxu0 0.0
        %3289 = vmatprep.subr.mxu0 0.0
        %3290 = vmatpush2.msra.mxu0 0.0
        %3291 = vmatprep.subr.mxu0 0.0
        %3292 = vmatpush2.msra.mxu0 0.0
        %3293 = vmatprep.subr.mxu0 0.0
        %3294 = vmatpush2.msra.mxu0 0.0
        %3295 = vmatprep.subr.mxu0 0.0
        %3296 = vmatpush2.msra.mxu0 0.0
        %3297 = vmatprep.subr.mxu0 0.0
        %3298 = vmatpush2.msra.mxu0 0.0
        %3299 = vmatprep.subr.mxu0 0.0
        %3300 = vmatpush2.msra.mxu0 0.0
        %3301 = vmatprep.subr.mxu0 0.0
        %3302 = vmatpush2.msra.mxu0 0.0
        %3303 = vmatprep.subr.mxu0 0.0
        %3304 = vmatpush2.msra.mxu0 0.0
        %3305 = vmatprep.subr.mxu0 0.0
        %3306 = vmatpush2.msra.mxu0 0.0
        %3307 = vmatprep.subr.mxu0 0.0
        %3308 = vmatpush2.msra.mxu0 0.0
        %3309 = vmatprep.mubr.f32.mxu0 0.0
        %3310 = vmatmul.mubr.f32.gmra.mxu0 %v3240
        %v3311 = vpop.f32.mrf.mxu0
        %v3312 = vadd.f32 0.0, %v3311
        %v3313 = vpop.f32.mrf.mxu0
        %3314 = vmatprep.mubr.f32.mxu0 0.0
        %3315 = vmatmul.mubr.f32.gmra.mxu0 %v3243
        %v3316 = vpop.f32.mrf.mxu0
        %v3317 = vadd.f32 0.0, %v3316
        %v3318 = vpop.f32.mrf.mxu0
        %3319 = vdwg.mxu0
        %v3321 = vsel %vm1424, %v2735, 0
        %v3324 = vsel %vm1424, %v2736, 0
        %3326 = vmatprep.subr.mxu0 0.0
        %3327 = vmatpush1.msra.mxu0 0.0
        %3328 = vmatprep.subr.mxu0 0.0
        %3329 = vmatpush1.msra.mxu0 0.0
        %3330 = vmatprep.subr.mxu0 0.0
        %3331 = vmatpush1.msra.mxu0 0.0
        %3332 = vmatprep.subr.mxu0 0.0
        %3333 = vmatpush1.msra.mxu0 0.0
        %3334 = vmatprep.subr.mxu0 0.0
        %3335 = vmatpush1.msra.mxu0 0.0
        %3336 = vmatprep.subr.mxu0 0.0
        %3337 = vmatpush1.msra.mxu0 0.0
        %3338 = vmatprep.subr.mxu0 0.0
        %3339 = vmatpush1.msra.mxu0 0.0
        %3340 = vmatprep.subr.mxu0 0.0
        %3341 = vmatpush1.msra.mxu0 0.0
        %3342 = vmatprep.subr.mxu0 0.0
        %3343 = vmatpush1.msra.mxu0 0.0
        %3344 = vmatprep.subr.mxu0 0.0
        %3345 = vmatpush1.msra.mxu0 0.0
        %3346 = vmatprep.subr.mxu0 0.0
        %3347 = vmatpush1.msra.mxu0 0.0
        %3348 = vmatprep.subr.mxu0 0.0
        %3349 = vmatpush1.msra.mxu0 0.0
        %3350 = vmatprep.subr.mxu0 0.0
        %3351 = vmatpush1.msra.mxu0 0.0
        %3352 = vmatprep.subr.mxu0 0.0
        %3353 = vmatpush1.msra.mxu0 0.0
        %3354 = vmatprep.subr.mxu0 0.0
        %3355 = vmatpush1.msra.mxu0 %v2752
        %3356 = vmatprep.subr.mxu0 0.0
        %3357 = vmatpush1.msra.mxu0 %v2751
        %3358 = vmatprep.subr.mxu0 0.0
        %3359 = vmatpush2.msra.mxu0 0.0
        %3360 = vmatprep.subr.mxu0 0.0
        %3361 = vmatpush2.msra.mxu0 0.0
        %3362 = vmatprep.subr.mxu0 0.0
        %3363 = vmatpush2.msra.mxu0 0.0
        %3364 = vmatprep.subr.mxu0 0.0
        %3365 = vmatpush2.msra.mxu0 0.0
        %3366 = vmatprep.subr.mxu0 0.0
        %3367 = vmatpush2.msra.mxu0 0.0
        %3368 = vmatprep.subr.mxu0 0.0
        %3369 = vmatpush2.msra.mxu0 0.0
        %3370 = vmatprep.subr.mxu0 0.0
        %3371 = vmatpush2.msra.mxu0 0.0
        %3372 = vmatprep.subr.mxu0 0.0
        %3373 = vmatpush2.msra.mxu0 0.0
        %3374 = vmatprep.subr.mxu0 0.0
        %3375 = vmatpush2.msra.mxu0 0.0
        %3376 = vmatprep.subr.mxu0 0.0
        %3377 = vmatpush2.msra.mxu0 0.0
        %3378 = vmatprep.subr.mxu0 0.0
        %3379 = vmatpush2.msra.mxu0 0.0
        %3380 = vmatprep.subr.mxu0 0.0
        %3381 = vmatpush2.msra.mxu0 0.0
        %3382 = vmatprep.subr.mxu0 0.0
        %3383 = vmatpush2.msra.mxu0 0.0
        %3384 = vmatprep.subr.mxu0 0.0
        %3385 = vmatpush2.msra.mxu0 0.0
        %3386 = vmatprep.subr.mxu0 0.0
        %3387 = vmatpush2.msra.mxu0 0.0
        %3388 = vmatprep.subr.mxu0 0.0
        %3389 = vmatpush2.msra.mxu0 0.0
        %3390 = vmatprep.mubr.f32.mxu0 0.0
        %3391 = vmatmul.mubr.f32.gmra.mxu0 %v3321
        %v3392 = vpop.f32.mrf.mxu0
        %v3393 = vadd.f32 0.0, %v3392
        %v3394 = vpop.f32.mrf.mxu0
        %3395 = vmatprep.mubr.f32.mxu0 0.0
        %3396 = vmatmul.mubr.f32.gmra.mxu0 %v3324
        %v3397 = vpop.f32.mrf.mxu0
        %v3398 = vadd.f32 0.0, %v3397
        %v3399 = vpop.f32.mrf.mxu0
        %3400 = vdwg.mxu0
        %v3401 = vsub.f32 %v1498, %v2146
        %v3402 = vsub.f32 %v1503, %v2151
        %v3403 = vsub.f32 %v1579, %v2227
        %v3404 = vsub.f32 %v1584, %v2232
        %v3405 = vsub.f32 %v1660, %v2308
        %v3406 = vsub.f32 %v1665, %v2313
        %v3407 = vsub.f32 %v1741, %v2389
        %v3408 = vsub.f32 %v1746, %v2394
        %v3409 = vsub.f32 %v1822, %v2470
        %v3410 = vsub.f32 %v1827, %v2475
        %v3411 = vsub.f32 %v1903, %v2551
        %v3412 = vsub.f32 %v1908, %v2556
        %v3413 = vsub.f32 %v1984, %v2632
        %v3414 = vsub.f32 %v1989, %v2637
        %v3415 = vsub.f32 %v2065, %v2713
        %v3416 = vsub.f32 %v2070, %v2718
        %v3417 = vsub.f32 %v2826, %v1498
        %v3418 = vsub.f32 %v2831, %v1503
        %v3419 = vsub.f32 %v2907, %v1579
        %v3420 = vsub.f32 %v2912, %v1584
        %v3421 = vsub.f32 %v2988, %v1660
        %v3422 = vsub.f32 %v2993, %v1665
        %v3423 = vsub.f32 %v3069, %v1741
        %v3424 = vsub.f32 %v3074, %v1746
        %v3425 = vsub.f32 %v3150, %v1822
        %v3426 = vsub.f32 %v3155, %v1827
        %v3427 = vsub.f32 %v3231, %v1903
        %v3428 = vsub.f32 %v3236, %v1908
        %v3429 = vsub.f32 %v3312, %v1984
        %v3430 = vsub.f32 %v3317, %v1989
        %v3431 = vsub.f32 %v3393, %v2065
        %v3432 = vsub.f32 %v3398, %v2070
        %v3433 = vsub.f32 %v3417, %v2146
        %v3434 = vsub.f32 %v3418, %v2151
        %v3435 = vsub.f32 %v3419, %v2227
        %v3436 = vsub.f32 %v3420, %v2232
        %v3437 = vsub.f32 %v3421, %v2308
        %v3438 = vsub.f32 %v3422, %v2313
        %v3439 = vsub.f32 %v3423, %v2389
        %v3440 = vsub.f32 %v3424, %v2394
        %v3441 = vsub.f32 %v3425, %v2470
        %v3442 = vsub.f32 %v3426, %v2475
        %v3443 = vsub.f32 %v3427, %v2551
        %v3444 = vsub.f32 %v3428, %v2556
        %v3445 = vsub.f32 %v3429, %v2632
        %v3446 = vsub.f32 %v3430, %v2637
        %v3447 = vsub.f32 %v3431, %v2713
        %v3448 = vsub.f32 %v3432, %v2718
        %v3450 = vsel %vm1424, %v1323, 0
        %v3453 = vsel %vm1424, %v1324, 0
        %3455 = vmatprep.subr.mxu0 0.0
        %3456 = vmatpush1.msra.mxu0 0.0
        %3457 = vmatprep.subr.mxu0 0.0
        %3458 = vmatpush1.msra.mxu0 0.0
        %3459 = vmatprep.subr.mxu0 0.0
        %3460 = vmatpush1.msra.mxu0 0.0
        %3461 = vmatprep.subr.mxu0 0.0
        %3462 = vmatpush1.msra.mxu0 0.0
        %3463 = vmatprep.subr.mxu0 0.0
        %3464 = vmatpush1.msra.mxu0 0.0
        %3465 = vmatprep.subr.mxu0 0.0
        %3466 = vmatpush1.msra.mxu0 0.0
        %3467 = vmatprep.subr.mxu0 0.0
        %3468 = vmatpush1.msra.mxu0 0.0
        %3469 = vmatprep.subr.mxu0 0.0
        %3470 = vmatpush1.msra.mxu0 0.0
        %3471 = vmatprep.subr.mxu0 0.0
        %3472 = vmatpush1.msra.mxu0 0.0
        %3473 = vmatprep.subr.mxu0 0.0
        %3474 = vmatpush1.msra.mxu0 0.0
        %3475 = vmatprep.subr.mxu0 0.0
        %3476 = vmatpush1.msra.mxu0 0.0
        %3477 = vmatprep.subr.mxu0 0.0
        %3478 = vmatpush1.msra.mxu0 0.0
        %3479 = vmatprep.subr.mxu0 0.0
        %3480 = vmatpush1.msra.mxu0 0.0
        %3481 = vmatprep.subr.mxu0 0.0
        %3482 = vmatpush1.msra.mxu0 0.0
        %3483 = vmatprep.subr.mxu0 0.0
        %3484 = vmatpush1.msra.mxu0 %v3402
        %3485 = vmatprep.subr.mxu0 0.0
        %3486 = vmatpush1.msra.mxu0 %v3401
        %3487 = vmatprep.subr.mxu0 0.0
        %3488 = vmatpush2.msra.mxu0 0.0
        %3489 = vmatprep.subr.mxu0 0.0
        %3490 = vmatpush2.msra.mxu0 0.0
        %3491 = vmatprep.subr.mxu0 0.0
        %3492 = vmatpush2.msra.mxu0 0.0
        %3493 = vmatprep.subr.mxu0 0.0
        %3494 = vmatpush2.msra.mxu0 0.0
        %3495 = vmatprep.subr.mxu0 0.0
        %3496 = vmatpush2.msra.mxu0 0.0
        %3497 = vmatprep.subr.mxu0 0.0
        %3498 = vmatpush2.msra.mxu0 0.0
        %3499 = vmatprep.subr.mxu0 0.0
        %3500 = vmatpush2.msra.mxu0 0.0
        %3501 = vmatprep.subr.mxu0 0.0
        %3502 = vmatpush2.msra.mxu0 0.0
        %3503 = vmatprep.subr.mxu0 0.0
        %3504 = vmatpush2.msra.mxu0 0.0
        %3505 = vmatprep.subr.mxu0 0.0
        %3506 = vmatpush2.msra.mxu0 0.0
        %3507 = vmatprep.subr.mxu0 0.0
        %3508 = vmatpush2.msra.mxu0 0.0
        %3509 = vmatprep.subr.mxu0 0.0
        %3510 = vmatpush2.msra.mxu0 0.0
        %3511 = vmatprep.subr.mxu0 0.0
        %3512 = vmatpush2.msra.mxu0 0.0
        %3513 = vmatprep.subr.mxu0 0.0
        %3514 = vmatpush2.msra.mxu0 0.0
        %3515 = vmatprep.subr.mxu0 0.0
        %3516 = vmatpush2.msra.mxu0 0.0
        %3517 = vmatprep.subr.mxu0 0.0
        %3518 = vmatpush2.msra.mxu0 0.0
        %3519 = vmatprep.mubr.f32.mxu0 0.0
        %3520 = vmatmul.mubr.f32.gmra.mxu0 %v3450
        %v3521 = vpop.f32.mrf.mxu0
        %v3522 = vadd.f32 0.0, %v3521
        %v3523 = vpop.f32.mrf.mxu0
        %3524 = vmatprep.mubr.f32.mxu0 0.0
        %3525 = vmatmul.mubr.f32.gmra.mxu0 %v3453
        %v3526 = vpop.f32.mrf.mxu0
        %v3527 = vadd.f32 0.0, %v3526
        %v3528 = vpop.f32.mrf.mxu0
        %3529 = vdwg.mxu0
        %v3531 = vsel %vm1424, %v1325, 0
        %v3534 = vsel %vm1424, %v1326, 0
        %3536 = vmatprep.subr.mxu0 0.0
        %3537 = vmatpush1.msra.mxu0 0.0
        %3538 = vmatprep.subr.mxu0 0.0
        %3539 = vmatpush1.msra.mxu0 0.0
        %3540 = vmatprep.subr.mxu0 0.0
        %3541 = vmatpush1.msra.mxu0 0.0
        %3542 = vmatprep.subr.mxu0 0.0
        %3543 = vmatpush1.msra.mxu0 0.0
        %3544 = vmatprep.subr.mxu0 0.0
        %3545 = vmatpush1.msra.mxu0 0.0
        %3546 = vmatprep.subr.mxu0 0.0
        %3547 = vmatpush1.msra.mxu0 0.0
        %3548 = vmatprep.subr.mxu0 0.0
        %3549 = vmatpush1.msra.mxu0 0.0
        %3550 = vmatprep.subr.mxu0 0.0
        %3551 = vmatpush1.msra.mxu0 0.0
        %3552 = vmatprep.subr.mxu0 0.0
        %3553 = vmatpush1.msra.mxu0 0.0
        %3554 = vmatprep.subr.mxu0 0.0
        %3555 = vmatpush1.msra.mxu0 0.0
        %3556 = vmatprep.subr.mxu0 0.0
        %3557 = vmatpush1.msra.mxu0 0.0
        %3558 = vmatprep.subr.mxu0 0.0
        %3559 = vmatpush1.msra.mxu0 0.0
        %3560 = vmatprep.subr.mxu0 0.0
        %3561 = vmatpush1.msra.mxu0 0.0
        %3562 = vmatprep.subr.mxu0 0.0
        %3563 = vmatpush1.msra.mxu0 0.0
        %3564 = vmatprep.subr.mxu0 0.0
        %3565 = vmatpush1.msra.mxu0 %v3404
        %3566 = vmatprep.subr.mxu0 0.0
        %3567 = vmatpush1.msra.mxu0 %v3403
        %3568 = vmatprep.subr.mxu0 0.0
        %3569 = vmatpush2.msra.mxu0 0.0
        %3570 = vmatprep.subr.mxu0 0.0
        %3571 = vmatpush2.msra.mxu0 0.0
        %3572 = vmatprep.subr.mxu0 0.0
        %3573 = vmatpush2.msra.mxu0 0.0
        %3574 = vmatprep.subr.mxu0 0.0
        %3575 = vmatpush2.msra.mxu0 0.0
        %3576 = vmatprep.subr.mxu0 0.0
        %3577 = vmatpush2.msra.mxu0 0.0
        %3578 = vmatprep.subr.mxu0 0.0
        %3579 = vmatpush2.msra.mxu0 0.0
        %3580 = vmatprep.subr.mxu0 0.0
        %3581 = vmatpush2.msra.mxu0 0.0
        %3582 = vmatprep.subr.mxu0 0.0
        %3583 = vmatpush2.msra.mxu0 0.0
        %3584 = vmatprep.subr.mxu0 0.0
        %3585 = vmatpush2.msra.mxu0 0.0
        %3586 = vmatprep.subr.mxu0 0.0
        %3587 = vmatpush2.msra.mxu0 0.0
        %3588 = vmatprep.subr.mxu0 0.0
        %3589 = vmatpush2.msra.mxu0 0.0
        %3590 = vmatprep.subr.mxu0 0.0
        %3591 = vmatpush2.msra.mxu0 0.0
        %3592 = vmatprep.subr.mxu0 0.0
        %3593 = vmatpush2.msra.mxu0 0.0
        %3594 = vmatprep.subr.mxu0 0.0
        %3595 = vmatpush2.msra.mxu0 0.0
        %3596 = vmatprep.subr.mxu0 0.0
        %3597 = vmatpush2.msra.mxu0 0.0
        %3598 = vmatprep.subr.mxu0 0.0
        %3599 = vmatpush2.msra.mxu0 0.0
        %3600 = vmatprep.mubr.f32.mxu0 0.0
        %3601 = vmatmul.mubr.f32.gmra.mxu0 %v3531
        %v3602 = vpop.f32.mrf.mxu0
        %v3603 = vadd.f32 0.0, %v3602
        %v3604 = vpop.f32.mrf.mxu0
        %3605 = vmatprep.mubr.f32.mxu0 0.0
        %3606 = vmatmul.mubr.f32.gmra.mxu0 %v3534
        %v3607 = vpop.f32.mrf.mxu0
        %v3608 = vadd.f32 0.0, %v3607
        %v3609 = vpop.f32.mrf.mxu0
        %3610 = vdwg.mxu0
        %v3612 = vsel %vm1424, %v1327, 0
        %v3615 = vsel %vm1424, %v1328, 0
        %3617 = vmatprep.subr.mxu0 0.0
        %3618 = vmatpush1.msra.mxu0 0.0
        %3619 = vmatprep.subr.mxu0 0.0
        %3620 = vmatpush1.msra.mxu0 0.0
        %3621 = vmatprep.subr.mxu0 0.0
        %3622 = vmatpush1.msra.mxu0 0.0
        %3623 = vmatprep.subr.mxu0 0.0
        %3624 = vmatpush1.msra.mxu0 0.0
        %3625 = vmatprep.subr.mxu0 0.0
        %3626 = vmatpush1.msra.mxu0 0.0
        %3627 = vmatprep.subr.mxu0 0.0
        %3628 = vmatpush1.msra.mxu0 0.0
        %3629 = vmatprep.subr.mxu0 0.0
        %3630 = vmatpush1.msra.mxu0 0.0
        %3631 = vmatprep.subr.mxu0 0.0
        %3632 = vmatpush1.msra.mxu0 0.0
        %3633 = vmatprep.subr.mxu0 0.0
        %3634 = vmatpush1.msra.mxu0 0.0
        %3635 = vmatprep.subr.mxu0 0.0
        %3636 = vmatpush1.msra.mxu0 0.0
        %3637 = vmatprep.subr.mxu0 0.0
        %3638 = vmatpush1.msra.mxu0 0.0
        %3639 = vmatprep.subr.mxu0 0.0
        %3640 = vmatpush1.msra.mxu0 0.0
        %3641 = vmatprep.subr.mxu0 0.0
        %3642 = vmatpush1.msra.mxu0 0.0
        %3643 = vmatprep.subr.mxu0 0.0
        %3644 = vmatpush1.msra.mxu0 0.0
        %3645 = vmatprep.subr.mxu0 0.0
        %3646 = vmatpush1.msra.mxu0 %v3406
        %3647 = vmatprep.subr.mxu0 0.0
        %3648 = vmatpush1.msra.mxu0 %v3405
        %3649 = vmatprep.subr.mxu0 0.0
        %3650 = vmatpush2.msra.mxu0 0.0
        %3651 = vmatprep.subr.mxu0 0.0
        %3652 = vmatpush2.msra.mxu0 0.0
        %3653 = vmatprep.subr.mxu0 0.0
        %3654 = vmatpush2.msra.mxu0 0.0
        %3655 = vmatprep.subr.mxu0 0.0
        %3656 = vmatpush2.msra.mxu0 0.0
        %3657 = vmatprep.subr.mxu0 0.0
        %3658 = vmatpush2.msra.mxu0 0.0
        %3659 = vmatprep.subr.mxu0 0.0
        %3660 = vmatpush2.msra.mxu0 0.0
        %3661 = vmatprep.subr.mxu0 0.0
        %3662 = vmatpush2.msra.mxu0 0.0
        %3663 = vmatprep.subr.mxu0 0.0
        %3664 = vmatpush2.msra.mxu0 0.0
        %3665 = vmatprep.subr.mxu0 0.0
        %3666 = vmatpush2.msra.mxu0 0.0
        %3667 = vmatprep.subr.mxu0 0.0
        %3668 = vmatpush2.msra.mxu0 0.0
        %3669 = vmatprep.subr.mxu0 0.0
        %3670 = vmatpush2.msra.mxu0 0.0
        %3671 = vmatprep.subr.mxu0 0.0
        %3672 = vmatpush2.msra.mxu0 0.0
        %3673 = vmatprep.subr.mxu0 0.0
        %3674 = vmatpush2.msra.mxu0 0.0
        %3675 = vmatprep.subr.mxu0 0.0
        %3676 = vmatpush2.msra.mxu0 0.0
        %3677 = vmatprep.subr.mxu0 0.0
        %3678 = vmatpush2.msra.mxu0 0.0
        %3679 = vmatprep.subr.mxu0 0.0
        %3680 = vmatpush2.msra.mxu0 0.0
        %3681 = vmatprep.mubr.f32.mxu0 0.0
        %3682 = vmatmul.mubr.f32.gmra.mxu0 %v3612
        %v3683 = vpop.f32.mrf.mxu0
        %v3684 = vadd.f32 0.0, %v3683
        %v3685 = vpop.f32.mrf.mxu0
        %3686 = vmatprep.mubr.f32.mxu0 0.0
        %3687 = vmatmul.mubr.f32.gmra.mxu0 %v3615
        %v3688 = vpop.f32.mrf.mxu0
        %v3689 = vadd.f32 0.0, %v3688
        %v3690 = vpop.f32.mrf.mxu0
        %3691 = vdwg.mxu0
        %v3693 = vsel %vm1424, %v1329, 0
        %v3696 = vsel %vm1424, %v1330, 0
        %3698 = vmatprep.subr.mxu0 0.0
        %3699 = vmatpush1.msra.mxu0 0.0
        %3700 = vmatprep.subr.mxu0 0.0
        %3701 = vmatpush1.msra.mxu0 0.0
        %3702 = vmatprep.subr.mxu0 0.0
        %3703 = vmatpush1.msra.mxu0 0.0
        %3704 = vmatprep.subr.mxu0 0.0
        %3705 = vmatpush1.msra.mxu0 0.0
        %3706 = vmatprep.subr.mxu0 0.0
        %3707 = vmatpush1.msra.mxu0 0.0
        %3708 = vmatprep.subr.mxu0 0.0
        %3709 = vmatpush1.msra.mxu0 0.0
        %3710 = vmatprep.subr.mxu0 0.0
        %3711 = vmatpush1.msra.mxu0 0.0
        %3712 = vmatprep.subr.mxu0 0.0
        %3713 = vmatpush1.msra.mxu0 0.0
        %3714 = vmatprep.subr.mxu0 0.0
        %3715 = vmatpush1.msra.mxu0 0.0
        %3716 = vmatprep.subr.mxu0 0.0
        %3717 = vmatpush1.msra.mxu0 0.0
        %3718 = vmatprep.subr.mxu0 0.0
        %3719 = vmatpush1.msra.mxu0 0.0
        %3720 = vmatprep.subr.mxu0 0.0
        %3721 = vmatpush1.msra.mxu0 0.0
        %3722 = vmatprep.subr.mxu0 0.0
        %3723 = vmatpush1.msra.mxu0 0.0
        %3724 = vmatprep.subr.mxu0 0.0
        %3725 = vmatpush1.msra.mxu0 0.0
        %3726 = vmatprep.subr.mxu0 0.0
        %3727 = vmatpush1.msra.mxu0 %v3408
        %3728 = vmatprep.subr.mxu0 0.0
        %3729 = vmatpush1.msra.mxu0 %v3407
        %3730 = vmatprep.subr.mxu0 0.0
        %3731 = vmatpush2.msra.mxu0 0.0
        %3732 = vmatprep.subr.mxu0 0.0
        %3733 = vmatpush2.msra.mxu0 0.0
        %3734 = vmatprep.subr.mxu0 0.0
        %3735 = vmatpush2.msra.mxu0 0.0
        %3736 = vmatprep.subr.mxu0 0.0
        %3737 = vmatpush2.msra.mxu0 0.0
        %3738 = vmatprep.subr.mxu0 0.0
        %3739 = vmatpush2.msra.mxu0 0.0
        %3740 = vmatprep.subr.mxu0 0.0
        %3741 = vmatpush2.msra.mxu0 0.0
        %3742 = vmatprep.subr.mxu0 0.0
        %3743 = vmatpush2.msra.mxu0 0.0
        %3744 = vmatprep.subr.mxu0 0.0
        %3745 = vmatpush2.msra.mxu0 0.0
        %3746 = vmatprep.subr.mxu0 0.0
        %3747 = vmatpush2.msra.mxu0 0.0
        %3748 = vmatprep.subr.mxu0 0.0
        %3749 = vmatpush2.msra.mxu0 0.0
        %3750 = vmatprep.subr.mxu0 0.0
        %3751 = vmatpush2.msra.mxu0 0.0
        %3752 = vmatprep.subr.mxu0 0.0
        %3753 = vmatpush2.msra.mxu0 0.0
        %3754 = vmatprep.subr.mxu0 0.0
        %3755 = vmatpush2.msra.mxu0 0.0
        %3756 = vmatprep.subr.mxu0 0.0
        %3757 = vmatpush2.msra.mxu0 0.0
        %3758 = vmatprep.subr.mxu0 0.0
        %3759 = vmatpush2.msra.mxu0 0.0
        %3760 = vmatprep.subr.mxu0 0.0
        %3761 = vmatpush2.msra.mxu0 0.0
        %3762 = vmatprep.mubr.f32.mxu0 0.0
        %3763 = vmatmul.mubr.f32.gmra.mxu0 %v3693
        %v3764 = vpop.f32.mrf.mxu0
        %v3765 = vadd.f32 0.0, %v3764
        %v3766 = vpop.f32.mrf.mxu0
        %3767 = vmatprep.mubr.f32.mxu0 0.0
        %3768 = vmatmul.mubr.f32.gmra.mxu0 %v3696
        %v3769 = vpop.f32.mrf.mxu0
        %v3770 = vadd.f32 0.0, %v3769
        %v3771 = vpop.f32.mrf.mxu0
        %3772 = vdwg.mxu0
        %v3774 = vsel %vm1424, %v1331, 0
        %v3777 = vsel %vm1424, %v1332, 0
        %3779 = vmatprep.subr.mxu0 0.0
        %3780 = vmatpush1.msra.mxu0 0.0
        %3781 = vmatprep.subr.mxu0 0.0
        %3782 = vmatpush1.msra.mxu0 0.0
        %3783 = vmatprep.subr.mxu0 0.0
        %3784 = vmatpush1.msra.mxu0 0.0
        %3785 = vmatprep.subr.mxu0 0.0
        %3786 = vmatpush1.msra.mxu0 0.0
        %3787 = vmatprep.subr.mxu0 0.0
        %3788 = vmatpush1.msra.mxu0 0.0
        %3789 = vmatprep.subr.mxu0 0.0
        %3790 = vmatpush1.msra.mxu0 0.0
        %3791 = vmatprep.subr.mxu0 0.0
        %3792 = vmatpush1.msra.mxu0 0.0
        %3793 = vmatprep.subr.mxu0 0.0
        %3794 = vmatpush1.msra.mxu0 0.0
        %3795 = vmatprep.subr.mxu0 0.0
        %3796 = vmatpush1.msra.mxu0 0.0
        %3797 = vmatprep.subr.mxu0 0.0
        %3798 = vmatpush1.msra.mxu0 0.0
        %3799 = vmatprep.subr.mxu0 0.0
        %3800 = vmatpush1.msra.mxu0 0.0
        %3801 = vmatprep.subr.mxu0 0.0
        %3802 = vmatpush1.msra.mxu0 0.0
        %3803 = vmatprep.subr.mxu0 0.0
        %3804 = vmatpush1.msra.mxu0 0.0
        %3805 = vmatprep.subr.mxu0 0.0
        %3806 = vmatpush1.msra.mxu0 0.0
        %3807 = vmatprep.subr.mxu0 0.0
        %3808 = vmatpush1.msra.mxu0 %v3410
        %3809 = vmatprep.subr.mxu0 0.0
        %3810 = vmatpush1.msra.mxu0 %v3409
        %3811 = vmatprep.subr.mxu0 0.0
        %3812 = vmatpush2.msra.mxu0 0.0
        %3813 = vmatprep.subr.mxu0 0.0
        %3814 = vmatpush2.msra.mxu0 0.0
        %3815 = vmatprep.subr.mxu0 0.0
        %3816 = vmatpush2.msra.mxu0 0.0
        %3817 = vmatprep.subr.mxu0 0.0
        %3818 = vmatpush2.msra.mxu0 0.0
        %3819 = vmatprep.subr.mxu0 0.0
        %3820 = vmatpush2.msra.mxu0 0.0
        %3821 = vmatprep.subr.mxu0 0.0
        %3822 = vmatpush2.msra.mxu0 0.0
        %3823 = vmatprep.subr.mxu0 0.0
        %3824 = vmatpush2.msra.mxu0 0.0
        %3825 = vmatprep.subr.mxu0 0.0
        %3826 = vmatpush2.msra.mxu0 0.0
        %3827 = vmatprep.subr.mxu0 0.0
        %3828 = vmatpush2.msra.mxu0 0.0
        %3829 = vmatprep.subr.mxu0 0.0
        %3830 = vmatpush2.msra.mxu0 0.0
        %3831 = vmatprep.subr.mxu0 0.0
        %3832 = vmatpush2.msra.mxu0 0.0
        %3833 = vmatprep.subr.mxu0 0.0
        %3834 = vmatpush2.msra.mxu0 0.0
        %3835 = vmatprep.subr.mxu0 0.0
        %3836 = vmatpush2.msra.mxu0 0.0
        %3837 = vmatprep.subr.mxu0 0.0
        %3838 = vmatpush2.msra.mxu0 0.0
        %3839 = vmatprep.subr.mxu0 0.0
        %3840 = vmatpush2.msra.mxu0 0.0
        %3841 = vmatprep.subr.mxu0 0.0
        %3842 = vmatpush2.msra.mxu0 0.0
        %3843 = vmatprep.mubr.f32.mxu0 0.0
        %3844 = vmatmul.mubr.f32.gmra.mxu0 %v3774
        %v3845 = vpop.f32.mrf.mxu0
        %v3846 = vadd.f32 0.0, %v3845
        %v3847 = vpop.f32.mrf.mxu0
        %3848 = vmatprep.mubr.f32.mxu0 0.0
        %3849 = vmatmul.mubr.f32.gmra.mxu0 %v3777
        %v3850 = vpop.f32.mrf.mxu0
        %v3851 = vadd.f32 0.0, %v3850
        %v3852 = vpop.f32.mrf.mxu0
        %3853 = vdwg.mxu0
        %v3855 = vsel %vm1424, %v1333, 0
        %v3858 = vsel %vm1424, %v1334, 0
        %3860 = vmatprep.subr.mxu0 0.0
        %3861 = vmatpush1.msra.mxu0 0.0
        %3862 = vmatprep.subr.mxu0 0.0
        %3863 = vmatpush1.msra.mxu0 0.0
        %3864 = vmatprep.subr.mxu0 0.0
        %3865 = vmatpush1.msra.mxu0 0.0
        %3866 = vmatprep.subr.mxu0 0.0
        %3867 = vmatpush1.msra.mxu0 0.0
        %3868 = vmatprep.subr.mxu0 0.0
        %3869 = vmatpush1.msra.mxu0 0.0
        %3870 = vmatprep.subr.mxu0 0.0
        %3871 = vmatpush1.msra.mxu0 0.0
        %3872 = vmatprep.subr.mxu0 0.0
        %3873 = vmatpush1.msra.mxu0 0.0
        %3874 = vmatprep.subr.mxu0 0.0
        %3875 = vmatpush1.msra.mxu0 0.0
        %3876 = vmatprep.subr.mxu0 0.0
        %3877 = vmatpush1.msra.mxu0 0.0
        %3878 = vmatprep.subr.mxu0 0.0
        %3879 = vmatpush1.msra.mxu0 0.0
        %3880 = vmatprep.subr.mxu0 0.0
        %3881 = vmatpush1.msra.mxu0 0.0
        %3882 = vmatprep.subr.mxu0 0.0
        %3883 = vmatpush1.msra.mxu0 0.0
        %3884 = vmatprep.subr.mxu0 0.0
        %3885 = vmatpush1.msra.mxu0 0.0
        %3886 = vmatprep.subr.mxu0 0.0
        %3887 = vmatpush1.msra.mxu0 0.0
        %3888 = vmatprep.subr.mxu0 0.0
        %3889 = vmatpush1.msra.mxu0 %v3412
        %3890 = vmatprep.subr.mxu0 0.0
        %3891 = vmatpush1.msra.mxu0 %v3411
        %3892 = vmatprep.subr.mxu0 0.0
        %3893 = vmatpush2.msra.mxu0 0.0
        %3894 = vmatprep.subr.mxu0 0.0
        %3895 = vmatpush2.msra.mxu0 0.0
        %3896 = vmatprep.subr.mxu0 0.0
        %3897 = vmatpush2.msra.mxu0 0.0
        %3898 = vmatprep.subr.mxu0 0.0
        %3899 = vmatpush2.msra.mxu0 0.0
        %3900 = vmatprep.subr.mxu0 0.0
        %3901 = vmatpush2.msra.mxu0 0.0
        %3902 = vmatprep.subr.mxu0 0.0
        %3903 = vmatpush2.msra.mxu0 0.0
        %3904 = vmatprep.subr.mxu0 0.0
        %3905 = vmatpush2.msra.mxu0 0.0
        %3906 = vmatprep.subr.mxu0 0.0
        %3907 = vmatpush2.msra.mxu0 0.0
        %3908 = vmatprep.subr.mxu0 0.0
        %3909 = vmatpush2.msra.mxu0 0.0
        %3910 = vmatprep.subr.mxu0 0.0
        %3911 = vmatpush2.msra.mxu0 0.0
        %3912 = vmatprep.subr.mxu0 0.0
        %3913 = vmatpush2.msra.mxu0 0.0
        %3914 = vmatprep.subr.mxu0 0.0
        %3915 = vmatpush2.msra.mxu0 0.0
        %3916 = vmatprep.subr.mxu0 0.0
        %3917 = vmatpush2.msra.mxu0 0.0
        %3918 = vmatprep.subr.mxu0 0.0
        %3919 = vmatpush2.msra.mxu0 0.0
        %3920 = vmatprep.subr.mxu0 0.0
        %3921 = vmatpush2.msra.mxu0 0.0
        %3922 = vmatprep.subr.mxu0 0.0
        %3923 = vmatpush2.msra.mxu0 0.0
        %3924 = vmatprep.mubr.f32.mxu0 0.0
        %3925 = vmatmul.mubr.f32.gmra.mxu0 %v3855
        %v3926 = vpop.f32.mrf.mxu0
        %v3927 = vadd.f32 0.0, %v3926
        %v3928 = vpop.f32.mrf.mxu0
        %3929 = vmatprep.mubr.f32.mxu0 0.0
        %3930 = vmatmul.mubr.f32.gmra.mxu0 %v3858
        %v3931 = vpop.f32.mrf.mxu0
        %v3932 = vadd.f32 0.0, %v3931
        %v3933 = vpop.f32.mrf.mxu0
        %3934 = vdwg.mxu0
        %v3936 = vsel %vm1424, %v1335, 0
        %v3939 = vsel %vm1424, %v1336, 0
        %3941 = vmatprep.subr.mxu0 0.0
        %3942 = vmatpush1.msra.mxu0 0.0
        %3943 = vmatprep.subr.mxu0 0.0
        %3944 = vmatpush1.msra.mxu0 0.0
        %3945 = vmatprep.subr.mxu0 0.0
        %3946 = vmatpush1.msra.mxu0 0.0
        %3947 = vmatprep.subr.mxu0 0.0
        %3948 = vmatpush1.msra.mxu0 0.0
        %3949 = vmatprep.subr.mxu0 0.0
        %3950 = vmatpush1.msra.mxu0 0.0
        %3951 = vmatprep.subr.mxu0 0.0
        %3952 = vmatpush1.msra.mxu0 0.0
        %3953 = vmatprep.subr.mxu0 0.0
        %3954 = vmatpush1.msra.mxu0 0.0
        %3955 = vmatprep.subr.mxu0 0.0
        %3956 = vmatpush1.msra.mxu0 0.0
        %3957 = vmatprep.subr.mxu0 0.0
        %3958 = vmatpush1.msra.mxu0 0.0
        %3959 = vmatprep.subr.mxu0 0.0
        %3960 = vmatpush1.msra.mxu0 0.0
        %3961 = vmatprep.subr.mxu0 0.0
        %3962 = vmatpush1.msra.mxu0 0.0
        %3963 = vmatprep.subr.mxu0 0.0
        %3964 = vmatpush1.msra.mxu0 0.0
        %3965 = vmatprep.subr.mxu0 0.0
        %3966 = vmatpush1.msra.mxu0 0.0
        %3967 = vmatprep.subr.mxu0 0.0
        %3968 = vmatpush1.msra.mxu0 0.0
        %3969 = vmatprep.subr.mxu0 0.0
        %3970 = vmatpush1.msra.mxu0 %v3414
        %3971 = vmatprep.subr.mxu0 0.0
        %3972 = vmatpush1.msra.mxu0 %v3413
        %3973 = vmatprep.subr.mxu0 0.0
        %3974 = vmatpush2.msra.mxu0 0.0
        %3975 = vmatprep.subr.mxu0 0.0
        %3976 = vmatpush2.msra.mxu0 0.0
        %3977 = vmatprep.subr.mxu0 0.0
        %3978 = vmatpush2.msra.mxu0 0.0
        %3979 = vmatprep.subr.mxu0 0.0
        %3980 = vmatpush2.msra.mxu0 0.0
        %3981 = vmatprep.subr.mxu0 0.0
        %3982 = vmatpush2.msra.mxu0 0.0
        %3983 = vmatprep.subr.mxu0 0.0
        %3984 = vmatpush2.msra.mxu0 0.0
        %3985 = vmatprep.subr.mxu0 0.0
        %3986 = vmatpush2.msra.mxu0 0.0
        %3987 = vmatprep.subr.mxu0 0.0
        %3988 = vmatpush2.msra.mxu0 0.0
        %3989 = vmatprep.subr.mxu0 0.0
        %3990 = vmatpush2.msra.mxu0 0.0
        %3991 = vmatprep.subr.mxu0 0.0
        %3992 = vmatpush2.msra.mxu0 0.0
        %3993 = vmatprep.subr.mxu0 0.0
        %3994 = vmatpush2.msra.mxu0 0.0
        %3995 = vmatprep.subr.mxu0 0.0
        %3996 = vmatpush2.msra.mxu0 0.0
        %3997 = vmatprep.subr.mxu0 0.0
        %3998 = vmatpush2.msra.mxu0 0.0
        %3999 = vmatprep.subr.mxu0 0.0
        %4000 = vmatpush2.msra.mxu0 0.0
        %4001 = vmatprep.subr.mxu0 0.0
        %4002 = vmatpush2.msra.mxu0 0.0
        %4003 = vmatprep.subr.mxu0 0.0
        %4004 = vmatpush2.msra.mxu0 0.0
        %4005 = vmatprep.mubr.f32.mxu0 0.0
        %4006 = vmatmul.mubr.f32.gmra.mxu0 %v3936
        %v4007 = vpop.f32.mrf.mxu0
        %v4008 = vadd.f32 0.0, %v4007
        %v4009 = vpop.f32.mrf.mxu0
        %4010 = vmatprep.mubr.f32.mxu0 0.0
        %4011 = vmatmul.mubr.f32.gmra.mxu0 %v3939
        %v4012 = vpop.f32.mrf.mxu0
        %v4013 = vadd.f32 0.0, %v4012
        %v4014 = vpop.f32.mrf.mxu0
        %4015 = vdwg.mxu0
        %v4017 = vsel %vm1424, %v1337, 0
        %v4020 = vsel %vm1424, %v1338, 0
        %4022 = vmatprep.subr.mxu0 0.0
        %4023 = vmatpush1.msra.mxu0 0.0
        %4024 = vmatprep.subr.mxu0 0.0
        %4025 = vmatpush1.msra.mxu0 0.0
        %4026 = vmatprep.subr.mxu0 0.0
        %4027 = vmatpush1.msra.mxu0 0.0
        %4028 = vmatprep.subr.mxu0 0.0
        %4029 = vmatpush1.msra.mxu0 0.0
        %4030 = vmatprep.subr.mxu0 0.0
        %4031 = vmatpush1.msra.mxu0 0.0
        %4032 = vmatprep.subr.mxu0 0.0
        %4033 = vmatpush1.msra.mxu0 0.0
        %4034 = vmatprep.subr.mxu0 0.0
        %4035 = vmatpush1.msra.mxu0 0.0
        %4036 = vmatprep.subr.mxu0 0.0
        %4037 = vmatpush1.msra.mxu0 0.0
        %4038 = vmatprep.subr.mxu0 0.0
        %4039 = vmatpush1.msra.mxu0 0.0
        %4040 = vmatprep.subr.mxu0 0.0
        %4041 = vmatpush1.msra.mxu0 0.0
        %4042 = vmatprep.subr.mxu0 0.0
        %4043 = vmatpush1.msra.mxu0 0.0
        %4044 = vmatprep.subr.mxu0 0.0
        %4045 = vmatpush1.msra.mxu0 0.0
        %4046 = vmatprep.subr.mxu0 0.0
        %4047 = vmatpush1.msra.mxu0 0.0
        %4048 = vmatprep.subr.mxu0 0.0
        %4049 = vmatpush1.msra.mxu0 0.0
        %4050 = vmatprep.subr.mxu0 0.0
        %4051 = vmatpush1.msra.mxu0 %v3416
        %4052 = vmatprep.subr.mxu0 0.0
        %4053 = vmatpush1.msra.mxu0 %v3415
        %4054 = vmatprep.subr.mxu0 0.0
        %4055 = vmatpush2.msra.mxu0 0.0
        %4056 = vmatprep.subr.mxu0 0.0
        %4057 = vmatpush2.msra.mxu0 0.0
        %4058 = vmatprep.subr.mxu0 0.0
        %4059 = vmatpush2.msra.mxu0 0.0
        %4060 = vmatprep.subr.mxu0 0.0
        %4061 = vmatpush2.msra.mxu0 0.0
        %4062 = vmatprep.subr.mxu0 0.0
        %4063 = vmatpush2.msra.mxu0 0.0
        %4064 = vmatprep.subr.mxu0 0.0
        %4065 = vmatpush2.msra.mxu0 0.0
        %4066 = vmatprep.subr.mxu0 0.0
        %4067 = vmatpush2.msra.mxu0 0.0
        %4068 = vmatprep.subr.mxu0 0.0
        %4069 = vmatpush2.msra.mxu0 0.0
        %4070 = vmatprep.subr.mxu0 0.0
        %4071 = vmatpush2.msra.mxu0 0.0
        %4072 = vmatprep.subr.mxu0 0.0
        %4073 = vmatpush2.msra.mxu0 0.0
        %4074 = vmatprep.subr.mxu0 0.0
        %4075 = vmatpush2.msra.mxu0 0.0
        %4076 = vmatprep.subr.mxu0 0.0
        %4077 = vmatpush2.msra.mxu0 0.0
        %4078 = vmatprep.subr.mxu0 0.0
        %4079 = vmatpush2.msra.mxu0 0.0
        %4080 = vmatprep.subr.mxu0 0.0
        %4081 = vmatpush2.msra.mxu0 0.0
        %4082 = vmatprep.subr.mxu0 0.0
        %4083 = vmatpush2.msra.mxu0 0.0
        %4084 = vmatprep.subr.mxu0 0.0
        %4085 = vmatpush2.msra.mxu0 0.0
        %4086 = vmatprep.mubr.f32.mxu0 0.0
        %4087 = vmatmul.mubr.f32.gmra.mxu0 %v4017
        %v4088 = vpop.f32.mrf.mxu0
        %v4089 = vadd.f32 0.0, %v4088
        %v4090 = vpop.f32.mrf.mxu0
        %4091 = vmatprep.mubr.f32.mxu0 0.0
        %4092 = vmatmul.mubr.f32.gmra.mxu0 %v4020
        %v4093 = vpop.f32.mrf.mxu0
        %v4094 = vadd.f32 0.0, %v4093
        %v4095 = vpop.f32.mrf.mxu0
        %4096 = vdwg.mxu0
        %v4098 = vsel %vm1424, %v1342, 0
        %v4101 = vsel %vm1424, %v1343, 0
        %4103 = vmatprep.subr.mxu0 0.0
        %4104 = vmatpush1.msra.mxu0 0.0
        %4105 = vmatprep.subr.mxu0 0.0
        %4106 = vmatpush1.msra.mxu0 0.0
        %4107 = vmatprep.subr.mxu0 0.0
        %4108 = vmatpush1.msra.mxu0 0.0
        %4109 = vmatprep.subr.mxu0 0.0
        %4110 = vmatpush1.msra.mxu0 0.0
        %4111 = vmatprep.subr.mxu0 0.0
        %4112 = vmatpush1.msra.mxu0 0.0
        %4113 = vmatprep.subr.mxu0 0.0
        %4114 = vmatpush1.msra.mxu0 0.0
        %4115 = vmatprep.subr.mxu0 0.0
        %4116 = vmatpush1.msra.mxu0 0.0
        %4117 = vmatprep.subr.mxu0 0.0
        %4118 = vmatpush1.msra.mxu0 0.0
        %4119 = vmatprep.subr.mxu0 0.0
        %4120 = vmatpush1.msra.mxu0 0.0
        %4121 = vmatprep.subr.mxu0 0.0
        %4122 = vmatpush1.msra.mxu0 0.0
        %4123 = vmatprep.subr.mxu0 0.0
        %4124 = vmatpush1.msra.mxu0 0.0
        %4125 = vmatprep.subr.mxu0 0.0
        %4126 = vmatpush1.msra.mxu0 0.0
        %4127 = vmatprep.subr.mxu0 0.0
        %4128 = vmatpush1.msra.mxu0 0.0
        %4129 = vmatprep.subr.mxu0 0.0
        %4130 = vmatpush1.msra.mxu0 0.0
        %4131 = vmatprep.subr.mxu0 0.0
        %4132 = vmatpush1.msra.mxu0 %v3434
        %4133 = vmatprep.subr.mxu0 0.0
        %4134 = vmatpush1.msra.mxu0 %v3433
        %4135 = vmatprep.subr.mxu0 0.0
        %4136 = vmatpush2.msra.mxu0 0.0
        %4137 = vmatprep.subr.mxu0 0.0
        %4138 = vmatpush2.msra.mxu0 0.0
        %4139 = vmatprep.subr.mxu0 0.0
        %4140 = vmatpush2.msra.mxu0 0.0
        %4141 = vmatprep.subr.mxu0 0.0
        %4142 = vmatpush2.msra.mxu0 0.0
        %4143 = vmatprep.subr.mxu0 0.0
        %4144 = vmatpush2.msra.mxu0 0.0
        %4145 = vmatprep.subr.mxu0 0.0
        %4146 = vmatpush2.msra.mxu0 0.0
        %4147 = vmatprep.subr.mxu0 0.0
        %4148 = vmatpush2.msra.mxu0 0.0
        %4149 = vmatprep.subr.mxu0 0.0
        %4150 = vmatpush2.msra.mxu0 0.0
        %4151 = vmatprep.subr.mxu0 0.0
        %4152 = vmatpush2.msra.mxu0 0.0
        %4153 = vmatprep.subr.mxu0 0.0
        %4154 = vmatpush2.msra.mxu0 0.0
        %4155 = vmatprep.subr.mxu0 0.0
        %4156 = vmatpush2.msra.mxu0 0.0
        %4157 = vmatprep.subr.mxu0 0.0
        %4158 = vmatpush2.msra.mxu0 0.0
        %4159 = vmatprep.subr.mxu0 0.0
        %4160 = vmatpush2.msra.mxu0 0.0
        %4161 = vmatprep.subr.mxu0 0.0
        %4162 = vmatpush2.msra.mxu0 0.0
        %4163 = vmatprep.subr.mxu0 0.0
        %4164 = vmatpush2.msra.mxu0 0.0
        %4165 = vmatprep.subr.mxu0 0.0
        %4166 = vmatpush2.msra.mxu0 0.0
        %4167 = vmatprep.mubr.f32.mxu0 0.0
        %4168 = vmatmul.mubr.f32.gmra.mxu0 %v4098
        %v4169 = vpop.f32.mrf.mxu0
        %v4170 = vadd.f32 0.0, %v4169
        %v4171 = vpop.f32.mrf.mxu0
        %4172 = vmatprep.mubr.f32.mxu0 0.0
        %4173 = vmatmul.mubr.f32.gmra.mxu0 %v4101
        %v4174 = vpop.f32.mrf.mxu0
        %v4175 = vadd.f32 0.0, %v4174
        %v4176 = vpop.f32.mrf.mxu0
        %4177 = vdwg.mxu0
        %v4179 = vsel %vm1424, %v1344, 0
        %v4182 = vsel %vm1424, %v1345, 0
        %4184 = vmatprep.subr.mxu0 0.0
        %4185 = vmatpush1.msra.mxu0 0.0
        %4186 = vmatprep.subr.mxu0 0.0
        %4187 = vmatpush1.msra.mxu0 0.0
        %4188 = vmatprep.subr.mxu0 0.0
        %4189 = vmatpush1.msra.mxu0 0.0
        %4190 = vmatprep.subr.mxu0 0.0
        %4191 = vmatpush1.msra.mxu0 0.0
        %4192 = vmatprep.subr.mxu0 0.0
        %4193 = vmatpush1.msra.mxu0 0.0
        %4194 = vmatprep.subr.mxu0 0.0
        %4195 = vmatpush1.msra.mxu0 0.0
        %4196 = vmatprep.subr.mxu0 0.0
        %4197 = vmatpush1.msra.mxu0 0.0
        %4198 = vmatprep.subr.mxu0 0.0
        %4199 = vmatpush1.msra.mxu0 0.0
        %4200 = vmatprep.subr.mxu0 0.0
        %4201 = vmatpush1.msra.mxu0 0.0
        %4202 = vmatprep.subr.mxu0 0.0
        %4203 = vmatpush1.msra.mxu0 0.0
        %4204 = vmatprep.subr.mxu0 0.0
        %4205 = vmatpush1.msra.mxu0 0.0
        %4206 = vmatprep.subr.mxu0 0.0
        %4207 = vmatpush1.msra.mxu0 0.0
        %4208 = vmatprep.subr.mxu0 0.0
        %4209 = vmatpush1.msra.mxu0 0.0
        %4210 = vmatprep.subr.mxu0 0.0
        %4211 = vmatpush1.msra.mxu0 0.0
        %4212 = vmatprep.subr.mxu0 0.0
        %4213 = vmatpush1.msra.mxu0 %v3436
        %4214 = vmatprep.subr.mxu0 0.0
        %4215 = vmatpush1.msra.mxu0 %v3435
        %4216 = vmatprep.subr.mxu0 0.0
        %4217 = vmatpush2.msra.mxu0 0.0
        %4218 = vmatprep.subr.mxu0 0.0
        %4219 = vmatpush2.msra.mxu0 0.0
        %4220 = vmatprep.subr.mxu0 0.0
        %4221 = vmatpush2.msra.mxu0 0.0
        %4222 = vmatprep.subr.mxu0 0.0
        %4223 = vmatpush2.msra.mxu0 0.0
        %4224 = vmatprep.subr.mxu0 0.0
        %4225 = vmatpush2.msra.mxu0 0.0
        %4226 = vmatprep.subr.mxu0 0.0
        %4227 = vmatpush2.msra.mxu0 0.0
        %4228 = vmatprep.subr.mxu0 0.0
        %4229 = vmatpush2.msra.mxu0 0.0
        %4230 = vmatprep.subr.mxu0 0.0
        %4231 = vmatpush2.msra.mxu0 0.0
        %4232 = vmatprep.subr.mxu0 0.0
        %4233 = vmatpush2.msra.mxu0 0.0
        %4234 = vmatprep.subr.mxu0 0.0
        %4235 = vmatpush2.msra.mxu0 0.0
        %4236 = vmatprep.subr.mxu0 0.0
        %4237 = vmatpush2.msra.mxu0 0.0
        %4238 = vmatprep.subr.mxu0 0.0
        %4239 = vmatpush2.msra.mxu0 0.0
        %4240 = vmatprep.subr.mxu0 0.0
        %4241 = vmatpush2.msra.mxu0 0.0
        %4242 = vmatprep.subr.mxu0 0.0
        %4243 = vmatpush2.msra.mxu0 0.0
        %4244 = vmatprep.subr.mxu0 0.0
        %4245 = vmatpush2.msra.mxu0 0.0
        %4246 = vmatprep.subr.mxu0 0.0
        %4247 = vmatpush2.msra.mxu0 0.0
        %4248 = vmatprep.mubr.f32.mxu0 0.0
        %4249 = vmatmul.mubr.f32.gmra.mxu0 %v4179
        %v4250 = vpop.f32.mrf.mxu0
        %v4251 = vadd.f32 0.0, %v4250
        %v4252 = vpop.f32.mrf.mxu0
        %4253 = vmatprep.mubr.f32.mxu0 0.0
        %4254 = vmatmul.mubr.f32.gmra.mxu0 %v4182
        %v4255 = vpop.f32.mrf.mxu0
        %v4256 = vadd.f32 0.0, %v4255
        %v4257 = vpop.f32.mrf.mxu0
        %4258 = vdwg.mxu0
        %v4260 = vsel %vm1424, %v1346, 0
        %v4263 = vsel %vm1424, %v1347, 0
        %4265 = vmatprep.subr.mxu0 0.0
        %4266 = vmatpush1.msra.mxu0 0.0
        %4267 = vmatprep.subr.mxu0 0.0
        %4268 = vmatpush1.msra.mxu0 0.0
        %4269 = vmatprep.subr.mxu0 0.0
        %4270 = vmatpush1.msra.mxu0 0.0
        %4271 = vmatprep.subr.mxu0 0.0
        %4272 = vmatpush1.msra.mxu0 0.0
        %4273 = vmatprep.subr.mxu0 0.0
        %4274 = vmatpush1.msra.mxu0 0.0
        %4275 = vmatprep.subr.mxu0 0.0
        %4276 = vmatpush1.msra.mxu0 0.0
        %4277 = vmatprep.subr.mxu0 0.0
        %4278 = vmatpush1.msra.mxu0 0.0
        %4279 = vmatprep.subr.mxu0 0.0
        %4280 = vmatpush1.msra.mxu0 0.0
        %4281 = vmatprep.subr.mxu0 0.0
        %4282 = vmatpush1.msra.mxu0 0.0
        %4283 = vmatprep.subr.mxu0 0.0
        %4284 = vmatpush1.msra.mxu0 0.0
        %4285 = vmatprep.subr.mxu0 0.0
        %4286 = vmatpush1.msra.mxu0 0.0
        %4287 = vmatprep.subr.mxu0 0.0
        %4288 = vmatpush1.msra.mxu0 0.0
        %4289 = vmatprep.subr.mxu0 0.0
        %4290 = vmatpush1.msra.mxu0 0.0
        %4291 = vmatprep.subr.mxu0 0.0
        %4292 = vmatpush1.msra.mxu0 0.0
        %4293 = vmatprep.subr.mxu0 0.0
        %4294 = vmatpush1.msra.mxu0 %v3438
        %4295 = vmatprep.subr.mxu0 0.0
        %4296 = vmatpush1.msra.mxu0 %v3437
        %4297 = vmatprep.subr.mxu0 0.0
        %4298 = vmatpush2.msra.mxu0 0.0
        %4299 = vmatprep.subr.mxu0 0.0
        %4300 = vmatpush2.msra.mxu0 0.0
        %4301 = vmatprep.subr.mxu0 0.0
        %4302 = vmatpush2.msra.mxu0 0.0
        %4303 = vmatprep.subr.mxu0 0.0
        %4304 = vmatpush2.msra.mxu0 0.0
        %4305 = vmatprep.subr.mxu0 0.0
        %4306 = vmatpush2.msra.mxu0 0.0
        %4307 = vmatprep.subr.mxu0 0.0
        %4308 = vmatpush2.msra.mxu0 0.0
        %4309 = vmatprep.subr.mxu0 0.0
        %4310 = vmatpush2.msra.mxu0 0.0
        %4311 = vmatprep.subr.mxu0 0.0
        %4312 = vmatpush2.msra.mxu0 0.0
        %4313 = vmatprep.subr.mxu0 0.0
        %4314 = vmatpush2.msra.mxu0 0.0
        %4315 = vmatprep.subr.mxu0 0.0
        %4316 = vmatpush2.msra.mxu0 0.0
        %4317 = vmatprep.subr.mxu0 0.0
        %4318 = vmatpush2.msra.mxu0 0.0
        %4319 = vmatprep.subr.mxu0 0.0
        %4320 = vmatpush2.msra.mxu0 0.0
        %4321 = vmatprep.subr.mxu0 0.0
        %4322 = vmatpush2.msra.mxu0 0.0
        %4323 = vmatprep.subr.mxu0 0.0
        %4324 = vmatpush2.msra.mxu0 0.0
        %4325 = vmatprep.subr.mxu0 0.0
        %4326 = vmatpush2.msra.mxu0 0.0
        %4327 = vmatprep.subr.mxu0 0.0
        %4328 = vmatpush2.msra.mxu0 0.0
        %4329 = vmatprep.mubr.f32.mxu0 0.0
        %4330 = vmatmul.mubr.f32.gmra.mxu0 %v4260
        %v4331 = vpop.f32.mrf.mxu0
        %v4332 = vadd.f32 0.0, %v4331
        %v4333 = vpop.f32.mrf.mxu0
        %4334 = vmatprep.mubr.f32.mxu0 0.0
        %4335 = vmatmul.mubr.f32.gmra.mxu0 %v4263
        %v4336 = vpop.f32.mrf.mxu0
        %v4337 = vadd.f32 0.0, %v4336
        %v4338 = vpop.f32.mrf.mxu0
        %4339 = vdwg.mxu0
        %v4341 = vsel %vm1424, %v1348, 0
        %v4344 = vsel %vm1424, %v1349, 0
        %4346 = vmatprep.subr.mxu0 0.0
        %4347 = vmatpush1.msra.mxu0 0.0
        %4348 = vmatprep.subr.mxu0 0.0
        %4349 = vmatpush1.msra.mxu0 0.0
        %4350 = vmatprep.subr.mxu0 0.0
        %4351 = vmatpush1.msra.mxu0 0.0
        %4352 = vmatprep.subr.mxu0 0.0
        %4353 = vmatpush1.msra.mxu0 0.0
        %4354 = vmatprep.subr.mxu0 0.0
        %4355 = vmatpush1.msra.mxu0 0.0
        %4356 = vmatprep.subr.mxu0 0.0
        %4357 = vmatpush1.msra.mxu0 0.0
        %4358 = vmatprep.subr.mxu0 0.0
        %4359 = vmatpush1.msra.mxu0 0.0
        %4360 = vmatprep.subr.mxu0 0.0
        %4361 = vmatpush1.msra.mxu0 0.0
        %4362 = vmatprep.subr.mxu0 0.0
        %4363 = vmatpush1.msra.mxu0 0.0
        %4364 = vmatprep.subr.mxu0 0.0
        %4365 = vmatpush1.msra.mxu0 0.0
        %4366 = vmatprep.subr.mxu0 0.0
        %4367 = vmatpush1.msra.mxu0 0.0
        %4368 = vmatprep.subr.mxu0 0.0
        %4369 = vmatpush1.msra.mxu0 0.0
        %4370 = vmatprep.subr.mxu0 0.0
        %4371 = vmatpush1.msra.mxu0 0.0
        %4372 = vmatprep.subr.mxu0 0.0
        %4373 = vmatpush1.msra.mxu0 0.0
        %4374 = vmatprep.subr.mxu0 0.0
        %4375 = vmatpush1.msra.mxu0 %v3440
        %4376 = vmatprep.subr.mxu0 0.0
        %4377 = vmatpush1.msra.mxu0 %v3439
        %4378 = vmatprep.subr.mxu0 0.0
        %4379 = vmatpush2.msra.mxu0 0.0
        %4380 = vmatprep.subr.mxu0 0.0
        %4381 = vmatpush2.msra.mxu0 0.0
        %4382 = vmatprep.subr.mxu0 0.0
        %4383 = vmatpush2.msra.mxu0 0.0
        %4384 = vmatprep.subr.mxu0 0.0
        %4385 = vmatpush2.msra.mxu0 0.0
        %4386 = vmatprep.subr.mxu0 0.0
        %4387 = vmatpush2.msra.mxu0 0.0
        %4388 = vmatprep.subr.mxu0 0.0
        %4389 = vmatpush2.msra.mxu0 0.0
        %4390 = vmatprep.subr.mxu0 0.0
        %4391 = vmatpush2.msra.mxu0 0.0
        %4392 = vmatprep.subr.mxu0 0.0
        %4393 = vmatpush2.msra.mxu0 0.0
        %4394 = vmatprep.subr.mxu0 0.0
        %4395 = vmatpush2.msra.mxu0 0.0
        %4396 = vmatprep.subr.mxu0 0.0
        %4397 = vmatpush2.msra.mxu0 0.0
        %4398 = vmatprep.subr.mxu0 0.0
        %4399 = vmatpush2.msra.mxu0 0.0
        %4400 = vmatprep.subr.mxu0 0.0
        %4401 = vmatpush2.msra.mxu0 0.0
        %4402 = vmatprep.subr.mxu0 0.0
        %4403 = vmatpush2.msra.mxu0 0.0
        %4404 = vmatprep.subr.mxu0 0.0
        %4405 = vmatpush2.msra.mxu0 0.0
        %4406 = vmatprep.subr.mxu0 0.0
        %4407 = vmatpush2.msra.mxu0 0.0
        %4408 = vmatprep.subr.mxu0 0.0
        %4409 = vmatpush2.msra.mxu0 0.0
        %4410 = vmatprep.mubr.f32.mxu0 0.0
        %4411 = vmatmul.mubr.f32.gmra.mxu0 %v4341
        %v4412 = vpop.f32.mrf.mxu0
        %v4413 = vadd.f32 0.0, %v4412
        %v4414 = vpop.f32.mrf.mxu0
        %4415 = vmatprep.mubr.f32.mxu0 0.0
        %4416 = vmatmul.mubr.f32.gmra.mxu0 %v4344
        %v4417 = vpop.f32.mrf.mxu0
        %v4418 = vadd.f32 0.0, %v4417
        %v4419 = vpop.f32.mrf.mxu0
        %4420 = vdwg.mxu0
        %v4422 = vsel %vm1424, %v1350, 0
        %v4425 = vsel %vm1424, %v1351, 0
        %4427 = vmatprep.subr.mxu0 0.0
        %4428 = vmatpush1.msra.mxu0 0.0
        %4429 = vmatprep.subr.mxu0 0.0
        %4430 = vmatpush1.msra.mxu0 0.0
        %4431 = vmatprep.subr.mxu0 0.0
        %4432 = vmatpush1.msra.mxu0 0.0
        %4433 = vmatprep.subr.mxu0 0.0
        %4434 = vmatpush1.msra.mxu0 0.0
        %4435 = vmatprep.subr.mxu0 0.0
        %4436 = vmatpush1.msra.mxu0 0.0
        %4437 = vmatprep.subr.mxu0 0.0
        %4438 = vmatpush1.msra.mxu0 0.0
        %4439 = vmatprep.subr.mxu0 0.0
        %4440 = vmatpush1.msra.mxu0 0.0
        %4441 = vmatprep.subr.mxu0 0.0
        %4442 = vmatpush1.msra.mxu0 0.0
        %4443 = vmatprep.subr.mxu0 0.0
        %4444 = vmatpush1.msra.mxu0 0.0
        %4445 = vmatprep.subr.mxu0 0.0
        %4446 = vmatpush1.msra.mxu0 0.0
        %4447 = vmatprep.subr.mxu0 0.0
        %4448 = vmatpush1.msra.mxu0 0.0
        %4449 = vmatprep.subr.mxu0 0.0
        %4450 = vmatpush1.msra.mxu0 0.0
        %4451 = vmatprep.subr.mxu0 0.0
        %4452 = vmatpush1.msra.mxu0 0.0
        %4453 = vmatprep.subr.mxu0 0.0
        %4454 = vmatpush1.msra.mxu0 0.0
        %4455 = vmatprep.subr.mxu0 0.0
        %4456 = vmatpush1.msra.mxu0 %v3442
        %4457 = vmatprep.subr.mxu0 0.0
        %4458 = vmatpush1.msra.mxu0 %v3441
        %4459 = vmatprep.subr.mxu0 0.0
        %4460 = vmatpush2.msra.mxu0 0.0
        %4461 = vmatprep.subr.mxu0 0.0
        %4462 = vmatpush2.msra.mxu0 0.0
        %4463 = vmatprep.subr.mxu0 0.0
        %4464 = vmatpush2.msra.mxu0 0.0
        %4465 = vmatprep.subr.mxu0 0.0
        %4466 = vmatpush2.msra.mxu0 0.0
        %4467 = vmatprep.subr.mxu0 0.0
        %4468 = vmatpush2.msra.mxu0 0.0
        %4469 = vmatprep.subr.mxu0 0.0
        %4470 = vmatpush2.msra.mxu0 0.0
        %4471 = vmatprep.subr.mxu0 0.0
        %4472 = vmatpush2.msra.mxu0 0.0
        %4473 = vmatprep.subr.mxu0 0.0
        %4474 = vmatpush2.msra.mxu0 0.0
        %4475 = vmatprep.subr.mxu0 0.0
        %4476 = vmatpush2.msra.mxu0 0.0
        %4477 = vmatprep.subr.mxu0 0.0
        %4478 = vmatpush2.msra.mxu0 0.0
        %4479 = vmatprep.subr.mxu0 0.0
        %4480 = vmatpush2.msra.mxu0 0.0
        %4481 = vmatprep.subr.mxu0 0.0
        %4482 = vmatpush2.msra.mxu0 0.0
        %4483 = vmatprep.subr.mxu0 0.0
        %4484 = vmatpush2.msra.mxu0 0.0
        %4485 = vmatprep.subr.mxu0 0.0
        %4486 = vmatpush2.msra.mxu0 0.0
        %4487 = vmatprep.subr.mxu0 0.0
        %4488 = vmatpush2.msra.mxu0 0.0
        %4489 = vmatprep.subr.mxu0 0.0
        %4490 = vmatpush2.msra.mxu0 0.0
        %4491 = vmatprep.mubr.f32.mxu0 0.0
        %4492 = vmatmul.mubr.f32.gmra.mxu0 %v4422
        %v4493 = vpop.f32.mrf.mxu0
        %v4494 = vadd.f32 0.0, %v4493
        %v4495 = vpop.f32.mrf.mxu0
        %4496 = vmatprep.mubr.f32.mxu0 0.0
        %4497 = vmatmul.mubr.f32.gmra.mxu0 %v4425
        %v4498 = vpop.f32.mrf.mxu0
        %v4499 = vadd.f32 0.0, %v4498
        %v4500 = vpop.f32.mrf.mxu0
        %4501 = vdwg.mxu0
        %v4503 = vsel %vm1424, %v1352, 0
        %v4506 = vsel %vm1424, %v1353, 0
        %4508 = vmatprep.subr.mxu0 0.0
        %4509 = vmatpush1.msra.mxu0 0.0
        %4510 = vmatprep.subr.mxu0 0.0
        %4511 = vmatpush1.msra.mxu0 0.0
        %4512 = vmatprep.subr.mxu0 0.0
        %4513 = vmatpush1.msra.mxu0 0.0
        %4514 = vmatprep.subr.mxu0 0.0
        %4515 = vmatpush1.msra.mxu0 0.0
        %4516 = vmatprep.subr.mxu0 0.0
        %4517 = vmatpush1.msra.mxu0 0.0
        %4518 = vmatprep.subr.mxu0 0.0
        %4519 = vmatpush1.msra.mxu0 0.0
        %4520 = vmatprep.subr.mxu0 0.0
        %4521 = vmatpush1.msra.mxu0 0.0
        %4522 = vmatprep.subr.mxu0 0.0
        %4523 = vmatpush1.msra.mxu0 0.0
        %4524 = vmatprep.subr.mxu0 0.0
        %4525 = vmatpush1.msra.mxu0 0.0
        %4526 = vmatprep.subr.mxu0 0.0
        %4527 = vmatpush1.msra.mxu0 0.0
        %4528 = vmatprep.subr.mxu0 0.0
        %4529 = vmatpush1.msra.mxu0 0.0
        %4530 = vmatprep.subr.mxu0 0.0
        %4531 = vmatpush1.msra.mxu0 0.0
        %4532 = vmatprep.subr.mxu0 0.0
        %4533 = vmatpush1.msra.mxu0 0.0
        %4534 = vmatprep.subr.mxu0 0.0
        %4535 = vmatpush1.msra.mxu0 0.0
        %4536 = vmatprep.subr.mxu0 0.0
        %4537 = vmatpush1.msra.mxu0 %v3444
        %4538 = vmatprep.subr.mxu0 0.0
        %4539 = vmatpush1.msra.mxu0 %v3443
        %4540 = vmatprep.subr.mxu0 0.0
        %4541 = vmatpush2.msra.mxu0 0.0
        %4542 = vmatprep.subr.mxu0 0.0
        %4543 = vmatpush2.msra.mxu0 0.0
        %4544 = vmatprep.subr.mxu0 0.0
        %4545 = vmatpush2.msra.mxu0 0.0
        %4546 = vmatprep.subr.mxu0 0.0
        %4547 = vmatpush2.msra.mxu0 0.0
        %4548 = vmatprep.subr.mxu0 0.0
        %4549 = vmatpush2.msra.mxu0 0.0
        %4550 = vmatprep.subr.mxu0 0.0
        %4551 = vmatpush2.msra.mxu0 0.0
        %4552 = vmatprep.subr.mxu0 0.0
        %4553 = vmatpush2.msra.mxu0 0.0
        %4554 = vmatprep.subr.mxu0 0.0
        %4555 = vmatpush2.msra.mxu0 0.0
        %4556 = vmatprep.subr.mxu0 0.0
        %4557 = vmatpush2.msra.mxu0 0.0
        %4558 = vmatprep.subr.mxu0 0.0
        %4559 = vmatpush2.msra.mxu0 0.0
        %4560 = vmatprep.subr.mxu0 0.0
        %4561 = vmatpush2.msra.mxu0 0.0
        %4562 = vmatprep.subr.mxu0 0.0
        %4563 = vmatpush2.msra.mxu0 0.0
        %4564 = vmatprep.subr.mxu0 0.0
        %4565 = vmatpush2.msra.mxu0 0.0
        %4566 = vmatprep.subr.mxu0 0.0
        %4567 = vmatpush2.msra.mxu0 0.0
        %4568 = vmatprep.subr.mxu0 0.0
        %4569 = vmatpush2.msra.mxu0 0.0
        %4570 = vmatprep.subr.mxu0 0.0
        %4571 = vmatpush2.msra.mxu0 0.0
        %4572 = vmatprep.mubr.f32.mxu0 0.0
        %4573 = vmatmul.mubr.f32.gmra.mxu0 %v4503
        %v4574 = vpop.f32.mrf.mxu0
        %v4575 = vadd.f32 0.0, %v4574
        %v4576 = vpop.f32.mrf.mxu0
        %4577 = vmatprep.mubr.f32.mxu0 0.0
        %4578 = vmatmul.mubr.f32.gmra.mxu0 %v4506
        %v4579 = vpop.f32.mrf.mxu0
        %v4580 = vadd.f32 0.0, %v4579
        %v4581 = vpop.f32.mrf.mxu0
        %4582 = vdwg.mxu0
        %v4584 = vsel %vm1424, %v1354, 0
        %v4587 = vsel %vm1424, %v1355, 0
        %4589 = vmatprep.subr.mxu0 0.0
        %4590 = vmatpush1.msra.mxu0 0.0
        %4591 = vmatprep.subr.mxu0 0.0
        %4592 = vmatpush1.msra.mxu0 0.0
        %4593 = vmatprep.subr.mxu0 0.0
        %4594 = vmatpush1.msra.mxu0 0.0
        %4595 = vmatprep.subr.mxu0 0.0
        %4596 = vmatpush1.msra.mxu0 0.0
        %4597 = vmatprep.subr.mxu0 0.0
        %4598 = vmatpush1.msra.mxu0 0.0
        %4599 = vmatprep.subr.mxu0 0.0
        %4600 = vmatpush1.msra.mxu0 0.0
        %4601 = vmatprep.subr.mxu0 0.0
        %4602 = vmatpush1.msra.mxu0 0.0
        %4603 = vmatprep.subr.mxu0 0.0
        %4604 = vmatpush1.msra.mxu0 0.0
        %4605 = vmatprep.subr.mxu0 0.0
        %4606 = vmatpush1.msra.mxu0 0.0
        %4607 = vmatprep.subr.mxu0 0.0
        %4608 = vmatpush1.msra.mxu0 0.0
        %4609 = vmatprep.subr.mxu0 0.0
        %4610 = vmatpush1.msra.mxu0 0.0
        %4611 = vmatprep.subr.mxu0 0.0
        %4612 = vmatpush1.msra.mxu0 0.0
        %4613 = vmatprep.subr.mxu0 0.0
        %4614 = vmatpush1.msra.mxu0 0.0
        %4615 = vmatprep.subr.mxu0 0.0
        %4616 = vmatpush1.msra.mxu0 0.0
        %4617 = vmatprep.subr.mxu0 0.0
        %4618 = vmatpush1.msra.mxu0 %v3446
        %4619 = vmatprep.subr.mxu0 0.0
        %4620 = vmatpush1.msra.mxu0 %v3445
        %4621 = vmatprep.subr.mxu0 0.0
        %4622 = vmatpush2.msra.mxu0 0.0
        %4623 = vmatprep.subr.mxu0 0.0
        %4624 = vmatpush2.msra.mxu0 0.0
        %4625 = vmatprep.subr.mxu0 0.0
        %4626 = vmatpush2.msra.mxu0 0.0
        %4627 = vmatprep.subr.mxu0 0.0
        %4628 = vmatpush2.msra.mxu0 0.0
        %4629 = vmatprep.subr.mxu0 0.0
        %4630 = vmatpush2.msra.mxu0 0.0
        %4631 = vmatprep.subr.mxu0 0.0
        %4632 = vmatpush2.msra.mxu0 0.0
        %4633 = vmatprep.subr.mxu0 0.0
        %4634 = vmatpush2.msra.mxu0 0.0
        %4635 = vmatprep.subr.mxu0 0.0
        %4636 = vmatpush2.msra.mxu0 0.0
        %4637 = vmatprep.subr.mxu0 0.0
        %4638 = vmatpush2.msra.mxu0 0.0
        %4639 = vmatprep.subr.mxu0 0.0
        %4640 = vmatpush2.msra.mxu0 0.0
        %4641 = vmatprep.subr.mxu0 0.0
        %4642 = vmatpush2.msra.mxu0 0.0
        %4643 = vmatprep.subr.mxu0 0.0
        %4644 = vmatpush2.msra.mxu0 0.0
        %4645 = vmatprep.subr.mxu0 0.0
        %4646 = vmatpush2.msra.mxu0 0.0
        %4647 = vmatprep.subr.mxu0 0.0
        %4648 = vmatpush2.msra.mxu0 0.0
        %4649 = vmatprep.subr.mxu0 0.0
        %4650 = vmatpush2.msra.mxu0 0.0
        %4651 = vmatprep.subr.mxu0 0.0
        %4652 = vmatpush2.msra.mxu0 0.0
        %4653 = vmatprep.mubr.f32.mxu0 0.0
        %4654 = vmatmul.mubr.f32.gmra.mxu0 %v4584
        %v4655 = vpop.f32.mrf.mxu0
        %v4656 = vadd.f32 0.0, %v4655
        %v4657 = vpop.f32.mrf.mxu0
        %4658 = vmatprep.mubr.f32.mxu0 0.0
        %4659 = vmatmul.mubr.f32.gmra.mxu0 %v4587
        %v4660 = vpop.f32.mrf.mxu0
        %v4661 = vadd.f32 0.0, %v4660
        %v4662 = vpop.f32.mrf.mxu0
        %4663 = vdwg.mxu0
        %v4665 = vsel %vm1424, %v1356, 0
        %v4668 = vsel %vm1424, %v1357, 0
        %4670 = vmatprep.subr.mxu0 0.0
        %4671 = vmatpush1.msra.mxu0 0.0
        %4672 = vmatprep.subr.mxu0 0.0
        %4673 = vmatpush1.msra.mxu0 0.0
        %4674 = vmatprep.subr.mxu0 0.0
        %4675 = vmatpush1.msra.mxu0 0.0
        %4676 = vmatprep.subr.mxu0 0.0
        %4677 = vmatpush1.msra.mxu0 0.0
        %4678 = vmatprep.subr.mxu0 0.0
        %4679 = vmatpush1.msra.mxu0 0.0
        %4680 = vmatprep.subr.mxu0 0.0
        %4681 = vmatpush1.msra.mxu0 0.0
        %4682 = vmatprep.subr.mxu0 0.0
        %4683 = vmatpush1.msra.mxu0 0.0
        %4684 = vmatprep.subr.mxu0 0.0
        %4685 = vmatpush1.msra.mxu0 0.0
        %4686 = vmatprep.subr.mxu0 0.0
        %4687 = vmatpush1.msra.mxu0 0.0
        %4688 = vmatprep.subr.mxu0 0.0
        %4689 = vmatpush1.msra.mxu0 0.0
        %4690 = vmatprep.subr.mxu0 0.0
        %4691 = vmatpush1.msra.mxu0 0.0
        %4692 = vmatprep.subr.mxu0 0.0
        %4693 = vmatpush1.msra.mxu0 0.0
        %4694 = vmatprep.subr.mxu0 0.0
        %4695 = vmatpush1.msra.mxu0 0.0
        %4696 = vmatprep.subr.mxu0 0.0
        %4697 = vmatpush1.msra.mxu0 0.0
        %4698 = vmatprep.subr.mxu0 0.0
        %4699 = vmatpush1.msra.mxu0 %v3448
        %4700 = vmatprep.subr.mxu0 0.0
        %4701 = vmatpush1.msra.mxu0 %v3447
        %4702 = vmatprep.subr.mxu0 0.0
        %4703 = vmatpush2.msra.mxu0 0.0
        %4704 = vmatprep.subr.mxu0 0.0
        %4705 = vmatpush2.msra.mxu0 0.0
        %4706 = vmatprep.subr.mxu0 0.0
        %4707 = vmatpush2.msra.mxu0 0.0
        %4708 = vmatprep.subr.mxu0 0.0
        %4709 = vmatpush2.msra.mxu0 0.0
        %4710 = vmatprep.subr.mxu0 0.0
        %4711 = vmatpush2.msra.mxu0 0.0
        %4712 = vmatprep.subr.mxu0 0.0
        %4713 = vmatpush2.msra.mxu0 0.0
        %4714 = vmatprep.subr.mxu0 0.0
        %4715 = vmatpush2.msra.mxu0 0.0
        %4716 = vmatprep.subr.mxu0 0.0
        %4717 = vmatpush2.msra.mxu0 0.0
        %4718 = vmatprep.subr.mxu0 0.0
        %4719 = vmatpush2.msra.mxu0 0.0
        %4720 = vmatprep.subr.mxu0 0.0
        %4721 = vmatpush2.msra.mxu0 0.0
        %4722 = vmatprep.subr.mxu0 0.0
        %4723 = vmatpush2.msra.mxu0 0.0
        %4724 = vmatprep.subr.mxu0 0.0
        %4725 = vmatpush2.msra.mxu0 0.0
        %4726 = vmatprep.subr.mxu0 0.0
        %4727 = vmatpush2.msra.mxu0 0.0
        %4728 = vmatprep.subr.mxu0 0.0
        %4729 = vmatpush2.msra.mxu0 0.0
        %4730 = vmatprep.subr.mxu0 0.0
        %4731 = vmatpush2.msra.mxu0 0.0
        %4732 = vmatprep.subr.mxu0 0.0
        %4733 = vmatpush2.msra.mxu0 0.0
        %4734 = vmatprep.mubr.f32.mxu0 0.0
        %4735 = vmatmul.mubr.f32.gmra.mxu0 %v4665
        %v4736 = vpop.f32.mrf.mxu0
        %v4737 = vadd.f32 0.0, %v4736
        %v4738 = vpop.f32.mrf.mxu0
        %4739 = vmatprep.mubr.f32.mxu0 0.0
        %4740 = vmatmul.mubr.f32.gmra.mxu0 %v4668
        %v4741 = vpop.f32.mrf.mxu0
        %v4742 = vadd.f32 0.0, %v4741
        %v4743 = vpop.f32.mrf.mxu0
        %4744 = vdwg.mxu0
        %v4745 = vadd.f32 %v1323, %v1342
        %v4746 = vadd.f32 %v1324, %v1343
        %v4747 = vadd.f32 %v1325, %v1344
        %v4748 = vadd.f32 %v1326, %v1345
        %v4749 = vadd.f32 %v1327, %v1346
        %v4750 = vadd.f32 %v1328, %v1347
        %v4751 = vadd.f32 %v1329, %v1348
        %v4752 = vadd.f32 %v1330, %v1349
        %v4753 = vadd.f32 %v1331, %v1350
        %v4754 = vadd.f32 %v1332, %v1351
        %v4755 = vadd.f32 %v1333, %v1352
        %v4756 = vadd.f32 %v1334, %v1353
        %v4757 = vadd.f32 %v1335, %v1354
        %v4758 = vadd.f32 %v1336, %v1355
        %v4759 = vadd.f32 %v1337, %v1356
        %v4760 = vadd.f32 %v1338, %v1357
        %v4761 = vadd.f32 %v3401, %v3433
        %v4762 = vadd.f32 %v3402, %v3434
        %v4763 = vadd.f32 %v3403, %v3435
        %v4764 = vadd.f32 %v3404, %v3436
        %v4765 = vadd.f32 %v3405, %v3437
        %v4766 = vadd.f32 %v3406, %v3438
        %v4767 = vadd.f32 %v3407, %v3439
        %v4768 = vadd.f32 %v3408, %v3440
        %v4769 = vadd.f32 %v3409, %v3441
        %v4770 = vadd.f32 %v3410, %v3442
        %v4771 = vadd.f32 %v3411, %v3443
        %v4772 = vadd.f32 %v3412, %v3444
        %v4773 = vadd.f32 %v3413, %v3445
        %v4774 = vadd.f32 %v3414, %v3446
        %v4775 = vadd.f32 %v3415, %v3447
        %v4776 = vadd.f32 %v3416, %v3448
        %v4778 = vsel %vm1424, %v4745, 0
        %v4781 = vsel %vm1424, %v4746, 0
        %4783 = vmatprep.subr.mxu0 0.0
        %4784 = vmatpush1.msra.mxu0 0.0
        %4785 = vmatprep.subr.mxu0 0.0
        %4786 = vmatpush1.msra.mxu0 0.0
        %4787 = vmatprep.subr.mxu0 0.0
        %4788 = vmatpush1.msra.mxu0 0.0
        %4789 = vmatprep.subr.mxu0 0.0
        %4790 = vmatpush1.msra.mxu0 0.0
        %4791 = vmatprep.subr.mxu0 0.0
        %4792 = vmatpush1.msra.mxu0 0.0
        %4793 = vmatprep.subr.mxu0 0.0
        %4794 = vmatpush1.msra.mxu0 0.0
        %4795 = vmatprep.subr.mxu0 0.0
        %4796 = vmatpush1.msra.mxu0 0.0
        %4797 = vmatprep.subr.mxu0 0.0
        %4798 = vmatpush1.msra.mxu0 0.0
        %4799 = vmatprep.subr.mxu0 0.0
        %4800 = vmatpush1.msra.mxu0 0.0
        %4801 = vmatprep.subr.mxu0 0.0
        %4802 = vmatpush1.msra.mxu0 0.0
        %4803 = vmatprep.subr.mxu0 0.0
        %4804 = vmatpush1.msra.mxu0 0.0
        %4805 = vmatprep.subr.mxu0 0.0
        %4806 = vmatpush1.msra.mxu0 0.0
        %4807 = vmatprep.subr.mxu0 0.0
        %4808 = vmatpush1.msra.mxu0 0.0
        %4809 = vmatprep.subr.mxu0 0.0
        %4810 = vmatpush1.msra.mxu0 0.0
        %4811 = vmatprep.subr.mxu0 0.0
        %4812 = vmatpush1.msra.mxu0 %v4762
        %4813 = vmatprep.subr.mxu0 0.0
        %4814 = vmatpush1.msra.mxu0 %v4761
        %4815 = vmatprep.subr.mxu0 0.0
        %4816 = vmatpush2.msra.mxu0 0.0
        %4817 = vmatprep.subr.mxu0 0.0
        %4818 = vmatpush2.msra.mxu0 0.0
        %4819 = vmatprep.subr.mxu0 0.0
        %4820 = vmatpush2.msra.mxu0 0.0
        %4821 = vmatprep.subr.mxu0 0.0
        %4822 = vmatpush2.msra.mxu0 0.0
        %4823 = vmatprep.subr.mxu0 0.0
        %4824 = vmatpush2.msra.mxu0 0.0
        %4825 = vmatprep.subr.mxu0 0.0
        %4826 = vmatpush2.msra.mxu0 0.0
        %4827 = vmatprep.subr.mxu0 0.0
        %4828 = vmatpush2.msra.mxu0 0.0
        %4829 = vmatprep.subr.mxu0 0.0
        %4830 = vmatpush2.msra.mxu0 0.0
        %4831 = vmatprep.subr.mxu0 0.0
        %4832 = vmatpush2.msra.mxu0 0.0
        %4833 = vmatprep.subr.mxu0 0.0
        %4834 = vmatpush2.msra.mxu0 0.0
        %4835 = vmatprep.subr.mxu0 0.0
        %4836 = vmatpush2.msra.mxu0 0.0
        %4837 = vmatprep.subr.mxu0 0.0
        %4838 = vmatpush2.msra.mxu0 0.0
        %4839 = vmatprep.subr.mxu0 0.0
        %4840 = vmatpush2.msra.mxu0 0.0
        %4841 = vmatprep.subr.mxu0 0.0
        %4842 = vmatpush2.msra.mxu0 0.0
        %4843 = vmatprep.subr.mxu0 0.0
        %4844 = vmatpush2.msra.mxu0 0.0
        %4845 = vmatprep.subr.mxu0 0.0
        %4846 = vmatpush2.msra.mxu0 0.0
        %4847 = vmatprep.mubr.f32.mxu0 0.0
        %4848 = vmatmul.mubr.f32.gmra.mxu0 %v4778
        %v4849 = vpop.f32.mrf.mxu0
        %v4850 = vadd.f32 0.0, %v4849
        %v4851 = vpop.f32.mrf.mxu0
        %4852 = vmatprep.mubr.f32.mxu0 0.0
        %4853 = vmatmul.mubr.f32.gmra.mxu0 %v4781
        %v4854 = vpop.f32.mrf.mxu0
        %v4855 = vadd.f32 0.0, %v4854
        %v4856 = vpop.f32.mrf.mxu0
        %4857 = vdwg.mxu0
        %v4859 = vsel %vm1424, %v4747, 0
        %v4862 = vsel %vm1424, %v4748, 0
        %4864 = vmatprep.subr.mxu0 0.0
        %4865 = vmatpush1.msra.mxu0 0.0
        %4866 = vmatprep.subr.mxu0 0.0
        %4867 = vmatpush1.msra.mxu0 0.0
        %4868 = vmatprep.subr.mxu0 0.0
        %4869 = vmatpush1.msra.mxu0 0.0
        %4870 = vmatprep.subr.mxu0 0.0
        %4871 = vmatpush1.msra.mxu0 0.0
        %4872 = vmatprep.subr.mxu0 0.0
        %4873 = vmatpush1.msra.mxu0 0.0
        %4874 = vmatprep.subr.mxu0 0.0
        %4875 = vmatpush1.msra.mxu0 0.0
        %4876 = vmatprep.subr.mxu0 0.0
        %4877 = vmatpush1.msra.mxu0 0.0
        %4878 = vmatprep.subr.mxu0 0.0
        %4879 = vmatpush1.msra.mxu0 0.0
        %4880 = vmatprep.subr.mxu0 0.0
        %4881 = vmatpush1.msra.mxu0 0.0
        %4882 = vmatprep.subr.mxu0 0.0
        %4883 = vmatpush1.msra.mxu0 0.0
        %4884 = vmatprep.subr.mxu0 0.0
        %4885 = vmatpush1.msra.mxu0 0.0
        %4886 = vmatprep.subr.mxu0 0.0
        %4887 = vmatpush1.msra.mxu0 0.0
        %4888 = vmatprep.subr.mxu0 0.0
        %4889 = vmatpush1.msra.mxu0 0.0
        %4890 = vmatprep.subr.mxu0 0.0
        %4891 = vmatpush1.msra.mxu0 0.0
        %4892 = vmatprep.subr.mxu0 0.0
        %4893 = vmatpush1.msra.mxu0 %v4764
        %4894 = vmatprep.subr.mxu0 0.0
        %4895 = vmatpush1.msra.mxu0 %v4763
        %4896 = vmatprep.subr.mxu0 0.0
        %4897 = vmatpush2.msra.mxu0 0.0
        %4898 = vmatprep.subr.mxu0 0.0
        %4899 = vmatpush2.msra.mxu0 0.0
        %4900 = vmatprep.subr.mxu0 0.0
        %4901 = vmatpush2.msra.mxu0 0.0
        %4902 = vmatprep.subr.mxu0 0.0
        %4903 = vmatpush2.msra.mxu0 0.0
        %4904 = vmatprep.subr.mxu0 0.0
        %4905 = vmatpush2.msra.mxu0 0.0
        %4906 = vmatprep.subr.mxu0 0.0
        %4907 = vmatpush2.msra.mxu0 0.0
        %4908 = vmatprep.subr.mxu0 0.0
        %4909 = vmatpush2.msra.mxu0 0.0
        %4910 = vmatprep.subr.mxu0 0.0
        %4911 = vmatpush2.msra.mxu0 0.0
        %4912 = vmatprep.subr.mxu0 0.0
        %4913 = vmatpush2.msra.mxu0 0.0
        %4914 = vmatprep.subr.mxu0 0.0
        %4915 = vmatpush2.msra.mxu0 0.0
        %4916 = vmatprep.subr.mxu0 0.0
        %4917 = vmatpush2.msra.mxu0 0.0
        %4918 = vmatprep.subr.mxu0 0.0
        %4919 = vmatpush2.msra.mxu0 0.0
        %4920 = vmatprep.subr.mxu0 0.0
        %4921 = vmatpush2.msra.mxu0 0.0
        %4922 = vmatprep.subr.mxu0 0.0
        %4923 = vmatpush2.msra.mxu0 0.0
        %4924 = vmatprep.subr.mxu0 0.0
        %4925 = vmatpush2.msra.mxu0 0.0
        %4926 = vmatprep.subr.mxu0 0.0
        %4927 = vmatpush2.msra.mxu0 0.0
        %4928 = vmatprep.mubr.f32.mxu0 0.0
        %4929 = vmatmul.mubr.f32.gmra.mxu0 %v4859
        %v4930 = vpop.f32.mrf.mxu0
        %v4931 = vadd.f32 0.0, %v4930
        %v4932 = vpop.f32.mrf.mxu0
        %4933 = vmatprep.mubr.f32.mxu0 0.0
        %4934 = vmatmul.mubr.f32.gmra.mxu0 %v4862
        %v4935 = vpop.f32.mrf.mxu0
        %v4936 = vadd.f32 0.0, %v4935
        %v4937 = vpop.f32.mrf.mxu0
        %4938 = vdwg.mxu0
        %v4940 = vsel %vm1424, %v4749, 0
        %v4943 = vsel %vm1424, %v4750, 0
        %4945 = vmatprep.subr.mxu0 0.0
        %4946 = vmatpush1.msra.mxu0 0.0
        %4947 = vmatprep.subr.mxu0 0.0
        %4948 = vmatpush1.msra.mxu0 0.0
        %4949 = vmatprep.subr.mxu0 0.0
        %4950 = vmatpush1.msra.mxu0 0.0
        %4951 = vmatprep.subr.mxu0 0.0
        %4952 = vmatpush1.msra.mxu0 0.0
        %4953 = vmatprep.subr.mxu0 0.0
        %4954 = vmatpush1.msra.mxu0 0.0
        %4955 = vmatprep.subr.mxu0 0.0
        %4956 = vmatpush1.msra.mxu0 0.0
        %4957 = vmatprep.subr.mxu0 0.0
        %4958 = vmatpush1.msra.mxu0 0.0
        %4959 = vmatprep.subr.mxu0 0.0
        %4960 = vmatpush1.msra.mxu0 0.0
        %4961 = vmatprep.subr.mxu0 0.0
        %4962 = vmatpush1.msra.mxu0 0.0
        %4963 = vmatprep.subr.mxu0 0.0
        %4964 = vmatpush1.msra.mxu0 0.0
        %4965 = vmatprep.subr.mxu0 0.0
        %4966 = vmatpush1.msra.mxu0 0.0
        %4967 = vmatprep.subr.mxu0 0.0
        %4968 = vmatpush1.msra.mxu0 0.0
        %4969 = vmatprep.subr.mxu0 0.0
        %4970 = vmatpush1.msra.mxu0 0.0
        %4971 = vmatprep.subr.mxu0 0.0
        %4972 = vmatpush1.msra.mxu0 0.0
        %4973 = vmatprep.subr.mxu0 0.0
        %4974 = vmatpush1.msra.mxu0 %v4766
        %4975 = vmatprep.subr.mxu0 0.0
        %4976 = vmatpush1.msra.mxu0 %v4765
        %4977 = vmatprep.subr.mxu0 0.0
        %4978 = vmatpush2.msra.mxu0 0.0
        %4979 = vmatprep.subr.mxu0 0.0
        %4980 = vmatpush2.msra.mxu0 0.0
        %4981 = vmatprep.subr.mxu0 0.0
        %4982 = vmatpush2.msra.mxu0 0.0
        %4983 = vmatprep.subr.mxu0 0.0
        %4984 = vmatpush2.msra.mxu0 0.0
        %4985 = vmatprep.subr.mxu0 0.0
        %4986 = vmatpush2.msra.mxu0 0.0
        %4987 = vmatprep.subr.mxu0 0.0
        %4988 = vmatpush2.msra.mxu0 0.0
        %4989 = vmatprep.subr.mxu0 0.0
        %4990 = vmatpush2.msra.mxu0 0.0
        %4991 = vmatprep.subr.mxu0 0.0
        %4992 = vmatpush2.msra.mxu0 0.0
        %4993 = vmatprep.subr.mxu0 0.0
        %4994 = vmatpush2.msra.mxu0 0.0
        %4995 = vmatprep.subr.mxu0 0.0
        %4996 = vmatpush2.msra.mxu0 0.0
        %4997 = vmatprep.subr.mxu0 0.0
        %4998 = vmatpush2.msra.mxu0 0.0
        %4999 = vmatprep.subr.mxu0 0.0
        %5000 = vmatpush2.msra.mxu0 0.0
        %5001 = vmatprep.subr.mxu0 0.0
        %5002 = vmatpush2.msra.mxu0 0.0
        %5003 = vmatprep.subr.mxu0 0.0
        %5004 = vmatpush2.msra.mxu0 0.0
        %5005 = vmatprep.subr.mxu0 0.0
        %5006 = vmatpush2.msra.mxu0 0.0
        %5007 = vmatprep.subr.mxu0 0.0
        %5008 = vmatpush2.msra.mxu0 0.0
        %5009 = vmatprep.mubr.f32.mxu0 0.0
        %5010 = vmatmul.mubr.f32.gmra.mxu0 %v4940
        %v5011 = vpop.f32.mrf.mxu0
        %v5012 = vadd.f32 0.0, %v5011
        %v5013 = vpop.f32.mrf.mxu0
        %5014 = vmatprep.mubr.f32.mxu0 0.0
        %5015 = vmatmul.mubr.f32.gmra.mxu0 %v4943
        %v5016 = vpop.f32.mrf.mxu0
        %v5017 = vadd.f32 0.0, %v5016
        %v5018 = vpop.f32.mrf.mxu0
        %5019 = vdwg.mxu0
        %v5021 = vsel %vm1424, %v4751, 0
        %v5024 = vsel %vm1424, %v4752, 0
        %5026 = vmatprep.subr.mxu0 0.0
        %5027 = vmatpush1.msra.mxu0 0.0
        %5028 = vmatprep.subr.mxu0 0.0
        %5029 = vmatpush1.msra.mxu0 0.0
        %5030 = vmatprep.subr.mxu0 0.0
        %5031 = vmatpush1.msra.mxu0 0.0
        %5032 = vmatprep.subr.mxu0 0.0
        %5033 = vmatpush1.msra.mxu0 0.0
        %5034 = vmatprep.subr.mxu0 0.0
        %5035 = vmatpush1.msra.mxu0 0.0
        %5036 = vmatprep.subr.mxu0 0.0
        %5037 = vmatpush1.msra.mxu0 0.0
        %5038 = vmatprep.subr.mxu0 0.0
        %5039 = vmatpush1.msra.mxu0 0.0
        %5040 = vmatprep.subr.mxu0 0.0
        %5041 = vmatpush1.msra.mxu0 0.0
        %5042 = vmatprep.subr.mxu0 0.0
        %5043 = vmatpush1.msra.mxu0 0.0
        %5044 = vmatprep.subr.mxu0 0.0
        %5045 = vmatpush1.msra.mxu0 0.0
        %5046 = vmatprep.subr.mxu0 0.0
        %5047 = vmatpush1.msra.mxu0 0.0
        %5048 = vmatprep.subr.mxu0 0.0
        %5049 = vmatpush1.msra.mxu0 0.0
        %5050 = vmatprep.subr.mxu0 0.0
        %5051 = vmatpush1.msra.mxu0 0.0
        %5052 = vmatprep.subr.mxu0 0.0
        %5053 = vmatpush1.msra.mxu0 0.0
        %5054 = vmatprep.subr.mxu0 0.0
        %5055 = vmatpush1.msra.mxu0 %v4768
        %5056 = vmatprep.subr.mxu0 0.0
        %5057 = vmatpush1.msra.mxu0 %v4767
        %5058 = vmatprep.subr.mxu0 0.0
        %5059 = vmatpush2.msra.mxu0 0.0
        %5060 = vmatprep.subr.mxu0 0.0
        %5061 = vmatpush2.msra.mxu0 0.0
        %5062 = vmatprep.subr.mxu0 0.0
        %5063 = vmatpush2.msra.mxu0 0.0
        %5064 = vmatprep.subr.mxu0 0.0
        %5065 = vmatpush2.msra.mxu0 0.0
        %5066 = vmatprep.subr.mxu0 0.0
        %5067 = vmatpush2.msra.mxu0 0.0
        %5068 = vmatprep.subr.mxu0 0.0
        %5069 = vmatpush2.msra.mxu0 0.0
        %5070 = vmatprep.subr.mxu0 0.0
        %5071 = vmatpush2.msra.mxu0 0.0
        %5072 = vmatprep.subr.mxu0 0.0
        %5073 = vmatpush2.msra.mxu0 0.0
        %5074 = vmatprep.subr.mxu0 0.0
        %5075 = vmatpush2.msra.mxu0 0.0
        %5076 = vmatprep.subr.mxu0 0.0
        %5077 = vmatpush2.msra.mxu0 0.0
        %5078 = vmatprep.subr.mxu0 0.0
        %5079 = vmatpush2.msra.mxu0 0.0
        %5080 = vmatprep.subr.mxu0 0.0
        %5081 = vmatpush2.msra.mxu0 0.0
        %5082 = vmatprep.subr.mxu0 0.0
        %5083 = vmatpush2.msra.mxu0 0.0
        %5084 = vmatprep.subr.mxu0 0.0
        %5085 = vmatpush2.msra.mxu0 0.0
        %5086 = vmatprep.subr.mxu0 0.0
        %5087 = vmatpush2.msra.mxu0 0.0
        %5088 = vmatprep.subr.mxu0 0.0
        %5089 = vmatpush2.msra.mxu0 0.0
        %5090 = vmatprep.mubr.f32.mxu0 0.0
        %5091 = vmatmul.mubr.f32.gmra.mxu0 %v5021
        %v5092 = vpop.f32.mrf.mxu0
        %v5093 = vadd.f32 0.0, %v5092
        %v5094 = vpop.f32.mrf.mxu0
        %5095 = vmatprep.mubr.f32.mxu0 0.0
        %5096 = vmatmul.mubr.f32.gmra.mxu0 %v5024
        %v5097 = vpop.f32.mrf.mxu0
        %v5098 = vadd.f32 0.0, %v5097
        %v5099 = vpop.f32.mrf.mxu0
        %5100 = vdwg.mxu0
        %v5102 = vsel %vm1424, %v4753, 0
        %v5105 = vsel %vm1424, %v4754, 0
        %5107 = vmatprep.subr.mxu0 0.0
        %5108 = vmatpush1.msra.mxu0 0.0
        %5109 = vmatprep.subr.mxu0 0.0
        %5110 = vmatpush1.msra.mxu0 0.0
        %5111 = vmatprep.subr.mxu0 0.0
        %5112 = vmatpush1.msra.mxu0 0.0
        %5113 = vmatprep.subr.mxu0 0.0
        %5114 = vmatpush1.msra.mxu0 0.0
        %5115 = vmatprep.subr.mxu0 0.0
        %5116 = vmatpush1.msra.mxu0 0.0
        %5117 = vmatprep.subr.mxu0 0.0
        %5118 = vmatpush1.msra.mxu0 0.0
        %5119 = vmatprep.subr.mxu0 0.0
        %5120 = vmatpush1.msra.mxu0 0.0
        %5121 = vmatprep.subr.mxu0 0.0
        %5122 = vmatpush1.msra.mxu0 0.0
        %5123 = vmatprep.subr.mxu0 0.0
        %5124 = vmatpush1.msra.mxu0 0.0
        %5125 = vmatprep.subr.mxu0 0.0
        %5126 = vmatpush1.msra.mxu0 0.0
        %5127 = vmatprep.subr.mxu0 0.0
        %5128 = vmatpush1.msra.mxu0 0.0
        %5129 = vmatprep.subr.mxu0 0.0
        %5130 = vmatpush1.msra.mxu0 0.0
        %5131 = vmatprep.subr.mxu0 0.0
        %5132 = vmatpush1.msra.mxu0 0.0
        %5133 = vmatprep.subr.mxu0 0.0
        %5134 = vmatpush1.msra.mxu0 0.0
        %5135 = vmatprep.subr.mxu0 0.0
        %5136 = vmatpush1.msra.mxu0 %v4770
        %5137 = vmatprep.subr.mxu0 0.0
        %5138 = vmatpush1.msra.mxu0 %v4769
        %5139 = vmatprep.subr.mxu0 0.0
        %5140 = vmatpush2.msra.mxu0 0.0
        %5141 = vmatprep.subr.mxu0 0.0
        %5142 = vmatpush2.msra.mxu0 0.0
        %5143 = vmatprep.subr.mxu0 0.0
        %5144 = vmatpush2.msra.mxu0 0.0
        %5145 = vmatprep.subr.mxu0 0.0
        %5146 = vmatpush2.msra.mxu0 0.0
        %5147 = vmatprep.subr.mxu0 0.0
        %5148 = vmatpush2.msra.mxu0 0.0
        %5149 = vmatprep.subr.mxu0 0.0
        %5150 = vmatpush2.msra.mxu0 0.0
        %5151 = vmatprep.subr.mxu0 0.0
        %5152 = vmatpush2.msra.mxu0 0.0
        %5153 = vmatprep.subr.mxu0 0.0
        %5154 = vmatpush2.msra.mxu0 0.0
        %5155 = vmatprep.subr.mxu0 0.0
        %5156 = vmatpush2.msra.mxu0 0.0
        %5157 = vmatprep.subr.mxu0 0.0
        %5158 = vmatpush2.msra.mxu0 0.0
        %5159 = vmatprep.subr.mxu0 0.0
        %5160 = vmatpush2.msra.mxu0 0.0
        %5161 = vmatprep.subr.mxu0 0.0
        %5162 = vmatpush2.msra.mxu0 0.0
        %5163 = vmatprep.subr.mxu0 0.0
        %5164 = vmatpush2.msra.mxu0 0.0
        %5165 = vmatprep.subr.mxu0 0.0
        %5166 = vmatpush2.msra.mxu0 0.0
        %5167 = vmatprep.subr.mxu0 0.0
        %5168 = vmatpush2.msra.mxu0 0.0
        %5169 = vmatprep.subr.mxu0 0.0
        %5170 = vmatpush2.msra.mxu0 0.0
        %5171 = vmatprep.mubr.f32.mxu0 0.0
        %5172 = vmatmul.mubr.f32.gmra.mxu0 %v5102
        %v5173 = vpop.f32.mrf.mxu0
        %v5174 = vadd.f32 0.0, %v5173
        %v5175 = vpop.f32.mrf.mxu0
        %5176 = vmatprep.mubr.f32.mxu0 0.0
        %5177 = vmatmul.mubr.f32.gmra.mxu0 %v5105
        %v5178 = vpop.f32.mrf.mxu0
        %v5179 = vadd.f32 0.0, %v5178
        %v5180 = vpop.f32.mrf.mxu0
        %5181 = vdwg.mxu0
        %v5183 = vsel %vm1424, %v4755, 0
        %v5186 = vsel %vm1424, %v4756, 0
        %5188 = vmatprep.subr.mxu0 0.0
        %5189 = vmatpush1.msra.mxu0 0.0
        %5190 = vmatprep.subr.mxu0 0.0
        %5191 = vmatpush1.msra.mxu0 0.0
        %5192 = vmatprep.subr.mxu0 0.0
        %5193 = vmatpush1.msra.mxu0 0.0
        %5194 = vmatprep.subr.mxu0 0.0
        %5195 = vmatpush1.msra.mxu0 0.0
        %5196 = vmatprep.subr.mxu0 0.0
        %5197 = vmatpush1.msra.mxu0 0.0
        %5198 = vmatprep.subr.mxu0 0.0
        %5199 = vmatpush1.msra.mxu0 0.0
        %5200 = vmatprep.subr.mxu0 0.0
        %5201 = vmatpush1.msra.mxu0 0.0
        %5202 = vmatprep.subr.mxu0 0.0
        %5203 = vmatpush1.msra.mxu0 0.0
        %5204 = vmatprep.subr.mxu0 0.0
        %5205 = vmatpush1.msra.mxu0 0.0
        %5206 = vmatprep.subr.mxu0 0.0
        %5207 = vmatpush1.msra.mxu0 0.0
        %5208 = vmatprep.subr.mxu0 0.0
        %5209 = vmatpush1.msra.mxu0 0.0
        %5210 = vmatprep.subr.mxu0 0.0
        %5211 = vmatpush1.msra.mxu0 0.0
        %5212 = vmatprep.subr.mxu0 0.0
        %5213 = vmatpush1.msra.mxu0 0.0
        %5214 = vmatprep.subr.mxu0 0.0
        %5215 = vmatpush1.msra.mxu0 0.0
        %5216 = vmatprep.subr.mxu0 0.0
        %5217 = vmatpush1.msra.mxu0 %v4772
        %5218 = vmatprep.subr.mxu0 0.0
        %5219 = vmatpush1.msra.mxu0 %v4771
        %5220 = vmatprep.subr.mxu0 0.0
        %5221 = vmatpush2.msra.mxu0 0.0
        %5222 = vmatprep.subr.mxu0 0.0
        %5223 = vmatpush2.msra.mxu0 0.0
        %5224 = vmatprep.subr.mxu0 0.0
        %5225 = vmatpush2.msra.mxu0 0.0
        %5226 = vmatprep.subr.mxu0 0.0
        %5227 = vmatpush2.msra.mxu0 0.0
        %5228 = vmatprep.subr.mxu0 0.0
        %5229 = vmatpush2.msra.mxu0 0.0
        %5230 = vmatprep.subr.mxu0 0.0
        %5231 = vmatpush2.msra.mxu0 0.0
        %5232 = vmatprep.subr.mxu0 0.0
        %5233 = vmatpush2.msra.mxu0 0.0
        %5234 = vmatprep.subr.mxu0 0.0
        %5235 = vmatpush2.msra.mxu0 0.0
        %5236 = vmatprep.subr.mxu0 0.0
        %5237 = vmatpush2.msra.mxu0 0.0
        %5238 = vmatprep.subr.mxu0 0.0
        %5239 = vmatpush2.msra.mxu0 0.0
        %5240 = vmatprep.subr.mxu0 0.0
        %5241 = vmatpush2.msra.mxu0 0.0
        %5242 = vmatprep.subr.mxu0 0.0
        %5243 = vmatpush2.msra.mxu0 0.0
        %5244 = vmatprep.subr.mxu0 0.0
        %5245 = vmatpush2.msra.mxu0 0.0
        %5246 = vmatprep.subr.mxu0 0.0
        %5247 = vmatpush2.msra.mxu0 0.0
        %5248 = vmatprep.subr.mxu0 0.0
        %5249 = vmatpush2.msra.mxu0 0.0
        %5250 = vmatprep.subr.mxu0 0.0
        %5251 = vmatpush2.msra.mxu0 0.0
        %5252 = vmatprep.mubr.f32.mxu0 0.0
        %5253 = vmatmul.mubr.f32.gmra.mxu0 %v5183
        %v5254 = vpop.f32.mrf.mxu0
        %v5255 = vadd.f32 0.0, %v5254
        %v5256 = vpop.f32.mrf.mxu0
        %5257 = vmatprep.mubr.f32.mxu0 0.0
        %5258 = vmatmul.mubr.f32.gmra.mxu0 %v5186
        %v5259 = vpop.f32.mrf.mxu0
        %v5260 = vadd.f32 0.0, %v5259
        %v5261 = vpop.f32.mrf.mxu0
        %5262 = vdwg.mxu0
        %v5264 = vsel %vm1424, %v4757, 0
        %v5267 = vsel %vm1424, %v4758, 0
        %5269 = vmatprep.subr.mxu0 0.0
        %5270 = vmatpush1.msra.mxu0 0.0
        %5271 = vmatprep.subr.mxu0 0.0
        %5272 = vmatpush1.msra.mxu0 0.0
        %5273 = vmatprep.subr.mxu0 0.0
        %5274 = vmatpush1.msra.mxu0 0.0
        %5275 = vmatprep.subr.mxu0 0.0
        %5276 = vmatpush1.msra.mxu0 0.0
        %5277 = vmatprep.subr.mxu0 0.0
        %5278 = vmatpush1.msra.mxu0 0.0
        %5279 = vmatprep.subr.mxu0 0.0
        %5280 = vmatpush1.msra.mxu0 0.0
        %5281 = vmatprep.subr.mxu0 0.0
        %5282 = vmatpush1.msra.mxu0 0.0
        %5283 = vmatprep.subr.mxu0 0.0
        %5284 = vmatpush1.msra.mxu0 0.0
        %5285 = vmatprep.subr.mxu0 0.0
        %5286 = vmatpush1.msra.mxu0 0.0
        %5287 = vmatprep.subr.mxu0 0.0
        %5288 = vmatpush1.msra.mxu0 0.0
        %5289 = vmatprep.subr.mxu0 0.0
        %5290 = vmatpush1.msra.mxu0 0.0
        %5291 = vmatprep.subr.mxu0 0.0
        %5292 = vmatpush1.msra.mxu0 0.0
        %5293 = vmatprep.subr.mxu0 0.0
        %5294 = vmatpush1.msra.mxu0 0.0
        %5295 = vmatprep.subr.mxu0 0.0
        %5296 = vmatpush1.msra.mxu0 0.0
        %5297 = vmatprep.subr.mxu0 0.0
        %5298 = vmatpush1.msra.mxu0 %v4774
        %5299 = vmatprep.subr.mxu0 0.0
        %5300 = vmatpush1.msra.mxu0 %v4773
        %5301 = vmatprep.subr.mxu0 0.0
        %5302 = vmatpush2.msra.mxu0 0.0
        %5303 = vmatprep.subr.mxu0 0.0
        %5304 = vmatpush2.msra.mxu0 0.0
        %5305 = vmatprep.subr.mxu0 0.0
        %5306 = vmatpush2.msra.mxu0 0.0
        %5307 = vmatprep.subr.mxu0 0.0
        %5308 = vmatpush2.msra.mxu0 0.0
        %5309 = vmatprep.subr.mxu0 0.0
        %5310 = vmatpush2.msra.mxu0 0.0
        %5311 = vmatprep.subr.mxu0 0.0
        %5312 = vmatpush2.msra.mxu0 0.0
        %5313 = vmatprep.subr.mxu0 0.0
        %5314 = vmatpush2.msra.mxu0 0.0
        %5315 = vmatprep.subr.mxu0 0.0
        %5316 = vmatpush2.msra.mxu0 0.0
        %5317 = vmatprep.subr.mxu0 0.0
        %5318 = vmatpush2.msra.mxu0 0.0
        %5319 = vmatprep.subr.mxu0 0.0
        %5320 = vmatpush2.msra.mxu0 0.0
        %5321 = vmatprep.subr.mxu0 0.0
        %5322 = vmatpush2.msra.mxu0 0.0
        %5323 = vmatprep.subr.mxu0 0.0
        %5324 = vmatpush2.msra.mxu0 0.0
        %5325 = vmatprep.subr.mxu0 0.0
        %5326 = vmatpush2.msra.mxu0 0.0
        %5327 = vmatprep.subr.mxu0 0.0
        %5328 = vmatpush2.msra.mxu0 0.0
        %5329 = vmatprep.subr.mxu0 0.0
        %5330 = vmatpush2.msra.mxu0 0.0
        %5331 = vmatprep.subr.mxu0 0.0
        %5332 = vmatpush2.msra.mxu0 0.0
        %5333 = vmatprep.mubr.f32.mxu0 0.0
        %5334 = vmatmul.mubr.f32.gmra.mxu0 %v5264
        %v5335 = vpop.f32.mrf.mxu0
        %v5336 = vadd.f32 0.0, %v5335
        %v5337 = vpop.f32.mrf.mxu0
        %5338 = vmatprep.mubr.f32.mxu0 0.0
        %5339 = vmatmul.mubr.f32.gmra.mxu0 %v5267
        %v5340 = vpop.f32.mrf.mxu0
        %v5341 = vadd.f32 0.0, %v5340
        %v5342 = vpop.f32.mrf.mxu0
        %5343 = vdwg.mxu0
        %v5345 = vsel %vm1424, %v4759, 0
        %v5348 = vsel %vm1424, %v4760, 0
        %5350 = vmatprep.subr.mxu0 0.0
        %5351 = vmatpush1.msra.mxu0 0.0
        %5352 = vmatprep.subr.mxu0 0.0
        %5353 = vmatpush1.msra.mxu0 0.0
        %5354 = vmatprep.subr.mxu0 0.0
        %5355 = vmatpush1.msra.mxu0 0.0
        %5356 = vmatprep.subr.mxu0 0.0
        %5357 = vmatpush1.msra.mxu0 0.0
        %5358 = vmatprep.subr.mxu0 0.0
        %5359 = vmatpush1.msra.mxu0 0.0
        %5360 = vmatprep.subr.mxu0 0.0
        %5361 = vmatpush1.msra.mxu0 0.0
        %5362 = vmatprep.subr.mxu0 0.0
        %5363 = vmatpush1.msra.mxu0 0.0
        %5364 = vmatprep.subr.mxu0 0.0
        %5365 = vmatpush1.msra.mxu0 0.0
        %5366 = vmatprep.subr.mxu0 0.0
        %5367 = vmatpush1.msra.mxu0 0.0
        %5368 = vmatprep.subr.mxu0 0.0
        %5369 = vmatpush1.msra.mxu0 0.0
        %5370 = vmatprep.subr.mxu0 0.0
        %5371 = vmatpush1.msra.mxu0 0.0
        %5372 = vmatprep.subr.mxu0 0.0
        %5373 = vmatpush1.msra.mxu0 0.0
        %5374 = vmatprep.subr.mxu0 0.0
        %5375 = vmatpush1.msra.mxu0 0.0
        %5376 = vmatprep.subr.mxu0 0.0
        %5377 = vmatpush1.msra.mxu0 0.0
        %5378 = vmatprep.subr.mxu0 0.0
        %5379 = vmatpush1.msra.mxu0 %v4776
        %5380 = vmatprep.subr.mxu0 0.0
        %5381 = vmatpush1.msra.mxu0 %v4775
        %5382 = vmatprep.subr.mxu0 0.0
        %5383 = vmatpush2.msra.mxu0 0.0
        %5384 = vmatprep.subr.mxu0 0.0
        %5385 = vmatpush2.msra.mxu0 0.0
        %5386 = vmatprep.subr.mxu0 0.0
        %5387 = vmatpush2.msra.mxu0 0.0
        %5388 = vmatprep.subr.mxu0 0.0
        %5389 = vmatpush2.msra.mxu0 0.0
        %5390 = vmatprep.subr.mxu0 0.0
        %5391 = vmatpush2.msra.mxu0 0.0
        %5392 = vmatprep.subr.mxu0 0.0
        %5393 = vmatpush2.msra.mxu0 0.0
        %5394 = vmatprep.subr.mxu0 0.0
        %5395 = vmatpush2.msra.mxu0 0.0
        %5396 = vmatprep.subr.mxu0 0.0
        %5397 = vmatpush2.msra.mxu0 0.0
        %5398 = vmatprep.subr.mxu0 0.0
        %5399 = vmatpush2.msra.mxu0 0.0
        %5400 = vmatprep.subr.mxu0 0.0
        %5401 = vmatpush2.msra.mxu0 0.0
        %5402 = vmatprep.subr.mxu0 0.0
        %5403 = vmatpush2.msra.mxu0 0.0
        %5404 = vmatprep.subr.mxu0 0.0
        %5405 = vmatpush2.msra.mxu0 0.0
        %5406 = vmatprep.subr.mxu0 0.0
        %5407 = vmatpush2.msra.mxu0 0.0
        %5408 = vmatprep.subr.mxu0 0.0
        %5409 = vmatpush2.msra.mxu0 0.0
        %5410 = vmatprep.subr.mxu0 0.0
        %5411 = vmatpush2.msra.mxu0 0.0
        %5412 = vmatprep.subr.mxu0 0.0
        %5413 = vmatpush2.msra.mxu0 0.0
        %5414 = vmatprep.mubr.f32.mxu0 0.0
        %5415 = vmatmul.mubr.f32.gmra.mxu0 %v5345
        %v5416 = vpop.f32.mrf.mxu0
        %v5417 = vadd.f32 0.0, %v5416
        %v5418 = vpop.f32.mrf.mxu0
        %5419 = vmatprep.mubr.f32.mxu0 0.0
        %5420 = vmatmul.mubr.f32.gmra.mxu0 %v5348
        %v5421 = vpop.f32.mrf.mxu0
        %v5422 = vadd.f32 0.0, %v5421
        %v5423 = vpop.f32.mrf.mxu0
        %5424 = vdwg.mxu0
        %v5425 = vsub.f32 %v3522, %v4170
        %v5426 = vsub.f32 %v3527, %v4175
        %v5427 = vsub.f32 %v3603, %v4251
        %v5428 = vsub.f32 %v3608, %v4256
        %v5429 = vsub.f32 %v3684, %v4332
        %v5430 = vsub.f32 %v3689, %v4337
        %v5431 = vsub.f32 %v3765, %v4413
        %v5432 = vsub.f32 %v3770, %v4418
        %v5433 = vsub.f32 %v3846, %v4494
        %v5434 = vsub.f32 %v3851, %v4499
        %v5435 = vsub.f32 %v3927, %v4575
        %v5436 = vsub.f32 %v3932, %v4580
        %v5437 = vsub.f32 %v4008, %v4656
        %v5438 = vsub.f32 %v4013, %v4661
        %v5439 = vsub.f32 %v4089, %v4737
        %v5440 = vsub.f32 %v4094, %v4742
        %v5441 = vsub.f32 %v4850, %v3522
        %v5442 = vsub.f32 %v4855, %v3527
        %v5443 = vsub.f32 %v4931, %v3603
        %v5444 = vsub.f32 %v4936, %v3608
        %v5445 = vsub.f32 %v5012, %v3684
        %v5446 = vsub.f32 %v5017, %v3689
        %v5447 = vsub.f32 %v5093, %v3765
        %v5448 = vsub.f32 %v5098, %v3770
        %v5449 = vsub.f32 %v5174, %v3846
        %v5450 = vsub.f32 %v5179, %v3851
        %v5451 = vsub.f32 %v5255, %v3927
        %v5452 = vsub.f32 %v5260, %v3932
        %v5453 = vsub.f32 %v5336, %v4008
        %v5454 = vsub.f32 %v5341, %v4013
        %v5455 = vsub.f32 %v5417, %v4089
        %v5456 = vsub.f32 %v5422, %v4094
        %v5457 = vsub.f32 %v5441, %v4170
        %v5458 = vsub.f32 %v5442, %v4175
        %v5459 = vsub.f32 %v5443, %v4251
        %v5460 = vsub.f32 %v5444, %v4256
        %v5461 = vsub.f32 %v5445, %v4332
        %v5462 = vsub.f32 %v5446, %v4337
        %v5463 = vsub.f32 %v5447, %v4413
        %v5464 = vsub.f32 %v5448, %v4418
        %v5465 = vsub.f32 %v5449, %v4494
        %v5466 = vsub.f32 %v5450, %v4499
        %v5467 = vsub.f32 %v5451, %v4575
        %v5468 = vsub.f32 %v5452, %v4580
        %v5469 = vsub.f32 %v5453, %v4656
        %v5470 = vsub.f32 %v5454, %v4661
        %v5471 = vsub.f32 %v5455, %v4737
        %v5472 = vsub.f32 %v5456, %v4742
        %vm5473 = vcmask 64512
        %5474 = vst.msk [vmem:[%s626] sm:$0xff] %vm5473, %v5425
        %5475 = vst.msk [vmem:[%s626 + $0x8] sm:$0xff] %vm5473, %v5426
        %5476 = vst.msk [vmem:[%s626 + $0x10] sm:$0xff] %vm5473, %v5427
        %5477 = vst.msk [vmem:[%s626 + $0x18] sm:$0xff] %vm5473, %v5428
        %5478 = vst.msk [vmem:[%s626 + $0x20] sm:$0xff] %vm5473, %v5429
        %5479 = vst.msk [vmem:[%s626 + $0x28] sm:$0xff] %vm5473, %v5430
        %5480 = vst.msk [vmem:[%s626 + $0x30] sm:$0xff] %vm5473, %v5431
        %5481 = vst.msk [vmem:[%s626 + $0x38] sm:$0xff] %vm5473, %v5432
        %5482 = vst.msk [vmem:[%s626 + $0x40] sm:$0xff] %vm5473, %v5433
        %5483 = vst.msk [vmem:[%s626 + $0x48] sm:$0xff] %vm5473, %v5434
        %5484 = vst.msk [vmem:[%s626 + $0x50] sm:$0xff] %vm5473, %v5435
        %5485 = vst.msk [vmem:[%s626 + $0x58] sm:$0xff] %vm5473, %v5436
        %5486 = vst.msk [vmem:[%s626 + $0x60] sm:$0xff] %vm5473, %v5437
        %5487 = vst.msk [vmem:[%s626 + $0x68] sm:$0xff] %vm5473, %v5438
        %5488 = vst.msk [vmem:[%s626 + $0x70] sm:$0xff] %vm5473, %v5439
        %5489 = vst.msk [vmem:[%s626 + $0x78] sm:$0xff] %vm5473, %v5440
        %s5490 = scalar_lea.vmem %s626, 128 [#allocation6]
        %5491 = vst.msk [vmem:[%s5490] sm:$0xff] %vm5473, %v5457
        %5492 = vst.msk [vmem:[%s5490 + $0x8] sm:$0xff] %vm5473, %v5458
        %5493 = vst.msk [vmem:[%s5490 + $0x10] sm:$0xff] %vm5473, %v5459
        %5494 = vst.msk [vmem:[%s5490 + $0x18] sm:$0xff] %vm5473, %v5460
        %5495 = vst.msk [vmem:[%s5490 + $0x20] sm:$0xff] %vm5473, %v5461
        %5496 = vst.msk [vmem:[%s5490 + $0x28] sm:$0xff] %vm5473, %v5462
        %5497 = vst.msk [vmem:[%s5490 + $0x30] sm:$0xff] %vm5473, %v5463
        %5498 = vst.msk [vmem:[%s5490 + $0x38] sm:$0xff] %vm5473, %v5464
        %5499 = vst.msk [vmem:[%s5490 + $0x40] sm:$0xff] %vm5473, %v5465
        %5500 = vst.msk [vmem:[%s5490 + $0x48] sm:$0xff] %vm5473, %v5466
        %5501 = vst.msk [vmem:[%s5490 + $0x50] sm:$0xff] %vm5473, %v5467
        %5502 = vst.msk [vmem:[%s5490 + $0x58] sm:$0xff] %vm5473, %v5468
        %5503 = vst.msk [vmem:[%s5490 + $0x60] sm:$0xff] %vm5473, %v5469
        %5504 = vst.msk [vmem:[%s5490 + $0x68] sm:$0xff] %vm5473, %v5470
        %5505 = vst.msk [vmem:[%s5490 + $0x70] sm:$0xff] %vm5473, %v5471
        %5506 = vst.msk [vmem:[%s5490 + $0x78] sm:$0xff] %vm5473, %v5472
        %s5507 = sand.u32 %s147, 1
        %s5508 = sand.u32 %s147, 1
        %s5509 = smul.addr %s5508, 256
        %s5510 = scalar_lea.vmem [#allocation6], %s5509
        // Predicated region
        $region121: #{tpu_custom_call.1} parent=107 // pred_check
          %p5511 = pneg %p157
        $region122: #{tpu_custom_call.1} parent=107 // pred_check_branch
          %5513 = sbr.rel (%p5511) target = $region124
        $region123: #{tpu_custom_call.1} parent=107 // pred_region
          %s5514 = smul.u32 8, %s19
          %s5515 = smul.addr %s5514, 2
          %s5516 = smul.addr %s5515, 8
          %s5517 = scalar_lea.vmem %s5, %s5516
          // Predicated region
          $region125: #{tpu_custom_call.1} parent=123 // pred_check
            _
          $region126: #{tpu_custom_call.1} parent=123 // pred_check_branch
            %5519 = sbr.rel (0) target = $region128
          $region127: #{tpu_custom_call.1} parent=123 // pred_region
            // Predicated region
            $region129: #{tpu_custom_call.1} parent=127 // pred_check
              _
            $region130: #{tpu_custom_call.1} parent=127 // pred_check_branch
              %5521 = sbr.rel (0) target = $region132
            $region131: #{tpu_custom_call.1} parent=127 // pred_region
              // Predicated region
              $region144: #{tpu_custom_call.1} parent=131 // pred_check
                _
              $region145: #{tpu_custom_call.1} parent=131 // pred_check_branch
                %5599 = sbr.rel (0) target = $region147
              $region146: #{tpu_custom_call.1} parent=131 // pred_region
                loop: start=0, step=1, limit=1
                $region148: #{tpu_custom_call.1} parent=146 // loop_pre_header
                  _
                $region149: #{tpu_custom_call.1} parent=146 // loop_header
                  %s5601 = sphi 0, %s5605
                  %p5602 = scmp.ge.s32.totalorder %s5601, 1
                  %s5606 = sphi %s5510, %s5510
                  %s5607 = sphi %s5517, %s5517
                $region150: #{tpu_custom_call.1} parent=146 // loop_header_branch
                  %5604 = sbr.rel (%p5602) target = $region154
                $region151: #{tpu_custom_call.1} parent=146 // loop_body
                  %v5608 = vld [vmem:[%s5606] sm:$0xff]
                  %5609 = vst [vmem:[%s5607] sm:$0xff] %v5608
                  %v5610 = vld [vmem:[%s5606 + $0x8] sm:$0xff]
                  %5611 = vst [vmem:[%s5607 + $0x8] sm:$0xff] %v5610
                  %v5612 = vld [vmem:[%s5606 + $0x10] sm:$0xff]
                  %5613 = vst [vmem:[%s5607 + $0x10] sm:$0xff] %v5612
                  %v5614 = vld [vmem:[%s5606 + $0x18] sm:$0xff]
                  %5615 = vst [vmem:[%s5607 + $0x18] sm:$0xff] %v5614
                  %v5616 = vld [vmem:[%s5606 + $0x20] sm:$0xff]
                  %5617 = vst [vmem:[%s5607 + $0x20] sm:$0xff] %v5616
                  %v5618 = vld [vmem:[%s5606 + $0x28] sm:$0xff]
                  %5619 = vst [vmem:[%s5607 + $0x28] sm:$0xff] %v5618
                  %v5620 = vld [vmem:[%s5606 + $0x30] sm:$0xff]
                  %5621 = vst [vmem:[%s5607 + $0x30] sm:$0xff] %v5620
                  %v5622 = vld [vmem:[%s5606 + $0x38] sm:$0xff]
                  %5623 = vst [vmem:[%s5607 + $0x38] sm:$0xff] %v5622
                  %v5624 = vld [vmem:[%s5606 + $0x40] sm:$0xff]
                  %5625 = vst [vmem:[%s5607 + $0x40] sm:$0xff] %v5624
                  %v5626 = vld [vmem:[%s5606 + $0x48] sm:$0xff]
                  %5627 = vst [vmem:[%s5607 + $0x48] sm:$0xff] %v5626
                  %v5628 = vld [vmem:[%s5606 + $0x50] sm:$0xff]
                  %5629 = vst [vmem:[%s5607 + $0x50] sm:$0xff] %v5628
                  %v5630 = vld [vmem:[%s5606 + $0x58] sm:$0xff]
                  %5631 = vst [vmem:[%s5607 + $0x58] sm:$0xff] %v5630
                  %v5632 = vld [vmem:[%s5606 + $0x60] sm:$0xff]
                  %5633 = vst [vmem:[%s5607 + $0x60] sm:$0xff] %v5632
                  %v5634 = vld [vmem:[%s5606 + $0x68] sm:$0xff]
                  %5635 = vst [vmem:[%s5607 + $0x68] sm:$0xff] %v5634
                  %v5636 = vld [vmem:[%s5606 + $0x70] sm:$0xff]
                  %5637 = vst [vmem:[%s5607 + $0x70] sm:$0xff] %v5636
                  %v5638 = vld [vmem:[%s5606 + $0x78] sm:$0xff]
                  %5639 = vst [vmem:[%s5607 + $0x78] sm:$0xff] %v5638
                  %v5640 = vld [vmem:[%s5606 + $0x80] sm:$0xff]
                  %5641 = vst [vmem:[%s5607 + $0x100] sm:$0xff] %v5640
                  %v5642 = vld [vmem:[%s5606 + $0x88] sm:$0xff]
                  %5643 = vst [vmem:[%s5607 + $0x108] sm:$0xff] %v5642
                  %v5644 = vld [vmem:[%s5606 + $0x90] sm:$0xff]
                  %5645 = vst [vmem:[%s5607 + $0x110] sm:$0xff] %v5644
                  %v5646 = vld [vmem:[%s5606 + $0x98] sm:$0xff]
                  %5647 = vst [vmem:[%s5607 + $0x118] sm:$0xff] %v5646
                  %v5648 = vld [vmem:[%s5606 + $0xa0] sm:$0xff]
                  %5649 = vst [vmem:[%s5607 + $0x120] sm:$0xff] %v5648
                  %v5650 = vld [vmem:[%s5606 + $0xa8] sm:$0xff]
                  %5651 = vst [vmem:[%s5607 + $0x128] sm:$0xff] %v5650
                  %v5652 = vld [vmem:[%s5606 + $0xb0] sm:$0xff]
                  %5653 = vst [vmem:[%s5607 + $0x130] sm:$0xff] %v5652
                  %v5654 = vld [vmem:[%s5606 + $0xb8] sm:$0xff]
                  %5655 = vst [vmem:[%s5607 + $0x138] sm:$0xff] %v5654
                  %v5656 = vld [vmem:[%s5606 + $0xc0] sm:$0xff]
                  %5657 = vst [vmem:[%s5607 + $0x140] sm:$0xff] %v5656
                  %v5658 = vld [vmem:[%s5606 + $0xc8] sm:$0xff]
                  %5659 = vst [vmem:[%s5607 + $0x148] sm:$0xff] %v5658
                  %v5660 = vld [vmem:[%s5606 + $0xd0] sm:$0xff]
                  %5661 = vst [vmem:[%s5607 + $0x150] sm:$0xff] %v5660
                  %v5662 = vld [vmem:[%s5606 + $0xd8] sm:$0xff]
                  %5663 = vst [vmem:[%s5607 + $0x158] sm:$0xff] %v5662
                  %v5664 = vld [vmem:[%s5606 + $0xe0] sm:$0xff]
                  %5665 = vst [vmem:[%s5607 + $0x160] sm:$0xff] %v5664
                  %v5666 = vld [vmem:[%s5606 + $0xe8] sm:$0xff]
                  %5667 = vst [vmem:[%s5607 + $0x168] sm:$0xff] %v5666
                  %v5668 = vld [vmem:[%s5606 + $0xf0] sm:$0xff]
                  %5669 = vst [vmem:[%s5607 + $0x170] sm:$0xff] %v5668
                  %v5670 = vld [vmem:[%s5606 + $0xf8] sm:$0xff]
                  %5671 = vst [vmem:[%s5607 + $0x178] sm:$0xff] %v5670
                $region152: #{tpu_custom_call.1} parent=146 // loop_footer
                  %s5605 = sadd.s32 1, %s5601
                $region153: #{tpu_custom_call.1} parent=146 // loop_footer_branch
                  %5600 = sbr.rel target = $region149
                $region154: #{tpu_custom_call.1} parent=146 // loop_exit
                  _
              $region147: #{tpu_custom_call.1} parent=131 // pred_fallthru
                _
              // Predicated region
              $region155: #{tpu_custom_call.1} parent=131 // pred_check
                _
              $region156: #{tpu_custom_call.1} parent=131 // pred_check_branch
                %5673 = sbr.rel target = $region158
              $region157: #{tpu_custom_call.1} parent=131 // pred_region
                _
              $region158: #{tpu_custom_call.1} parent=131 // pred_fallthru
                _
            $region132: #{tpu_custom_call.1} parent=127 // pred_fallthru
              _
            // Predicated region
            $region133: #{tpu_custom_call.1} parent=127 // pred_check
              _
            $region134: #{tpu_custom_call.1} parent=127 // pred_check_branch
              %5523 = sbr.rel target = $region136
            $region135: #{tpu_custom_call.1} parent=127 // pred_region
              %s5525 = ssub.s32 256, 1
              loop: start=0, step=1, limit=1
              $region137: #{tpu_custom_call.1} parent=135 // loop_pre_header
                _
              $region138: #{tpu_custom_call.1} parent=135 // loop_header
                %s5527 = sphi 0, %s5531
                %p5528 = scmp.ge.s32.totalorder %s5527, 1
                %s5532 = sphi %s5510, %s5510
                %s5533 = sphi %s5517, %s5517
              $region139: #{tpu_custom_call.1} parent=135 // loop_header_branch
                %5530 = sbr.rel (%p5528) target = $region143
              $region140: #{tpu_custom_call.1} parent=135 // loop_body
                %v5534 = vld [vmem:[%s5532] sm:%s5525]
                %5535 = vst [vmem:[%s5533] sm:%s5525] %v5534
                %v5536 = vld [vmem:[%s5532 + $0x8] sm:%s5525]
                %5537 = vst [vmem:[%s5533 + $0x8] sm:%s5525] %v5536
                %v5538 = vld [vmem:[%s5532 + $0x10] sm:%s5525]
                %5539 = vst [vmem:[%s5533 + $0x10] sm:%s5525] %v5538
                %v5540 = vld [vmem:[%s5532 + $0x18] sm:%s5525]
                %5541 = vst [vmem:[%s5533 + $0x18] sm:%s5525] %v5540
                %v5542 = vld [vmem:[%s5532 + $0x20] sm:%s5525]
                %5543 = vst [vmem:[%s5533 + $0x20] sm:%s5525] %v5542
                %v5544 = vld [vmem:[%s5532 + $0x28] sm:%s5525]
                %5545 = vst [vmem:[%s5533 + $0x28] sm:%s5525] %v5544
                %v5546 = vld [vmem:[%s5532 + $0x30] sm:%s5525]
                %5547 = vst [vmem:[%s5533 + $0x30] sm:%s5525] %v5546
                %v5548 = vld [vmem:[%s5532 + $0x38] sm:%s5525]
                %5549 = vst [vmem:[%s5533 + $0x38] sm:%s5525] %v5548
                %v5550 = vld [vmem:[%s5532 + $0x40] sm:%s5525]
                %5551 = vst [vmem:[%s5533 + $0x40] sm:%s5525] %v5550
                %v5552 = vld [vmem:[%s5532 + $0x48] sm:%s5525]
                %5553 = vst [vmem:[%s5533 + $0x48] sm:%s5525] %v5552
                %v5554 = vld [vmem:[%s5532 + $0x50] sm:%s5525]
                %5555 = vst [vmem:[%s5533 + $0x50] sm:%s5525] %v5554
                %v5556 = vld [vmem:[%s5532 + $0x58] sm:%s5525]
                %5557 = vst [vmem:[%s5533 + $0x58] sm:%s5525] %v5556
                %v5558 = vld [vmem:[%s5532 + $0x60] sm:%s5525]
                %5559 = vst [vmem:[%s5533 + $0x60] sm:%s5525] %v5558
                %v5560 = vld [vmem:[%s5532 + $0x68] sm:%s5525]
                %5561 = vst [vmem:[%s5533 + $0x68] sm:%s5525] %v5560
                %v5562 = vld [vmem:[%s5532 + $0x70] sm:%s5525]
                %5563 = vst [vmem:[%s5533 + $0x70] sm:%s5525] %v5562
                %v5564 = vld [vmem:[%s5532 + $0x78] sm:%s5525]
                %5565 = vst [vmem:[%s5533 + $0x78] sm:%s5525] %v5564
                %v5566 = vld [vmem:[%s5532 + $0x80] sm:%s5525]
                %5567 = vst [vmem:[%s5533 + $0x100] sm:%s5525] %v5566
                %v5568 = vld [vmem:[%s5532 + $0x88] sm:%s5525]
                %5569 = vst [vmem:[%s5533 + $0x108] sm:%s5525] %v5568
                %v5570 = vld [vmem:[%s5532 + $0x90] sm:%s5525]
                %5571 = vst [vmem:[%s5533 + $0x110] sm:%s5525] %v5570
                %v5572 = vld [vmem:[%s5532 + $0x98] sm:%s5525]
                %5573 = vst [vmem:[%s5533 + $0x118] sm:%s5525] %v5572
                %v5574 = vld [vmem:[%s5532 + $0xa0] sm:%s5525]
                %5575 = vst [vmem:[%s5533 + $0x120] sm:%s5525] %v5574
                %v5576 = vld [vmem:[%s5532 + $0xa8] sm:%s5525]
                %5577 = vst [vmem:[%s5533 + $0x128] sm:%s5525] %v5576
                %v5578 = vld [vmem:[%s5532 + $0xb0] sm:%s5525]
                %5579 = vst [vmem:[%s5533 + $0x130] sm:%s5525] %v5578
                %v5580 = vld [vmem:[%s5532 + $0xb8] sm:%s5525]
                %5581 = vst [vmem:[%s5533 + $0x138] sm:%s5525] %v5580
                %v5582 = vld [vmem:[%s5532 + $0xc0] sm:%s5525]
                %5583 = vst [vmem:[%s5533 + $0x140] sm:%s5525] %v5582
                %v5584 = vld [vmem:[%s5532 + $0xc8] sm:%s5525]
                %5585 = vst [vmem:[%s5533 + $0x148] sm:%s5525] %v5584
                %v5586 = vld [vmem:[%s5532 + $0xd0] sm:%s5525]
                %5587 = vst [vmem:[%s5533 + $0x150] sm:%s5525] %v5586
                %v5588 = vld [vmem:[%s5532 + $0xd8] sm:%s5525]
                %5589 = vst [vmem:[%s5533 + $0x158] sm:%s5525] %v5588
                %v5590 = vld [vmem:[%s5532 + $0xe0] sm:%s5525]
                %5591 = vst [vmem:[%s5533 + $0x160] sm:%s5525] %v5590
                %v5592 = vld [vmem:[%s5532 + $0xe8] sm:%s5525]
                %5593 = vst [vmem:[%s5533 + $0x168] sm:%s5525] %v5592
                %v5594 = vld [vmem:[%s5532 + $0xf0] sm:%s5525]
                %5595 = vst [vmem:[%s5533 + $0x170] sm:%s5525] %v5594
                %v5596 = vld [vmem:[%s5532 + $0xf8] sm:%s5525]
                %5597 = vst [vmem:[%s5533 + $0x178] sm:%s5525] %v5596
              $region141: #{tpu_custom_call.1} parent=135 // loop_footer
                %s5531 = sadd.s32 1, %s5527
              $region142: #{tpu_custom_call.1} parent=135 // loop_footer_branch
                %5526 = sbr.rel target = $region138
              $region143: #{tpu_custom_call.1} parent=135 // loop_exit
                _
            $region136: #{tpu_custom_call.1} parent=127 // pred_fallthru
              _
          $region128: #{tpu_custom_call.1} parent=123 // pred_fallthru
            _
          %5674 = vnop
        $region124: #{tpu_custom_call.1} parent=107 // pred_fallthru
          _
      $region108: #{tpu_custom_call.1} parent=5 // pred_fallthru
        _
      %p5675 = scmp.le.s32.totalorder 2, %s14
      // Predicated region
      $region159: #{tpu_custom_call.1} parent=5 // pred_check
        %p5676 = pneg %p5675
      $region160: #{tpu_custom_call.1} parent=5 // pred_check_branch
        %5678 = sbr.rel (%p5676) target = $region162
      $region161: #{tpu_custom_call.1} parent=5 // pred_region
        %s5679 = ssub.s32 %s14, 2
        // Predicated region
        $region163: #{tpu_custom_call.1} parent=161 // pred_check
          %p5680 = pneg %p163
        $region164: #{tpu_custom_call.1} parent=161 // pred_check_branch
          %5682 = sbr.rel (%p5680) target = $region166
        $region165: #{tpu_custom_call.1} parent=161 // pred_region
          %s5683 = sand.u32 %s148, 1
          %s5684 = sand.u32 %s148, 1
          %s5685 = smul.addr %s5684, 256
          %s5686 = scalar_lea.vmem [#allocation6], %s5685
        $region166: #{tpu_custom_call.1} parent=161 // pred_fallthru
          _
      $region162: #{tpu_custom_call.1} parent=5 // pred_fallthru
        _
    $region6: #{tpu_custom_call.1} parent=1 // loop_footer
      %s18 = sadd.s32 1, %s14
    $region7: #{tpu_custom_call.1} parent=1 // loop_footer_branch
      %13 = sbr.rel target = $region3
    $region8: #{tpu_custom_call.1} parent=1 // loop_exit
      _
    %5687 = vsyncpa [#allocation4], 1
    %s5688 = scalar_lea.sflag [#allocation4], 1
    %5689 = vsyncpa %s5688, 1

</llo_original>
